<compile_context>
chip_gen: v7x
topology: tpu7x:2x2x1
jax: 0.10.0
libtpu: 0.0.40
codegen_flags: <defaults>
</compile_context>

<pallas_src>
import functools
import math

import jax
import jax.numpy as jnp
import numpy as np
from jax.experimental import pallas as pl
from jax.experimental.pallas import tpu as pltpu

LN_EPS = 1e-5          # PyTorch nn.LayerNorm default
_NEG_BIG = -1e30       # finite "-inf" (robust if a row were ever fully masked)


def _layer_norm(h, w, b):
    mu = jnp.mean(h, axis=-1, keepdims=True)
    var = jnp.mean((h - mu) ** 2, axis=-1, keepdims=True)
    return (h - mu) * jax.lax.rsqrt(var + LN_EPS) * w + b


def _block_kernel(
    x_ref,
    ln1w_ref, ln1b_ref,
    wqkv_ref, bqkv_ref,
    wp_ref, bp_ref,
    ln2w_ref, ln2b_ref,
    w1_ref, b1_ref, w2_ref, b2_ref,
    out_ref, k_ref, v_ref,
    *, n_head, tq, tk,
):
    bf16 = jnp.bfloat16
    x = x_ref[0]                       # (T, C) f32
    T, C = x.shape
    hd = C // n_head

    # ---- ln1 (f32) + fused QKV projection (bf16 MXU, f32 accumulate) ------
    # The 1/sqrt(hd) softmax scale is already folded into wq / bq columns.
    h = _layer_norm(x, ln1w_ref[...], ln1b_ref[...])
    qkv = jnp.dot(h.astype(bf16), wqkv_ref[...],
                  preferred_element_type=jnp.float32) + bqkv_ref[...]
    q = qkv[:, :C]
    k = qkv[:, C:2 * C]
    v = qkv[:, 2 * C:]

    # KV cache: one lane-dense (T, C) bf16 store per tensor (no masked vst).
    # Wrapper reshapes to the (B, n_head, T, hd) PyTorch convention.
    k_ref[0] = k.astype(bf16)
    v_ref[0] = v.astype(bf16)

    # Head-major bf16 operands for the batched attention matmuls.
    # (These three relayouts are the remaining known XLU cost per grid step.)
    q3 = jnp.transpose(q.reshape(T, n_head, hd), (1, 0, 2)).astype(bf16)
    k3 = jnp.transpose(k.reshape(T, n_head, hd), (1, 0, 2)).astype(bf16)
    v3 = jnp.transpose(v.reshape(T, n_head, hd), (1, 0, 2)).astype(bf16)

    n_q = T // tq
    n_k = T // tk

    # ---- flash-style attention + per-tile proj / residual / ln2 / MLP -----
    for qi in range(n_q):
        q_t = q3[:, qi * tq:(qi + 1) * tq, :]                 # (nh, tq, hd)

        m_i = jnp.full((n_head, tq, 1), _NEG_BIG, jnp.float32)
        l_i = jnp.zeros((n_head, tq, 1), jnp.float32)
        acc = jnp.zeros((n_head, tq, hd), jnp.float32)

        # Causal tile skipping: only K/V tiles whose first key index is
        # <= the last query index of this q tile contribute.
        last_ki = min(n_k - 1, ((qi + 1) * tq - 1) // tk)
        for ki in range(last_ki + 1):
            k_t = k3[:, ki * tk:(ki + 1) * tk, :]             # (nh, tk, hd)
            v_t = v3[:, ki * tk:(ki + 1) * tk, :]

            s = jnp.einsum('hqd,hkd->hqk', q_t, k_t,
                           preferred_element_type=jnp.float32)  # (nh,tq,tk)

            # Mask only tiles that overlap the causal diagonal.
            if (ki + 1) * tk - 1 > qi * tq:
                r = jax.lax.broadcasted_iota(jnp.int32, (tq, tk), 0) + qi * tq
                c = jax.lax.broadcasted_iota(jnp.int32, (tq, tk), 1) + ki * tk
                s = jnp.where((r >= c)[None], s, _NEG_BIG)

            m_new = jnp.maximum(m_i, jnp.max(s, axis=-1, keepdims=True))
            alpha = jnp.exp(m_i - m_new)
            p = jnp.exp(s - m_new)
            l_i = alpha * l_i + jnp.sum(p, axis=-1, keepdims=True)
            acc = alpha * acc + jnp.einsum(
                'hqk,hkd->hqd', p.astype(bf16), v_t,
                preferred_element_type=jnp.float32)
            m_i = m_new

        # approx reciprocal (EUP); ~1e-3 rel err — fine at rtol=1e-2.
        o_t = acc * pl.reciprocal(l_i, approx=True)           # (nh, tq, hd)
        y_t = jnp.transpose(o_t, (1, 0, 2)).reshape(tq, C)    # (tq, C)

        attn_out = jnp.dot(y_t.astype(bf16), wp_ref[...],
                           preferred_element_type=jnp.float32) + bp_ref[...]

        # first residual (per tile)
        x1 = x[qi * tq:(qi + 1) * tq, :] + attn_out

        # ln2 + MLP (Linear -> exact erf GELU -> Linear) per tile.
        # (tanh-approx GELU would move work VPU->EUP but changes numerics.)
        h2 = _layer_norm(x1, ln2w_ref[...], ln2b_ref[...])
        m1 = jnp.dot(h2.astype(bf16), w1_ref[...],
                     preferred_element_type=jnp.float32) + b1_ref[...]
        m1 = 0.5 * m1 * (1.0 + jax.lax.erf(m1 * (1.0 / math.sqrt(2.0))))
        m2 = jnp.dot(m1.astype(bf16), w2_ref[...],
                     preferred_element_type=jnp.float32) + b2_ref[...]

        out_ref[0, qi * tq:(qi + 1) * tq, :] = x1 + m2


def _pick_tile(n, target=256):
    """Largest divisor of n that is <= target (MXU-friendly when n allows)."""
    if n <= target:
        return n
    for t in range(target, 0, -1):
        if n % t == 0:
            return t
    return n


def _vmem_limit_bytes():
    """Per-generation VMEM budget: ~100 MiB on v5e/v6e, ~56 MiB on v7x."""
    cap = None
    try:
        cap = getattr(pltpu.get_tpu_info(), "vmem_capacity_bytes", None)
    except Exception:
        cap = None
    if not cap:
        cap = 64 << 20                 # conservative (v7x physical per-TC)
    return max(32 << 20, min(cap - (8 << 20), 100 << 20))


def prepare_params(params, n_head):
    """One-time weight packing / casting (hoisted out of the forward path).

    * fuses Wq/Wk/Wv into a single (C, 3C) bf16 matrix,
    * folds the 1/sqrt(head_dim) softmax scale into the Q columns/bias,
    * pre-casts the MXU weight operands to bf16 (biases / LN params stay f32).
    """
    C = params["wq"].shape[0]
    hd = C // n_head
    scale = 1.0 / math.sqrt(hd)
    bf16 = jnp.bfloat16
    return {
        "ln1_w": params["ln1_w"], "ln1_b": params["ln1_b"],
        "ln2_w": params["ln2_w"], "ln2_b": params["ln2_b"],
        "wqkv": jnp.concatenate(
            [params["wq"] * scale, params["wk"], params["wv"]],
            axis=1).astype(bf16),
        "bqkv": jnp.concatenate(
            [params["bq"] * scale, params["bk"], params["bv"]],
            axis=1).astype(jnp.float32),
        "wp": params["wp"].astype(bf16), "bp": params["bp"],
        "w1": params["w1"].astype(bf16), "b1": params["b1"],
        "w2": params["w2"].astype(bf16), "b2": params["b2"],
    }


def block_forward(x, prep, n_head, *, q_tile=256, kv_tile=256):
    """Fused transformer Block forward.  Returns (out, (k, v)).

    `prep` must come from prepare_params() (call once, reuse per forward).
    k/v are returned in bf16 (they are consumed as bf16 by attention anyway).
    """
    B, T, C = x.shape
    assert C % n_head == 0
    hd = C // n_head
    H = 4 * C
    tq = _pick_tile(T, q_tile)
    tk = _pick_tile(T, kv_tile)

    kernel = functools.partial(_block_kernel, n_head=n_head, tq=tq, tk=tk)

    out_shape = (
        jax.ShapeDtypeStruct((B, T, C), x.dtype),        # out
        jax.ShapeDtypeStruct((B, T, C), jnp.bfloat16),   # k (lane-dense)
        jax.ShapeDtypeStruct((B, T, C), jnp.bfloat16),   # v (lane-dense)
    )

    # Advisory cost hint for XLA's scheduler (causal skipping ~halves attn).
    flops = 24 * B * T * C * C + 2 * B * T * T * C
    transcendentals = B * n_head * T * T // 2 + B * T * H
    bytes_accessed = (2 * 4 * B * T * C          # x read + out write (f32)
                      + 2 * 2 * B * T * C        # k + v write (bf16)
                      + 2 * 12 * C * C           # bf16 weights
                      + 4 * (8 * C + H))         # f32 biases / LN params

    def _call(single_buffer_weights):
        if single_buffer_weights:
            # Grid-invariant operands: single-buffer to halve weight VMEM.
            const_spec = lambda shape: pl.BlockSpec(
                shape, lambda b: (0, 0), pipeline_mode=pl.Buffered(1))
        else:
            const_spec = lambda shape: pl.BlockSpec(shape, lambda b: (0, 0))

        in_specs = [
            pl.BlockSpec((1, T, C), lambda b: (b, 0, 0)),   # x
            const_spec((1, C)), const_spec((1, C)),         # ln1 w, b
            const_spec((C, 3 * C)), const_spec((1, 3 * C)), # fused Wqkv, bqkv
            const_spec((C, C)), const_spec((1, C)),         # Wproj, bproj
            const_spec((1, C)), const_spec((1, C)),         # ln2 w, b
            const_spec((C, H)), const_spec((1, H)),         # W1, b1
            const_spec((H, C)), const_spec((1, C)),         # W2, b2
        ]
        out_specs = (
            pl.BlockSpec((1, T, C), lambda b: (b, 0, 0)),   # out
            pl.BlockSpec((1, T, C), lambda b: (b, 0, 0)),   # k
            pl.BlockSpec((1, T, C), lambda b: (b, 0, 0)),   # v
        )
        return pl.pallas_call(
            kernel,
            out_shape=out_shape,
            grid_spec=pltpu.PrefetchScalarGridSpec(
                num_scalar_prefetch=0,
                grid=(B,),
                in_specs=in_specs,
                out_specs=out_specs,
            ),
            compiler_params=pltpu.CompilerParams(
                dimension_semantics=("parallel",),
                vmem_limit_bytes=_vmem_limit_bytes(),
            ),
            cost_estimate=pl.CostEstimate(
                flops=flops,
                transcendentals=transcendentals,
                bytes_accessed=bytes_accessed),
        )(
            x,
            prep["ln1_w"], prep["ln1_b"],
            prep["wqkv"], prep["bqkv"],
            prep["wp"], prep["bp"],
            prep["ln2_w"], prep["ln2_b"],
            prep["w1"], prep["b1"],
            prep["w2"], prep["b2"],
        )

    try:
        out, k_flat, v_flat = _call(True)
    except Exception:
        # pipeline_mode=pl.Buffered(1) unsupported on this jax version ->
        # fall back to default double buffering (correctness unchanged).
        out, k_flat, v_flat = _call(False)

    # Layout plumbing in the wrapper: (B, T, C) -> (B, n_head, T, hd).
    k = k_flat.reshape(B, T, n_head, hd).transpose(0, 2, 1, 3)
    v = v_flat.reshape(B, T, n_head, hd).transpose(0, 2, 1, 3)
    return out, (k, v)


def block_ref(x, p, n_head):
    """Pure-JAX f32 reference mirroring the PyTorch forward (dropout = id)."""
    B, T, C = x.shape
    hd = C // n_head

    def ln(h, w, b):
        mu = h.mean(-1, keepdims=True)
        var = ((h - mu) ** 2).mean(-1, keepdims=True)
        return (h - mu) / jnp.sqrt(var + LN_EPS) * w + b

    h = ln(x, p["ln1_w"], p["ln1_b"])
    q = (h @ p["wq"] + p["bq"]).reshape(B, T, n_head, hd).transpose(0, 2, 1, 3)
    k = (h @ p["wk"] + p["bk"]).reshape(B, T, n_head, hd).transpose(0, 2, 1, 3)
    v = (h @ p["wv"] + p["bv"]).reshape(B, T, n_head, hd).transpose(0, 2, 1, 3)

    att = (q @ k.transpose(0, 1, 3, 2)) / math.sqrt(hd)
    mask = jnp.tril(jnp.ones((T, T), dtype=bool))
    att = jnp.where(mask[None, None], att, -jnp.inf)
    att = jax.nn.softmax(att, axis=-1)
    y = (att @ v).transpose(0, 2, 1, 3).reshape(B, T, C)
    attn_out = y @ p["wp"] + p["bp"]

    x1 = x + attn_out
    h2 = ln(x1, p["ln2_w"], p["ln2_b"])
    m = h2 @ p["w1"] + p["b1"]
    m = 0.5 * m * (1.0 + jax.lax.erf(m / math.sqrt(2.0)))
    m = m @ p["w2"] + p["b2"]
    return x1 + m, (k, v)


def init_params(key, n_embd):
    C = n_embd
    H = 4 * C
    ks = jax.random.split(key, 8)
    s = 0.02
    # weights stored as (in_features, out_features) == PyTorch W.T
    return {
        "ln1_w": jnp.ones((1, C), jnp.float32),
        "ln1_b": jnp.zeros((1, C), jnp.float32),
        "ln2_w": jnp.ones((1, C), jnp.float32),
        "ln2_b": jnp.zeros((1, C), jnp.float32),
        "wq": s * jax.random.normal(ks[0], (C, C), jnp.float32),
        "bq": jnp.zeros((1, C), jnp.float32),
        "wk": s * jax.random.normal(ks[1], (C, C), jnp.float32),
        "bk": jnp.zeros((1, C), jnp.float32),
        "wv": s * jax.random.normal(ks[2], (C, C), jnp.float32),
        "bv": jnp.zeros((1, C), jnp.float32),
        "wp": s * jax.random.normal(ks[3], (C, C), jnp.float32),
        "bp": jnp.zeros((1, C), jnp.float32),
        "w1": s * jax.random.normal(ks[4], (C, H), jnp.float32),
        "b1": jnp.zeros((1, H), jnp.float32),
        "w2": s * jax.random.normal(ks[5], (H, C), jnp.float32),
        "b2": jnp.zeros((1, C), jnp.float32),
    }


if __name__ == "__main__":
    B, T, n_embd, n_head = 2, 8, 32, 4
    # block_size=8 in the module -> mask covers any T <= block_size + 1

    key = jax.random.PRNGKey(0)
    kx, kp = jax.random.split(key)
    x = jax.random.normal(kx, (B, T, n_embd), jnp.float32)
    params = init_params(kp, n_embd)

    prep = prepare_params(params, n_head)       # one-time pack / bf16 cast
    out, (k, v) = block_forward(x, prep, n_head)
    out = jax.block_until_ready(out)
    k = jax.block_until_ready(k)
    v = jax.block_until_ready(v)

    # sanity check against pure-JAX f32 reference (kernel uses bf16 matmuls
    # and bf16 KV writeback, so tolerances are loosened accordingly)
    ref_out, (ref_k, ref_v) = block_ref(x, params, n_head)
    np.testing.assert_allclose(np.asarray(out), np.asarray(ref_out),
                               rtol=1e-2, atol=1e-2)
    np.testing.assert_allclose(np.asarray(k.astype(jnp.float32)),
                               np.asarray(ref_k), rtol=1e-2, atol=1e-2)
    np.testing.assert_allclose(np.asarray(v.astype(jnp.float32)),
                               np.asarray(ref_v), rtol=1e-2, atol=1e-2)

    print("KERNEL_OK")
</pallas_src>

<mosaic_0001>
module attributes {stable_mosaic.version = 11 : i64} {
  func.func @_block_kernel(%arg0: i32, %arg1: memref<1x8x32xf32, #tpu.memory_space<vmem>>, %arg2: memref<1x32xf32, #tpu.memory_space<vmem>>, %arg3: memref<1x32xf32, #tpu.memory_space<vmem>>, %arg4: memref<32x96xbf16, #tpu.memory_space<vmem>>, %arg5: memref<1x96xf32, #tpu.memory_space<vmem>>, %arg6: memref<32x32xbf16, #tpu.memory_space<vmem>>, %arg7: memref<1x32xf32, #tpu.memory_space<vmem>>, %arg8: memref<1x32xf32, #tpu.memory_space<vmem>>, %arg9: memref<1x32xf32, #tpu.memory_space<vmem>>, %arg10: memref<32x128xbf16, #tpu.memory_space<vmem>>, %arg11: memref<1x128xf32, #tpu.memory_space<vmem>>, %arg12: memref<128x32xbf16, #tpu.memory_space<vmem>>, %arg13: memref<1x32xf32, #tpu.memory_space<vmem>>, %arg14: memref<1x8x32xf32, #tpu.memory_space<vmem>>, %arg15: memref<1x8x32xbf16, #tpu.memory_space<vmem>>, %arg16: memref<1x8x32xbf16, #tpu.memory_space<vmem>>) attributes {dimension_semantics = [#tpu.dimension_semantics<parallel>], iteration_bounds = array<i64: 2>, scalar_prefetch = 0 : i64, scratch_operands = 0 : i64, tpu.core_type = #tpu.core_type<tc>, window_params = [{transform_indices = @transform_0, window_bounds = array<i64: 1, 8, 32>}, {pipeline_mode = #tpu.pipeline_mode<synchronous>, transform_indices = @transform_1, window_bounds = array<i64: 1, 32>}, {pipeline_mode = #tpu.pipeline_mode<synchronous>, transform_indices = @transform_2, window_bounds = array<i64: 1, 32>}, {pipeline_mode = #tpu.pipeline_mode<synchronous>, transform_indices = @transform_3, window_bounds = array<i64: 32, 96>}, {pipeline_mode = #tpu.pipeline_mode<synchronous>, transform_indices = @transform_4, window_bounds = array<i64: 1, 96>}, {pipeline_mode = #tpu.pipeline_mode<synchronous>, transform_indices = @transform_5, window_bounds = array<i64: 32, 32>}, {pipeline_mode = #tpu.pipeline_mode<synchronous>, transform_indices = @transform_6, window_bounds = array<i64: 1, 32>}, {pipeline_mode = #tpu.pipeline_mode<synchronous>, transform_indices = @transform_7, window_bounds = array<i64: 1, 32>}, {pipeline_mode = #tpu.pipeline_mode<synchronous>, transform_indices = @transform_8, window_bounds = array<i64: 1, 32>}, {pipeline_mode = #tpu.pipeline_mode<synchronous>, transform_indices = @transform_9, window_bounds = array<i64: 32, 128>}, {pipeline_mode = #tpu.pipeline_mode<synchronous>, transform_indices = @transform_10, window_bounds = array<i64: 1, 128>}, {pipeline_mode = #tpu.pipeline_mode<synchronous>, transform_indices = @transform_11, window_bounds = array<i64: 128, 32>}, {pipeline_mode = #tpu.pipeline_mode<synchronous>, transform_indices = @transform_12, window_bounds = array<i64: 1, 32>}, {transform_indices = @transform_13, window_bounds = array<i64: 1, 8, 32>}, {transform_indices = @transform_14, window_bounds = array<i64: 1, 8, 32>}, {transform_indices = @transform_15, window_bounds = array<i64: 1, 8, 32>}]} {
    %c0 = arith.constant 0 : index
    %c0_0 = arith.constant 0 : index
    %c0_1 = arith.constant 0 : index
    %0 = vector.load %arg1[%c0, %c0_0, %c0_1] : memref<1x8x32xf32, #tpu.memory_space<vmem>>, vector<1x8x32xf32>
    %1 = vector.shape_cast %0 : vector<1x8x32xf32> to vector<8x32xf32>
    %c0_2 = arith.constant 0 : index
    %c0_3 = arith.constant 0 : index
    %2 = vector.load %arg2[%c0_2, %c0_3] : memref<1x32xf32, #tpu.memory_space<vmem>>, vector<1x32xf32>
    %c0_4 = arith.constant 0 : index
    %c0_5 = arith.constant 0 : index
    %3 = vector.load %arg3[%c0_4, %c0_5] : memref<1x32xf32, #tpu.memory_space<vmem>>, vector<1x32xf32>
    %cst = arith.constant dense<0.000000e+00> : vector<8xf32>
    %4 = vector.multi_reduction <add>, %1, %cst [1] : vector<8x32xf32> to vector<8xf32>
    %5 = vector.shape_cast %4 : vector<8xf32> to vector<8x1xf32>
    %cst_6 = arith.constant 3.200000e+01 : f32
    %6 = vector.broadcast %cst_6 : f32 to vector<8x1xf32>
    %7 = arith.divf %5, %6 : vector<8x1xf32>
    %8 = vector.broadcast %7 : vector<8x1xf32> to vector<8x32xf32>
    %9 = arith.subf %1, %8 : vector<8x32xf32>
    %10 = arith.mulf %9, %9 : vector<8x32xf32>
    %cst_7 = arith.constant dense<0.000000e+00> : vector<8xf32>
    %11 = vector.multi_reduction <add>, %10, %cst_7 [1] : vector<8x32xf32> to vector<8xf32>
    %12 = vector.shape_cast %11 : vector<8xf32> to vector<8x1xf32>
    %cst_8 = arith.constant 3.200000e+01 : f32
    %13 = vector.broadcast %cst_8 : f32 to vector<8x1xf32>
    %14 = arith.divf %12, %13 : vector<8x1xf32>
    %15 = vector.broadcast %7 : vector<8x1xf32> to vector<8x32xf32>
    %16 = arith.subf %1, %15 : vector<8x32xf32>
    %cst_9 = arith.constant 9.99999974E-6 : f32
    %17 = vector.broadcast %cst_9 : f32 to vector<8x1xf32>
    %18 = arith.addf %14, %17 : vector<8x1xf32>
    %19 = math.rsqrt %18 : vector<8x1xf32>
    %20 = vector.broadcast %19 : vector<8x1xf32> to vector<8x32xf32>
    %21 = arith.mulf %16, %20 : vector<8x32xf32>
    %22 = vector.broadcast %2 : vector<1x32xf32> to vector<8x32xf32>
    %23 = arith.mulf %21, %22 : vector<8x32xf32>
    %24 = vector.broadcast %3 : vector<1x32xf32> to vector<8x32xf32>
    %25 = arith.addf %23, %24 : vector<8x32xf32>
    %26 = arith.truncf %25 : vector<8x32xf32> to vector<8x32xbf16>
    %c0_10 = arith.constant 0 : index
    %c0_11 = arith.constant 0 : index
    %27 = vector.load %arg4[%c0_10, %c0_11] : memref<32x96xbf16, #tpu.memory_space<vmem>>, vector<32x96xbf16>
    %cst_12 = arith.constant dense<0.000000e+00> : vector<8x96xf32>
    %28 = tpu.matmul %26, %27, %cst_12 {dimension_numbers = #tpu.dot_dimension_numbers<[1], [0], [0], [1], [0, 0, 1, 1], [], []>} : vector<8x32xbf16>, vector<32x96xbf16>, vector<8x96xf32> -> vector<8x96xf32>
    %c0_13 = arith.constant 0 : index
    %c0_14 = arith.constant 0 : index
    %29 = vector.load %arg5[%c0_13, %c0_14] : memref<1x96xf32, #tpu.memory_space<vmem>>, vector<1x96xf32>
    %30 = vector.broadcast %29 : vector<1x96xf32> to vector<8x96xf32>
    %31 = arith.addf %28, %30 : vector<8x96xf32>
    %32 = vector.extract_strided_slice %31 {offsets = [0, 0], sizes = [8, 32], strides = [1, 1]} : vector<8x96xf32> to vector<8x32xf32>
    %33 = vector.extract_strided_slice %31 {offsets = [0, 32], sizes = [8, 32], strides = [1, 1]} : vector<8x96xf32> to vector<8x32xf32>
    %34 = vector.extract_strided_slice %31 {offsets = [0, 64], sizes = [8, 32], strides = [1, 1]} : vector<8x96xf32> to vector<8x32xf32>
    %35 = arith.truncf %33 : vector<8x32xf32> to vector<8x32xbf16>
    %c0_15 = arith.constant 0 : index
    %c0_16 = arith.constant 0 : index
    %c0_17 = arith.constant 0 : index
    %36 = vector.load %arg15[%c0_15, %c0_16, %c0_17] : memref<1x8x32xbf16, #tpu.memory_space<vmem>>, vector<1x8x32xbf16>
    %37 = vector.shape_cast %36 : vector<1x8x32xbf16> to vector<8x32xbf16>
    %38 = vector.shape_cast %35 : vector<8x32xbf16> to vector<1x8x32xbf16>
    tpu.vector_store %arg15[%c0_15, %c0_16, %c0_17], %38 {strides = array<i32>} : memref<1x8x32xbf16, #tpu.memory_space<vmem>>, vector<1x8x32xbf16>,
    %39 = arith.truncf %34 : vector<8x32xf32> to vector<8x32xbf16>
    %c0_18 = arith.constant 0 : index
    %c0_19 = arith.constant 0 : index
    %c0_20 = arith.constant 0 : index
    %40 = vector.load %arg16[%c0_18, %c0_19, %c0_20] : memref<1x8x32xbf16, #tpu.memory_space<vmem>>, vector<1x8x32xbf16>
    %41 = vector.shape_cast %40 : vector<1x8x32xbf16> to vector<8x32xbf16>
    %42 = vector.shape_cast %39 : vector<8x32xbf16> to vector<1x8x32xbf16>
    tpu.vector_store %arg16[%c0_18, %c0_19, %c0_20], %42 {strides = array<i32>} : memref<1x8x32xbf16, #tpu.memory_space<vmem>>, vector<1x8x32xbf16>,
    %43 = vector.shape_cast %32 : vector<8x32xf32> to vector<8x4x8xf32>
    %44 = tpu.transpose %43, [1, 0, 2] : vector<8x4x8xf32> -> vector<4x8x8xf32>
    %45 = arith.truncf %44 : vector<4x8x8xf32> to vector<4x8x8xbf16>
    %46 = vector.shape_cast %33 : vector<8x32xf32> to vector<8x4x8xf32>
    %47 = tpu.transpose %46, [1, 0, 2] : vector<8x4x8xf32> -> vector<4x8x8xf32>
    %48 = arith.truncf %47 : vector<4x8x8xf32> to vector<4x8x8xbf16>
    %49 = vector.shape_cast %34 : vector<8x32xf32> to vector<8x4x8xf32>
    %50 = tpu.transpose %49, [1, 0, 2] : vector<8x4x8xf32> -> vector<4x8x8xf32>
    %51 = arith.truncf %50 : vector<4x8x8xf32> to vector<4x8x8xbf16>
    %cst_21 = arith.constant -1.000000e+30 : f32
    %52 = vector.broadcast %cst_21 : f32 to vector<4x8x1xf32>
    %cst_22 = arith.constant 0.000000e+00 : f32
    %53 = vector.broadcast %cst_22 : f32 to vector<4x8x1xf32>
    %cst_23 = arith.constant 0.000000e+00 : f32
    %54 = vector.broadcast %cst_23 : f32 to vector<4x8x8xf32>
    "tpu.trace_start"() <{level = 10 : i32, message = "hqd,hkd->hqk"}> : () -> ()
    %cst_24 = arith.constant dense<0.000000e+00> : vector<4x8x8xf32>
    %55 = tpu.matmul %45, %48, %cst_24 {dimension_numbers = #tpu.dot_dimension_numbers<[2], [2], [1], [1], [0, 0, 0, 1, 1, 1], [0], [0]>} : vector<4x8x8xbf16>, vector<4x8x8xbf16>, vector<4x8x8xf32> -> vector<4x8x8xf32>
    "tpu.trace_stop"() : () -> ()
    %56 = tpu.iota {dimensions = array<i32: 0>} : vector<8x8xi32>
    %c0_i32 = arith.constant 0 : i32
    %57 = vector.broadcast %c0_i32 : i32 to vector<8x8xi32>
    %58 = arith.addi %56, %57 : vector<8x8xi32>
    %59 = tpu.iota {dimensions = array<i32: 1>} : vector<8x8xi32>
    %c0_i32_25 = arith.constant 0 : i32
    %60 = vector.broadcast %c0_i32_25 : i32 to vector<8x8xi32>
    %61 = arith.addi %59, %60 : vector<8x8xi32>
    %62 = arith.cmpi sge, %58, %61 : vector<8x8xi32>
    %63 = vector.shape_cast %62 : vector<8x8xi1> to vector<1x8x8xi1>
    %cst_26 = arith.constant -1.000000e+30 : f32
    %64 = vector.shape_cast %63 : vector<1x8x8xi1> to vector<1x8x8xi1>
    %65 = vector.broadcast %64 : vector<1x8x8xi1> to vector<4x8x8xi1>
    %66 = vector.broadcast %cst_26 : f32 to vector<4x8x8xf32>
    %67 = arith.select %65, %55, %66 : vector<4x8x8xi1>, vector<4x8x8xf32>
    %cst_27 = arith.constant dense<0xFF800000> : vector<4x8xf32>
    %68 = vector.multi_reduction <maximumf>, %67, %cst_27 [2] : vector<4x8x8xf32> to vector<4x8xf32>
    %69 = vector.shape_cast %68 : vector<4x8xf32> to vector<4x8x1xf32>
    %70 = arith.maximumf %52, %69 : vector<4x8x1xf32>
    %71 = arith.subf %52, %70 : vector<4x8x1xf32>
    %72 = math.exp %71 : vector<4x8x1xf32>
    %73 = vector.broadcast %70 : vector<4x8x1xf32> to vector<4x8x8xf32>
    %74 = arith.subf %67, %73 : vector<4x8x8xf32>
    %75 = math.exp %74 : vector<4x8x8xf32>
    %76 = arith.mulf %72, %53 : vector<4x8x1xf32>
    %cst_28 = arith.constant dense<0.000000e+00> : vector<4x8xf32>
    %77 = vector.multi_reduction <add>, %75, %cst_28 [2] : vector<4x8x8xf32> to vector<4x8xf32>
    %78 = vector.shape_cast %77 : vector<4x8xf32> to vector<4x8x1xf32>
    %79 = arith.addf %76, %78 : vector<4x8x1xf32>
    %80 = vector.broadcast %72 : vector<4x8x1xf32> to vector<4x8x8xf32>
    %81 = arith.mulf %80, %54 : vector<4x8x8xf32>
    %82 = arith.truncf %75 : vector<4x8x8xf32> to vector<4x8x8xbf16>
    "tpu.trace_start"() <{level = 10 : i32, message = "hqk,hkd->hqd"}> : () -> ()
    %cst_29 = arith.constant dense<0.000000e+00> : vector<4x8x8xf32>
    %83 = tpu.matmul %82, %51, %cst_29 {dimension_numbers = #tpu.dot_dimension_numbers<[2], [1], [1], [2], [0, 0, 0, 1, 1, 2], [0], [0]>} : vector<4x8x8xbf16>, vector<4x8x8xbf16>, vector<4x8x8xf32> -> vector<4x8x8xf32>
    "tpu.trace_stop"() : () -> ()
    %84 = arith.addf %81, %83 : vector<4x8x8xf32>
    %85 = tpu.reciprocal %79 {approx = true} : vector<4x8x1xf32> -> vector<4x8x1xf32>
    %86 = vector.broadcast %85 : vector<4x8x1xf32> to vector<4x8x8xf32>
    %87 = arith.mulf %84, %86 : vector<4x8x8xf32>
    %88 = tpu.transpose %87, [1, 0, 2] : vector<4x8x8xf32> -> vector<8x4x8xf32>
    %89 = vector.shape_cast %88 : vector<8x4x8xf32> to vector<8x32xf32>
    %90 = arith.truncf %89 : vector<8x32xf32> to vector<8x32xbf16>
    %c0_30 = arith.constant 0 : index
    %c0_31 = arith.constant 0 : index
    %91 = vector.load %arg6[%c0_30, %c0_31] : memref<32x32xbf16, #tpu.memory_space<vmem>>, vector<32x32xbf16>
    %cst_32 = arith.constant dense<0.000000e+00> : vector<8x32xf32>
    %92 = tpu.matmul %90, %91, %cst_32 {dimension_numbers = #tpu.dot_dimension_numbers<[1], [0], [0], [1], [0, 0, 1, 1], [], []>} : vector<8x32xbf16>, vector<32x32xbf16>, vector<8x32xf32> -> vector<8x32xf32>
    %c0_33 = arith.constant 0 : index
    %c0_34 = arith.constant 0 : index
    %93 = vector.load %arg7[%c0_33, %c0_34] : memref<1x32xf32, #tpu.memory_space<vmem>>, vector<1x32xf32>
    %94 = vector.broadcast %93 : vector<1x32xf32> to vector<8x32xf32>
    %95 = arith.addf %92, %94 : vector<8x32xf32>
    %96 = arith.addf %1, %95 : vector<8x32xf32>
    %c0_35 = arith.constant 0 : index
    %c0_36 = arith.constant 0 : index
    %97 = vector.load %arg8[%c0_35, %c0_36] : memref<1x32xf32, #tpu.memory_space<vmem>>, vector<1x32xf32>
    %c0_37 = arith.constant 0 : index
    %c0_38 = arith.constant 0 : index
    %98 = vector.load %arg9[%c0_37, %c0_38] : memref<1x32xf32, #tpu.memory_space<vmem>>, vector<1x32xf32>
    %cst_39 = arith.constant dense<0.000000e+00> : vector<8xf32>
    %99 = vector.multi_reduction <add>, %96, %cst_39 [1] : vector<8x32xf32> to vector<8xf32>
    %100 = vector.shape_cast %99 : vector<8xf32> to vector<8x1xf32>
    %cst_40 = arith.constant 3.200000e+01 : f32
    %101 = vector.broadcast %cst_40 : f32 to vector<8x1xf32>
    %102 = arith.divf %100, %101 : vector<8x1xf32>
    %103 = vector.broadcast %102 : vector<8x1xf32> to vector<8x32xf32>
    %104 = arith.subf %96, %103 : vector<8x32xf32>
    %105 = arith.mulf %104, %104 : vector<8x32xf32>
    %cst_41 = arith.constant dense<0.000000e+00> : vector<8xf32>
    %106 = vector.multi_reduction <add>, %105, %cst_41 [1] : vector<8x32xf32> to vector<8xf32>
    %107 = vector.shape_cast %106 : vector<8xf32> to vector<8x1xf32>
    %cst_42 = arith.constant 3.200000e+01 : f32
    %108 = vector.broadcast %cst_42 : f32 to vector<8x1xf32>
    %109 = arith.divf %107, %108 : vector<8x1xf32>
    %110 = vector.broadcast %102 : vector<8x1xf32> to vector<8x32xf32>
    %111 = arith.subf %96, %110 : vector<8x32xf32>
    %cst_43 = arith.constant 9.99999974E-6 : f32
    %112 = vector.broadcast %cst_43 : f32 to vector<8x1xf32>
    %113 = arith.addf %109, %112 : vector<8x1xf32>
    %114 = math.rsqrt %113 : vector<8x1xf32>
    %115 = vector.broadcast %114 : vector<8x1xf32> to vector<8x32xf32>
    %116 = arith.mulf %111, %115 : vector<8x32xf32>
    %117 = vector.broadcast %97 : vector<1x32xf32> to vector<8x32xf32>
    %118 = arith.mulf %116, %117 : vector<8x32xf32>
    %119 = vector.broadcast %98 : vector<1x32xf32> to vector<8x32xf32>
    %120 = arith.addf %118, %119 : vector<8x32xf32>
    %121 = arith.truncf %120 : vector<8x32xf32> to vector<8x32xbf16>
    %c0_44 = arith.constant 0 : index
    %c0_45 = arith.constant 0 : index
    %122 = vector.load %arg10[%c0_44, %c0_45] : memref<32x128xbf16, #tpu.memory_space<vmem>>, vector<32x128xbf16>
    %cst_46 = arith.constant dense<0.000000e+00> : vector<8x128xf32>
    %123 = tpu.matmul %121, %122, %cst_46 {dimension_numbers = #tpu.dot_dimension_numbers<[1], [0], [0], [1], [0, 0, 1, 1], [], []>} : vector<8x32xbf16>, vector<32x128xbf16>, vector<8x128xf32> -> vector<8x128xf32>
    %c0_47 = arith.constant 0 : index
    %c0_48 = arith.constant 0 : index
    %124 = vector.load %arg11[%c0_47, %c0_48] : memref<1x128xf32, #tpu.memory_space<vmem>>, vector<1x128xf32>
    %125 = vector.broadcast %124 : vector<1x128xf32> to vector<8x128xf32>
    %126 = arith.addf %123, %125 : vector<8x128xf32>
    %cst_49 = arith.constant 5.000000e-01 : f32
    %127 = vector.broadcast %cst_49 : f32 to vector<8x128xf32>
    %128 = arith.mulf %127, %126 : vector<8x128xf32>
    %cst_50 = arith.constant 0.707106769 : f32
    %129 = vector.broadcast %cst_50 : f32 to vector<8x128xf32>
    %130 = arith.mulf %126, %129 : vector<8x128xf32>
    %131 = math.erf %130 : vector<8x128xf32>
    %cst_51 = arith.constant 1.000000e+00 : f32
    %132 = vector.broadcast %cst_51 : f32 to vector<8x128xf32>
    %133 = arith.addf %132, %131 : vector<8x128xf32>
    %134 = arith.mulf %128, %133 : vector<8x128xf32>
    %135 = arith.truncf %134 : vector<8x128xf32> to vector<8x128xbf16>
    %c0_52 = arith.constant 0 : index
    %c0_53 = arith.constant 0 : index
    %136 = vector.load %arg12[%c0_52, %c0_53] : memref<128x32xbf16, #tpu.memory_space<vmem>>, vector<128x32xbf16>
    %cst_54 = arith.constant dense<0.000000e+00> : vector<8x32xf32>
    %137 = tpu.matmul %135, %136, %cst_54 {dimension_numbers = #tpu.dot_dimension_numbers<[1], [0], [0], [1], [0, 0, 1, 1], [], []>} : vector<8x128xbf16>, vector<128x32xbf16>, vector<8x32xf32> -> vector<8x32xf32>
    %c0_55 = arith.constant 0 : index
    %c0_56 = arith.constant 0 : index
    %138 = vector.load %arg13[%c0_55, %c0_56] : memref<1x32xf32, #tpu.memory_space<vmem>>, vector<1x32xf32>
    %139 = vector.broadcast %138 : vector<1x32xf32> to vector<8x32xf32>
    %140 = arith.addf %137, %139 : vector<8x32xf32>
    %141 = arith.addf %96, %140 : vector<8x32xf32>
    %c0_57 = arith.constant 0 : index
    %c0_58 = arith.constant 0 : index
    %c0_59 = arith.constant 0 : index
    %142 = vector.load %arg14[%c0_57, %c0_58, %c0_59] : memref<1x8x32xf32, #tpu.memory_space<vmem>>, vector<1x8x32xf32>
    %143 = vector.shape_cast %142 : vector<1x8x32xf32> to vector<8x32xf32>
    %144 = vector.shape_cast %141 : vector<8x32xf32> to vector<1x8x32xf32>
    tpu.vector_store %arg14[%c0_57, %c0_58, %c0_59], %144 {strides = array<i32>} : memref<1x8x32xf32, #tpu.memory_space<vmem>>, vector<1x8x32xf32>,
    return
  }
  func.func @transform_0(%arg0: i32) -> (i32, i32, i32) {
    %c0_i32 = arith.constant 0 : i32
    %c0_i32_0 = arith.constant 0 : i32
    %c0_i32_1 = arith.constant 0 : i32
    return %arg0, %c0_i32, %c0_i32_0 : i32, i32, i32
  }
  func.func @transform_1(%arg0: i32) -> (i32, i32) {
    %c0_i32 = arith.constant 0 : i32
    %c0_i32_0 = arith.constant 0 : i32
    %c0_i32_1 = arith.constant 0 : i32
    return %c0_i32, %c0_i32_0 : i32, i32
  }
  func.func @transform_2(%arg0: i32) -> (i32, i32) {
    %c0_i32 = arith.constant 0 : i32
    %c0_i32_0 = arith.constant 0 : i32
    %c0_i32_1 = arith.constant 0 : i32
    return %c0_i32, %c0_i32_0 : i32, i32
  }
  func.func @transform_3(%arg0: i32) -> (i32, i32) {
    %c0_i32 = arith.constant 0 : i32
    %c0_i32_0 = arith.constant 0 : i32
    %c0_i32_1 = arith.constant 0 : i32
    return %c0_i32, %c0_i32_0 : i32, i32
  }
  func.func @transform_4(%arg0: i32) -> (i32, i32) {
    %c0_i32 = arith.constant 0 : i32
    %c0_i32_0 = arith.constant 0 : i32
    %c0_i32_1 = arith.constant 0 : i32
    return %c0_i32, %c0_i32_0 : i32, i32
  }
  func.func @transform_5(%arg0: i32) -> (i32, i32) {
    %c0_i32 = arith.constant 0 : i32
    %c0_i32_0 = arith.constant 0 : i32
    %c0_i32_1 = arith.constant 0 : i32
    return %c0_i32, %c0_i32_0 : i32, i32
  }
  func.func @transform_6(%arg0: i32) -> (i32, i32) {
    %c0_i32 = arith.constant 0 : i32
    %c0_i32_0 = arith.constant 0 : i32
    %c0_i32_1 = arith.constant 0 : i32
    return %c0_i32, %c0_i32_0 : i32, i32
  }
  func.func @transform_7(%arg0: i32) -> (i32, i32) {
    %c0_i32 = arith.constant 0 : i32
    %c0_i32_0 = arith.constant 0 : i32
    %c0_i32_1 = arith.constant 0 : i32
    return %c0_i32, %c0_i32_0 : i32, i32
  }
  func.func @transform_8(%arg0: i32) -> (i32, i32) {
    %c0_i32 = arith.constant 0 : i32
    %c0_i32_0 = arith.constant 0 : i32
    %c0_i32_1 = arith.constant 0 : i32
    return %c0_i32, %c0_i32_0 : i32, i32
  }
  func.func @transform_9(%arg0: i32) -> (i32, i32) {
    %c0_i32 = arith.constant 0 : i32
    %c0_i32_0 = arith.constant 0 : i32
    %c0_i32_1 = arith.constant 0 : i32
    return %c0_i32, %c0_i32_0 : i32, i32
  }
  func.func @transform_10(%arg0: i32) -> (i32, i32) {
    %c0_i32 = arith.constant 0 : i32
    %c0_i32_0 = arith.constant 0 : i32
    %c0_i32_1 = arith.constant 0 : i32
    return %c0_i32, %c0_i32_0 : i32, i32
  }
  func.func @transform_11(%arg0: i32) -> (i32, i32) {
    %c0_i32 = arith.constant 0 : i32
    %c0_i32_0 = arith.constant 0 : i32
    %c0_i32_1 = arith.constant 0 : i32
    return %c0_i32, %c0_i32_0 : i32, i32
  }
  func.func @transform_12(%arg0: i32) -> (i32, i32) {
    %c0_i32 = arith.constant 0 : i32
    %c0_i32_0 = arith.constant 0 : i32
    %c0_i32_1 = arith.constant 0 : i32
    return %c0_i32, %c0_i32_0 : i32, i32
  }
  func.func @transform_13(%arg0: i32) -> (i32, i32, i32) {
    %c0_i32 = arith.constant 0 : i32
    %c0_i32_0 = arith.constant 0 : i32
    %c0_i32_1 = arith.constant 0 : i32
    return %arg0, %c0_i32, %c0_i32_0 : i32, i32, i32
  }
  func.func @transform_14(%arg0: i32) -> (i32, i32, i32) {
    %c0_i32 = arith.constant 0 : i32
    %c0_i32_0 = arith.constant 0 : i32
    %c0_i32_1 = arith.constant 0 : i32
    return %arg0, %c0_i32, %c0_i32_0 : i32, i32, i32
  }
  func.func @transform_15(%arg0: i32) -> (i32, i32, i32) {
    %c0_i32 = arith.constant 0 : i32
    %c0_i32_0 = arith.constant 0 : i32
    %c0_i32_1 = arith.constant 0 : i32
    return %arg0, %c0_i32, %c0_i32_0 : i32, i32, i32
  }
}

module attributes {stable_mosaic.version = 11 : i64} {
  func.func @_block_kernel(%arg0: i32, %arg1: memref<1x8x32xf32, #tpu.memory_space<vmem>>, %arg2: memref<1x32xf32, #tpu.memory_space<vmem>>, %arg3: memref<1x32xf32, #tpu.memory_space<vmem>>, %arg4: memref<32x96xbf16, #tpu.memory_space<vmem>>, %arg5: memref<1x96xf32, #tpu.memory_space<vmem>>, %arg6: memref<32x32xbf16, #tpu.memory_space<vmem>>, %arg7: memref<1x32xf32, #tpu.memory_space<vmem>>, %arg8: memref<1x32xf32, #tpu.memory_space<vmem>>, %arg9: memref<1x32xf32, #tpu.memory_space<vmem>>, %arg10: memref<32x128xbf16, #tpu.memory_space<vmem>>, %arg11: memref<1x128xf32, #tpu.memory_space<vmem>>, %arg12: memref<128x32xbf16, #tpu.memory_space<vmem>>, %arg13: memref<1x32xf32, #tpu.memory_space<vmem>>, %arg14: memref<1x8x32xf32, #tpu.memory_space<vmem>>, %arg15: memref<1x8x32xbf16, #tpu.memory_space<vmem>>, %arg16: memref<1x8x32xbf16, #tpu.memory_space<vmem>>) attributes {dimension_semantics = [#tpu.dimension_semantics<parallel>], iteration_bounds = array<i64: 2>, scalar_prefetch = 0 : i64, scratch_operands = 0 : i64, tpu.core_type = #tpu.core_type<tc>, window_params = [{transform_indices = @transform_0, window_bounds = array<i64: 1, 8, 32>}, {pipeline_mode = #tpu.pipeline_mode<synchronous>, transform_indices = @transform_1, window_bounds = array<i64: 1, 32>}, {pipeline_mode = #tpu.pipeline_mode<synchronous>, transform_indices = @transform_2, window_bounds = array<i64: 1, 32>}, {pipeline_mode = #tpu.pipeline_mode<synchronous>, transform_indices = @transform_3, window_bounds = array<i64: 32, 96>}, {pipeline_mode = #tpu.pipeline_mode<synchronous>, transform_indices = @transform_4, window_bounds = array<i64: 1, 96>}, {pipeline_mode = #tpu.pipeline_mode<synchronous>, transform_indices = @transform_5, window_bounds = array<i64: 32, 32>}, {pipeline_mode = #tpu.pipeline_mode<synchronous>, transform_indices = @transform_6, window_bounds = array<i64: 1, 32>}, {pipeline_mode = #tpu.pipeline_mode<synchronous>, transform_indices = @transform_7, window_bounds = array<i64: 1, 32>}, {pipeline_mode = #tpu.pipeline_mode<synchronous>, transform_indices = @transform_8, window_bounds = array<i64: 1, 32>}, {pipeline_mode = #tpu.pipeline_mode<synchronous>, transform_indices = @transform_9, window_bounds = array<i64: 32, 128>}, {pipeline_mode = #tpu.pipeline_mode<synchronous>, transform_indices = @transform_10, window_bounds = array<i64: 1, 128>}, {pipeline_mode = #tpu.pipeline_mode<synchronous>, transform_indices = @transform_11, window_bounds = array<i64: 128, 32>}, {pipeline_mode = #tpu.pipeline_mode<synchronous>, transform_indices = @transform_12, window_bounds = array<i64: 1, 32>}, {transform_indices = @transform_13, window_bounds = array<i64: 1, 8, 32>}, {transform_indices = @transform_14, window_bounds = array<i64: 1, 8, 32>}, {transform_indices = @transform_15, window_bounds = array<i64: 1, 8, 32>}]} {
    %c0 = arith.constant 0 : index
    %c0_0 = arith.constant 0 : index
    %c0_1 = arith.constant 0 : index
    %0 = vector.load %arg1[%c0, %c0_0, %c0_1] : memref<1x8x32xf32, #tpu.memory_space<vmem>>, vector<1x8x32xf32>
    %1 = vector.shape_cast %0 : vector<1x8x32xf32> to vector<8x32xf32>
    %c0_2 = arith.constant 0 : index
    %c0_3 = arith.constant 0 : index
    %2 = vector.load %arg2[%c0_2, %c0_3] : memref<1x32xf32, #tpu.memory_space<vmem>>, vector<1x32xf32>
    %c0_4 = arith.constant 0 : index
    %c0_5 = arith.constant 0 : index
    %3 = vector.load %arg3[%c0_4, %c0_5] : memref<1x32xf32, #tpu.memory_space<vmem>>, vector<1x32xf32>
    %cst = arith.constant dense<0.000000e+00> : vector<8xf32>
    %4 = vector.multi_reduction <add>, %1, %cst [1] : vector<8x32xf32> to vector<8xf32>
    %5 = vector.shape_cast %4 : vector<8xf32> to vector<8x1xf32>
    %cst_6 = arith.constant 3.200000e+01 : f32
    %6 = vector.broadcast %cst_6 : f32 to vector<8x1xf32>
    %7 = arith.divf %5, %6 : vector<8x1xf32>
    %8 = vector.broadcast %7 : vector<8x1xf32> to vector<8x32xf32>
    %9 = arith.subf %1, %8 : vector<8x32xf32>
    %10 = arith.mulf %9, %9 : vector<8x32xf32>
    %cst_7 = arith.constant dense<0.000000e+00> : vector<8xf32>
    %11 = vector.multi_reduction <add>, %10, %cst_7 [1] : vector<8x32xf32> to vector<8xf32>
    %12 = vector.shape_cast %11 : vector<8xf32> to vector<8x1xf32>
    %cst_8 = arith.constant 3.200000e+01 : f32
    %13 = vector.broadcast %cst_8 : f32 to vector<8x1xf32>
    %14 = arith.divf %12, %13 : vector<8x1xf32>
    %15 = vector.broadcast %7 : vector<8x1xf32> to vector<8x32xf32>
    %16 = arith.subf %1, %15 : vector<8x32xf32>
    %cst_9 = arith.constant 9.99999974E-6 : f32
    %17 = vector.broadcast %cst_9 : f32 to vector<8x1xf32>
    %18 = arith.addf %14, %17 : vector<8x1xf32>
    %19 = math.rsqrt %18 : vector<8x1xf32>
    %20 = vector.broadcast %19 : vector<8x1xf32> to vector<8x32xf32>
    %21 = arith.mulf %16, %20 : vector<8x32xf32>
    %22 = vector.broadcast %2 : vector<1x32xf32> to vector<8x32xf32>
    %23 = arith.mulf %21, %22 : vector<8x32xf32>
    %24 = vector.broadcast %3 : vector<1x32xf32> to vector<8x32xf32>
    %25 = arith.addf %23, %24 : vector<8x32xf32>
    %26 = arith.truncf %25 : vector<8x32xf32> to vector<8x32xbf16>
    %c0_10 = arith.constant 0 : index
    %c0_11 = arith.constant 0 : index
    %27 = vector.load %arg4[%c0_10, %c0_11] : memref<32x96xbf16, #tpu.memory_space<vmem>>, vector<32x96xbf16>
    %cst_12 = arith.constant dense<0.000000e+00> : vector<8x96xf32>
    %28 = tpu.matmul %26, %27, %cst_12 {dimension_numbers = #tpu.dot_dimension_numbers<[1], [0], [0], [1], [0, 0, 1, 1], [], []>} : vector<8x32xbf16>, vector<32x96xbf16>, vector<8x96xf32> -> vector<8x96xf32>
    %c0_13 = arith.constant 0 : index
    %c0_14 = arith.constant 0 : index
    %29 = vector.load %arg5[%c0_13, %c0_14] : memref<1x96xf32, #tpu.memory_space<vmem>>, vector<1x96xf32>
    %30 = vector.broadcast %29 : vector<1x96xf32> to vector<8x96xf32>
    %31 = arith.addf %28, %30 : vector<8x96xf32>
    %32 = vector.extract_strided_slice %31 {offsets = [0, 0], sizes = [8, 32], strides = [1, 1]} : vector<8x96xf32> to vector<8x32xf32>
    %33 = vector.extract_strided_slice %31 {offsets = [0, 32], sizes = [8, 32], strides = [1, 1]} : vector<8x96xf32> to vector<8x32xf32>
    %34 = vector.extract_strided_slice %31 {offsets = [0, 64], sizes = [8, 32], strides = [1, 1]} : vector<8x96xf32> to vector<8x32xf32>
    %35 = arith.truncf %33 : vector<8x32xf32> to vector<8x32xbf16>
    %c0_15 = arith.constant 0 : index
    %c0_16 = arith.constant 0 : index
    %c0_17 = arith.constant 0 : index
    %36 = vector.load %arg15[%c0_15, %c0_16, %c0_17] : memref<1x8x32xbf16, #tpu.memory_space<vmem>>, vector<1x8x32xbf16>
    %37 = vector.shape_cast %36 : vector<1x8x32xbf16> to vector<8x32xbf16>
    %38 = vector.shape_cast %35 : vector<8x32xbf16> to vector<1x8x32xbf16>
    tpu.vector_store %arg15[%c0_15, %c0_16, %c0_17], %38 {strides = array<i32>} : memref<1x8x32xbf16, #tpu.memory_space<vmem>>, vector<1x8x32xbf16>,
    %39 = arith.truncf %34 : vector<8x32xf32> to vector<8x32xbf16>
    %c0_18 = arith.constant 0 : index
    %c0_19 = arith.constant 0 : index
    %c0_20 = arith.constant 0 : index
    %40 = vector.load %arg16[%c0_18, %c0_19, %c0_20] : memref<1x8x32xbf16, #tpu.memory_space<vmem>>, vector<1x8x32xbf16>
    %41 = vector.shape_cast %40 : vector<1x8x32xbf16> to vector<8x32xbf16>
    %42 = vector.shape_cast %39 : vector<8x32xbf16> to vector<1x8x32xbf16>
    tpu.vector_store %arg16[%c0_18, %c0_19, %c0_20], %42 {strides = array<i32>} : memref<1x8x32xbf16, #tpu.memory_space<vmem>>, vector<1x8x32xbf16>,
    %43 = vector.shape_cast %32 : vector<8x32xf32> to vector<8x4x8xf32>
    %44 = tpu.transpose %43, [1, 0, 2] : vector<8x4x8xf32> -> vector<4x8x8xf32>
    %45 = arith.truncf %44 : vector<4x8x8xf32> to vector<4x8x8xbf16>
    %46 = vector.shape_cast %33 : vector<8x32xf32> to vector<8x4x8xf32>
    %47 = tpu.transpose %46, [1, 0, 2] : vector<8x4x8xf32> -> vector<4x8x8xf32>
    %48 = arith.truncf %47 : vector<4x8x8xf32> to vector<4x8x8xbf16>
    %49 = vector.shape_cast %34 : vector<8x32xf32> to vector<8x4x8xf32>
    %50 = tpu.transpose %49, [1, 0, 2] : vector<8x4x8xf32> -> vector<4x8x8xf32>
    %51 = arith.truncf %50 : vector<4x8x8xf32> to vector<4x8x8xbf16>
    %cst_21 = arith.constant -1.000000e+30 : f32
    %52 = vector.broadcast %cst_21 : f32 to vector<4x8x1xf32>
    %cst_22 = arith.constant 0.000000e+00 : f32
    %53 = vector.broadcast %cst_22 : f32 to vector<4x8x1xf32>
    %cst_23 = arith.constant 0.000000e+00 : f32
    %54 = vector.broadcast %cst_23 : f32 to vector<4x8x8xf32>
    "tpu.trace_start"() <{level = 10 : i32, message = "hqd,hkd->hqk"}> : () -> ()
    %cst_24 = arith.constant dense<0.000000e+00> : vector<4x8x8xf32>
    %55 = tpu.matmul %45, %48, %cst_24 {dimension_numbers = #tpu.dot_dimension_numbers<[2], [2], [1], [1], [0, 0, 0, 1, 1, 1], [0], [0]>} : vector<4x8x8xbf16>, vector<4x8x8xbf16>, vector<4x8x8xf32> -> vector<4x8x8xf32>
    "tpu.trace_stop"() : () -> ()
    %56 = tpu.iota {dimensions = array<i32: 0>} : vector<8x8xi32>
    %c0_i32 = arith.constant 0 : i32
    %57 = vector.broadcast %c0_i32 : i32 to vector<8x8xi32>
    %58 = arith.addi %56, %57 : vector<8x8xi32>
    %59 = tpu.iota {dimensions = array<i32: 1>} : vector<8x8xi32>
    %c0_i32_25 = arith.constant 0 : i32
    %60 = vector.broadcast %c0_i32_25 : i32 to vector<8x8xi32>
    %61 = arith.addi %59, %60 : vector<8x8xi32>
    %62 = arith.cmpi sge, %58, %61 : vector<8x8xi32>
    %63 = vector.shape_cast %62 : vector<8x8xi1> to vector<1x8x8xi1>
    %cst_26 = arith.constant -1.000000e+30 : f32
    %64 = vector.shape_cast %63 : vector<1x8x8xi1> to vector<1x8x8xi1>
    %65 = vector.broadcast %64 : vector<1x8x8xi1> to vector<4x8x8xi1>
    %66 = vector.broadcast %cst_26 : f32 to vector<4x8x8xf32>
    %67 = arith.select %65, %55, %66 : vector<4x8x8xi1>, vector<4x8x8xf32>
    %cst_27 = arith.constant dense<0xFF800000> : vector<4x8xf32>
    %68 = vector.multi_reduction <maximumf>, %67, %cst_27 [2] : vector<4x8x8xf32> to vector<4x8xf32>
    %69 = vector.shape_cast %68 : vector<4x8xf32> to vector<4x8x1xf32>
    %70 = arith.maximumf %52, %69 : vector<4x8x1xf32>
    %71 = arith.subf %52, %70 : vector<4x8x1xf32>
    %72 = math.exp %71 : vector<4x8x1xf32>
    %73 = vector.broadcast %70 : vector<4x8x1xf32> to vector<4x8x8xf32>
    %74 = arith.subf %67, %73 : vector<4x8x8xf32>
    %75 = math.exp %74 : vector<4x8x8xf32>
    %76 = arith.mulf %72, %53 : vector<4x8x1xf32>
    %cst_28 = arith.constant dense<0.000000e+00> : vector<4x8xf32>
    %77 = vector.multi_reduction <add>, %75, %cst_28 [2] : vector<4x8x8xf32> to vector<4x8xf32>
    %78 = vector.shape_cast %77 : vector<4x8xf32> to vector<4x8x1xf32>
    %79 = arith.addf %76, %78 : vector<4x8x1xf32>
    %80 = vector.broadcast %72 : vector<4x8x1xf32> to vector<4x8x8xf32>
    %81 = arith.mulf %80, %54 : vector<4x8x8xf32>
    %82 = arith.truncf %75 : vector<4x8x8xf32> to vector<4x8x8xbf16>
    "tpu.trace_start"() <{level = 10 : i32, message = "hqk,hkd->hqd"}> : () -> ()
    %cst_29 = arith.constant dense<0.000000e+00> : vector<4x8x8xf32>
    %83 = tpu.matmul %82, %51, %cst_29 {dimension_numbers = #tpu.dot_dimension_numbers<[2], [1], [1], [2], [0, 0, 0, 1, 1, 2], [0], [0]>} : vector<4x8x8xbf16>, vector<4x8x8xbf16>, vector<4x8x8xf32> -> vector<4x8x8xf32>
    "tpu.trace_stop"() : () -> ()
    %84 = arith.addf %81, %83 : vector<4x8x8xf32>
    %85 = tpu.reciprocal %79 {approx = true} : vector<4x8x1xf32> -> vector<4x8x1xf32>
    %86 = vector.broadcast %85 : vector<4x8x1xf32> to vector<4x8x8xf32>
    %87 = arith.mulf %84, %86 : vector<4x8x8xf32>
    %88 = tpu.transpose %87, [1, 0, 2] : vector<4x8x8xf32> -> vector<8x4x8xf32>
    %89 = vector.shape_cast %88 : vector<8x4x8xf32> to vector<8x32xf32>
    %90 = arith.truncf %89 : vector<8x32xf32> to vector<8x32xbf16>
    %c0_30 = arith.constant 0 : index
    %c0_31 = arith.constant 0 : index
    %91 = vector.load %arg6[%c0_30, %c0_31] : memref<32x32xbf16, #tpu.memory_space<vmem>>, vector<32x32xbf16>
    %cst_32 = arith.constant dense<0.000000e+00> : vector<8x32xf32>
    %92 = tpu.matmul %90, %91, %cst_32 {dimension_numbers = #tpu.dot_dimension_numbers<[1], [0], [0], [1], [0, 0, 1, 1], [], []>} : vector<8x32xbf16>, vector<32x32xbf16>, vector<8x32xf32> -> vector<8x32xf32>
    %c0_33 = arith.constant 0 : index
    %c0_34 = arith.constant 0 : index
    %93 = vector.load %arg7[%c0_33, %c0_34] : memref<1x32xf32, #tpu.memory_space<vmem>>, vector<1x32xf32>
    %94 = vector.broadcast %93 : vector<1x32xf32> to vector<8x32xf32>
    %95 = arith.addf %92, %94 : vector<8x32xf32>
    %96 = arith.addf %1, %95 : vector<8x32xf32>
    %c0_35 = arith.constant 0 : index
    %c0_36 = arith.constant 0 : index
    %97 = vector.load %arg8[%c0_35, %c0_36] : memref<1x32xf32, #tpu.memory_space<vmem>>, vector<1x32xf32>
    %c0_37 = arith.constant 0 : index
    %c0_38 = arith.constant 0 : index
    %98 = vector.load %arg9[%c0_37, %c0_38] : memref<1x32xf32, #tpu.memory_space<vmem>>, vector<1x32xf32>
    %cst_39 = arith.constant dense<0.000000e+00> : vector<8xf32>
    %99 = vector.multi_reduction <add>, %96, %cst_39 [1] : vector<8x32xf32> to vector<8xf32>
    %100 = vector.shape_cast %99 : vector<8xf32> to vector<8x1xf32>
    %cst_40 = arith.constant 3.200000e+01 : f32
    %101 = vector.broadcast %cst_40 : f32 to vector<8x1xf32>
    %102 = arith.divf %100, %101 : vector<8x1xf32>
    %103 = vector.broadcast %102 : vector<8x1xf32> to vector<8x32xf32>
    %104 = arith.subf %96, %103 : vector<8x32xf32>
    %105 = arith.mulf %104, %104 : vector<8x32xf32>
    %cst_41 = arith.constant dense<0.000000e+00> : vector<8xf32>
    %106 = vector.multi_reduction <add>, %105, %cst_41 [1] : vector<8x32xf32> to vector<8xf32>
    %107 = vector.shape_cast %106 : vector<8xf32> to vector<8x1xf32>
    %cst_42 = arith.constant 3.200000e+01 : f32
    %108 = vector.broadcast %cst_42 : f32 to vector<8x1xf32>
    %109 = arith.divf %107, %108 : vector<8x1xf32>
    %110 = vector.broadcast %102 : vector<8x1xf32> to vector<8x32xf32>
    %111 = arith.subf %96, %110 : vector<8x32xf32>
    %cst_43 = arith.constant 9.99999974E-6 : f32
    %112 = vector.broadcast %cst_43 : f32 to vector<8x1xf32>
    %113 = arith.addf %109, %112 : vector<8x1xf32>
    %114 = math.rsqrt %113 : vector<8x1xf32>
    %115 = vector.broadcast %114 : vector<8x1xf32> to vector<8x32xf32>
    %116 = arith.mulf %111, %115 : vector<8x32xf32>
    %117 = vector.broadcast %97 : vector<1x32xf32> to vector<8x32xf32>
    %118 = arith.mulf %116, %117 : vector<8x32xf32>
    %119 = vector.broadcast %98 : vector<1x32xf32> to vector<8x32xf32>
    %120 = arith.addf %118, %119 : vector<8x32xf32>
    %121 = arith.truncf %120 : vector<8x32xf32> to vector<8x32xbf16>
    %c0_44 = arith.constant 0 : index
    %c0_45 = arith.constant 0 : index
    %122 = vector.load %arg10[%c0_44, %c0_45] : memref<32x128xbf16, #tpu.memory_space<vmem>>, vector<32x128xbf16>
    %cst_46 = arith.constant dense<0.000000e+00> : vector<8x128xf32>
    %123 = tpu.matmul %121, %122, %cst_46 {dimension_numbers = #tpu.dot_dimension_numbers<[1], [0], [0], [1], [0, 0, 1, 1], [], []>} : vector<8x32xbf16>, vector<32x128xbf16>, vector<8x128xf32> -> vector<8x128xf32>
    %c0_47 = arith.constant 0 : index
    %c0_48 = arith.constant 0 : index
    %124 = vector.load %arg11[%c0_47, %c0_48] : memref<1x128xf32, #tpu.memory_space<vmem>>, vector<1x128xf32>
    %125 = vector.broadcast %124 : vector<1x128xf32> to vector<8x128xf32>
    %126 = arith.addf %123, %125 : vector<8x128xf32>
    %cst_49 = arith.constant 5.000000e-01 : f32
    %127 = vector.broadcast %cst_49 : f32 to vector<8x128xf32>
    %128 = arith.mulf %127, %126 : vector<8x128xf32>
    %cst_50 = arith.constant 0.707106769 : f32
    %129 = vector.broadcast %cst_50 : f32 to vector<8x128xf32>
    %130 = arith.mulf %126, %129 : vector<8x128xf32>
    %131 = math.erf %130 : vector<8x128xf32>
    %cst_51 = arith.constant 1.000000e+00 : f32
    %132 = vector.broadcast %cst_51 : f32 to vector<8x128xf32>
    %133 = arith.addf %132, %131 : vector<8x128xf32>
    %134 = arith.mulf %128, %133 : vector<8x128xf32>
    %135 = arith.truncf %134 : vector<8x128xf32> to vector<8x128xbf16>
    %c0_52 = arith.constant 0 : index
    %c0_53 = arith.constant 0 : index
    %136 = vector.load %arg12[%c0_52, %c0_53] : memref<128x32xbf16, #tpu.memory_space<vmem>>, vector<128x32xbf16>
    %cst_54 = arith.constant dense<0.000000e+00> : vector<8x32xf32>
    %137 = tpu.matmul %135, %136, %cst_54 {dimension_numbers = #tpu.dot_dimension_numbers<[1], [0], [0], [1], [0, 0, 1, 1], [], []>} : vector<8x128xbf16>, vector<128x32xbf16>, vector<8x32xf32> -> vector<8x32xf32>
    %c0_55 = arith.constant 0 : index
    %c0_56 = arith.constant 0 : index
    %138 = vector.load %arg13[%c0_55, %c0_56] : memref<1x32xf32, #tpu.memory_space<vmem>>, vector<1x32xf32>
    %139 = vector.broadcast %138 : vector<1x32xf32> to vector<8x32xf32>
    %140 = arith.addf %137, %139 : vector<8x32xf32>
    %141 = arith.addf %96, %140 : vector<8x32xf32>
    %c0_57 = arith.constant 0 : index
    %c0_58 = arith.constant 0 : index
    %c0_59 = arith.constant 0 : index
    %142 = vector.load %arg14[%c0_57, %c0_58, %c0_59] : memref<1x8x32xf32, #tpu.memory_space<vmem>>, vector<1x8x32xf32>
    %143 = vector.shape_cast %142 : vector<1x8x32xf32> to vector<8x32xf32>
    %144 = vector.shape_cast %141 : vector<8x32xf32> to vector<1x8x32xf32>
    tpu.vector_store %arg14[%c0_57, %c0_58, %c0_59], %144 {strides = array<i32>} : memref<1x8x32xf32, #tpu.memory_space<vmem>>, vector<1x8x32xf32>,
    return
  }
  func.func @transform_0(%arg0: i32) -> (i32, i32, i32) {
    %c0_i32 = arith.constant 0 : i32
    %c0_i32_0 = arith.constant 0 : i32
    %c0_i32_1 = arith.constant 0 : i32
    return %arg0, %c0_i32, %c0_i32_0 : i32, i32, i32
  }
  func.func @transform_1(%arg0: i32) -> (i32, i32) {
    %c0_i32 = arith.constant 0 : i32
    %c0_i32_0 = arith.constant 0 : i32
    %c0_i32_1 = arith.constant 0 : i32
    return %c0_i32, %c0_i32_0 : i32, i32
  }
  func.func @transform_2(%arg0: i32) -> (i32, i32) {
    %c0_i32 = arith.constant 0 : i32
    %c0_i32_0 = arith.constant 0 : i32
    %c0_i32_1 = arith.constant 0 : i32
    return %c0_i32, %c0_i32_0 : i32, i32
  }
  func.func @transform_3(%arg0: i32) -> (i32, i32) {
    %c0_i32 = arith.constant 0 : i32
    %c0_i32_0 = arith.constant 0 : i32
    %c0_i32_1 = arith.constant 0 : i32
    return %c0_i32, %c0_i32_0 : i32, i32
  }
  func.func @transform_4(%arg0: i32) -> (i32, i32) {
    %c0_i32 = arith.constant 0 : i32
    %c0_i32_0 = arith.constant 0 : i32
    %c0_i32_1 = arith.constant 0 : i32
    return %c0_i32, %c0_i32_0 : i32, i32
  }
  func.func @transform_5(%arg0: i32) -> (i32, i32) {
    %c0_i32 = arith.constant 0 : i32
    %c0_i32_0 = arith.constant 0 : i32
    %c0_i32_1 = arith.constant 0 : i32
    return %c0_i32, %c0_i32_0 : i32, i32
  }
  func.func @transform_6(%arg0: i32) -> (i32, i32) {
    %c0_i32 = arith.constant 0 : i32
    %c0_i32_0 = arith.constant 0 : i32
    %c0_i32_1 = arith.constant 0 : i32
    return %c0_i32, %c0_i32_0 : i32, i32
  }
  func.func @transform_7(%arg0: i32) -> (i32, i32) {
    %c0_i32 = arith.constant 0 : i32
    %c0_i32_0 = arith.constant 0 : i32
    %c0_i32_1 = arith.constant 0 : i32
    return %c0_i32, %c0_i32_0 : i32, i32
  }
  func.func @transform_8(%arg0: i32) -> (i32, i32) {
    %c0_i32 = arith.constant 0 : i32
    %c0_i32_0 = arith.constant 0 : i32
    %c0_i32_1 = arith.constant 0 : i32
    return %c0_i32, %c0_i32_0 : i32, i32
  }
  func.func @transform_9(%arg0: i32) -> (i32, i32) {
    %c0_i32 = arith.constant 0 : i32
    %c0_i32_0 = arith.constant 0 : i32
    %c0_i32_1 = arith.constant 0 : i32
    return %c0_i32, %c0_i32_0 : i32, i32
  }
  func.func @transform_10(%arg0: i32) -> (i32, i32) {
    %c0_i32 = arith.constant 0 : i32
    %c0_i32_0 = arith.constant 0 : i32
    %c0_i32_1 = arith.constant 0 : i32
    return %c0_i32, %c0_i32_0 : i32, i32
  }
  func.func @transform_11(%arg0: i32) -> (i32, i32) {
    %c0_i32 = arith.constant 0 : i32
    %c0_i32_0 = arith.constant 0 : i32
    %c0_i32_1 = arith.constant 0 : i32
    return %c0_i32, %c0_i32_0 : i32, i32
  }
  func.func @transform_12(%arg0: i32) -> (i32, i32) {
    %c0_i32 = arith.constant 0 : i32
    %c0_i32_0 = arith.constant 0 : i32
    %c0_i32_1 = arith.constant 0 : i32
    return %c0_i32, %c0_i32_0 : i32, i32
  }
  func.func @transform_13(%arg0: i32) -> (i32, i32, i32) {
    %c0_i32 = arith.constant 0 : i32
    %c0_i32_0 = arith.constant 0 : i32
    %c0_i32_1 = arith.constant 0 : i32
    return %arg0, %c0_i32, %c0_i32_0 : i32, i32, i32
  }
  func.func @transform_14(%arg0: i32) -> (i32, i32, i32) {
    %c0_i32 = arith.constant 0 : i32
    %c0_i32_0 = arith.constant 0 : i32
    %c0_i32_1 = arith.constant 0 : i32
    return %arg0, %c0_i32, %c0_i32_0 : i32, i32, i32
  }
  func.func @transform_15(%arg0: i32) -> (i32, i32, i32) {
    %c0_i32 = arith.constant 0 : i32
    %c0_i32_0 = arith.constant 0 : i32
    %c0_i32_1 = arith.constant 0 : i32
    return %arg0, %c0_i32, %c0_i32_0 : i32, i32, i32
  }
}

</mosaic_0001>

<llo_original>
// kernel: tpu_custom_call.1
$region0: #{tpu_custom_call.1}
  #allocation0 [shape = 'u32[]', space=smem, size = 0x4, offset = 0x4, fixed_abs, tag = 'smem constant byte address 0x4 - core index']
  #allocation1 [shape = 'u32[144,128]{1,0:T(1,128)}', space=vmem, size = 0x12000, scoped, tag = 'internal scratch']
  %s0 = inlined_call_operand.vmem [shape: f32[2,8,32], index: 0, kind: input, shape index: {}]
  %s1 = inlined_call_operand.vmem [shape: f32[1,32], index: 1, kind: input, shape index: {}]
  %s2 = inlined_call_operand.vmem [shape: f32[1,32], index: 2, kind: input, shape index: {}]
  %s3 = inlined_call_operand.vmem [shape: bf16[32,96], index: 3, kind: input, shape index: {}]
  %s4 = inlined_call_operand.vmem [shape: f32[1,96], index: 4, kind: input, shape index: {}]
  %s5 = inlined_call_operand.vmem [shape: bf16[32,32], index: 5, kind: input, shape index: {}]
  %s6 = inlined_call_operand.vmem [shape: f32[1,32], index: 6, kind: input, shape index: {}]
  %s7 = inlined_call_operand.vmem [shape: f32[1,32], index: 7, kind: input, shape index: {}]
  %s8 = inlined_call_operand.vmem [shape: f32[1,32], index: 8, kind: input, shape index: {}]
  %s9 = inlined_call_operand.vmem [shape: bf16[32,128], index: 9, kind: input, shape index: {}]
  %s10 = inlined_call_operand.vmem [shape: f32[1,128], index: 10, kind: input, shape index: {}]
  %s11 = inlined_call_operand.vmem [shape: bf16[128,32], index: 11, kind: input, shape index: {}]
  %s12 = inlined_call_operand.vmem [shape: f32[1,32], index: 12, kind: input, shape index: {}]
  %s13 = inlined_call_operand.hbm [shape: f32[2,8,32], index: 13, kind: output, shape index: {0}]
  %s14 = inlined_call_operand.hbm [shape: bf16[2,8,32], index: 14, kind: output, shape index: {1}]
  %s15 = inlined_call_operand.hbm [shape: bf16[2,8,32], index: 15, kind: output, shape index: {2}]
  %16 = xla_tuple %s13, %s14, %s15
  %s17 = sld [smem:[#allocation0]]
  $region101: #{tpu_custom_call.1} parent=0
    _
  %s19 = ssub.s32 1, %s17
  %s20 = scalar_select 0, %s19, %s17
  $region1: #{tpu_custom_call.1} parent=0
    #allocation2 [shape = 'u8[8192]{0}', space=vmem, size = 0x2000, scoped, tag = 'output window, operand 0']
    #allocation3 [shape = 's32[2]{0}', space=sflag, size = 0x8, scoped, tag = 'scoped memory for tpu_custom_call.1']
    #allocation4 [shape = 'u8[4096]{0}', space=vmem, size = 0x1000, scoped, tag = 'output window, operand 1']
    #allocation5 [shape = 's32[2]{0}', space=sflag, size = 0x8, scoped, tag = 'scoped memory for tpu_custom_call.1']
    #allocation6 [shape = 'u8[4096]{0}', space=vmem, size = 0x1000, scoped, tag = 'output window, operand 2']
    %21 = vsyncpa [#allocation3], 0
    %s22 = scalar_lea.sflag [#allocation3], 1
    %23 = vsyncpa %s22, 0
    %24 = vsyncpa [#allocation5], 0
    %s25 = scalar_lea.sflag [#allocation5], 1
    %26 = vsyncpa %s25, 0
    loop: start=0, step=1, limit=4
    $region2: #{tpu_custom_call.1} parent=1 // loop_pre_header
      _
    $region3: #{tpu_custom_call.1} parent=1 // loop_header
      %s28 = sphi 0, %s32
      %p29 = scmp.ge.s32.totalorder %s28, 4
      %s38 = sphi 0, %s40
      %s41 = sphi 0, %s38
      %s42 = sphi 0, %s41
      %s58 = sphi 0, %s42
      %s62 = sphi 0, %s62
      %s64 = sphi 0, %s62
      %s65 = sphi 0, %s64
      %s79 = sphi 0, %s65
      %s83 = sphi 0, %s83
      %s85 = sphi 0, %s83
      %s86 = sphi 0, %s85
      %s100 = sphi 0, %s86
      %s104 = sphi 0, %s104
      %s106 = sphi 0, %s104
      %s107 = sphi 0, %s106
      %s121 = sphi 0, %s107
      %s125 = sphi 0, %s125
      %s127 = sphi 0, %s125
      %s128 = sphi 0, %s127
      %s142 = sphi 0, %s128
      %s146 = sphi 0, %s146
      %s148 = sphi 0, %s146
      %s149 = sphi 0, %s148
      %s163 = sphi 0, %s149
      %s167 = sphi 0, %s167
      %s169 = sphi 0, %s167
      %s170 = sphi 0, %s169
      %s184 = sphi 0, %s170
      %s188 = sphi 0, %s188
      %s190 = sphi 0, %s188
      %s191 = sphi 0, %s190
      %s205 = sphi 0, %s191
      %s209 = sphi 0, %s209
      %s211 = sphi 0, %s209
      %s212 = sphi 0, %s211
      %s226 = sphi 0, %s212
      %s230 = sphi 0, %s230
      %s232 = sphi 0, %s230
      %s233 = sphi 0, %s232
      %s247 = sphi 0, %s233
      %s251 = sphi 0, %s251
      %s253 = sphi 0, %s251
      %s254 = sphi 0, %s253
      %s268 = sphi 0, %s254
      %s272 = sphi 0, %s272
      %s274 = sphi 0, %s272
      %s275 = sphi 0, %s274
      %s289 = sphi 0, %s275
      %s293 = sphi 0, %s293
      %s295 = sphi 0, %s293
      %s296 = sphi 0, %s295
      %s310 = sphi 0, %s296
      %s316 = sphi 0, %s318
      %s319 = sphi 0, %s316
      %s320 = sphi 0, %s319
      %s336 = sphi 0, %s320
      %s342 = sphi 0, %s344
      %s345 = sphi 0, %s342
      %s346 = sphi 0, %s345
      %s362 = sphi 0, %s346
      %s368 = sphi 0, %s370
      %s371 = sphi 0, %s368
      %s372 = sphi 0, %s371
      %s388 = sphi 0, %s372
    $region4: #{tpu_custom_call.1} parent=1 // loop_header_branch
      %31 = sbr.rel (%p29) target = $region8
    $region5: #{tpu_custom_call.1} parent=1 // loop_body
      %s33 = ssub.s32 %s28, 1
      %s34 = ssub.s32 %s28, 2
      %s35 = sadd.s32 %s28, 1
      %s36 = ssub.s32 %s28, %s35
      %p37 = scmp.eq.s32.totalorder %s36, 0
      %s39 = sadd.s32 %s38, 1
      %s40 = scalar_select %p37, %s38, %s39
      %p43 = pneg %p37
      %p44 = scmp.eq.s32.totalorder %s28, 1
      %p45 = por %p43, %p44
      %p46 = scmp.ne.s32.totalorder %s38, %s41
      %p47 = scmp.eq.s32.totalorder %s28, 0
      %p48 = por %p46, %p47
      %p49 = scmp.ne.s32.totalorder %s38, %s41
      %p50 = scmp.eq.s32.totalorder %s33, 1
      %p51 = por %p49, %p50
      %p52 = scmp.ne.s32.totalorder %s41, %s42
      %p53 = scmp.eq.s32.totalorder %s33, 0
      %p54 = por %p52, %p53
      %p55 = scmp.ne.s32.totalorder %s41, %s42
      %p56 = scmp.eq.s32.totalorder %s34, 1
      %p57 = por %p55, %p56
      %p59 = scmp.ne.s32.totalorder %s42, %s58
      %p60 = scmp.eq.s32.totalorder %s34, 0
      %p61 = por %p59, %p60
      %s63 = sadd.s32 %s62, 1
      %p66 = scmp.eq.s32.totalorder %s28, 1
      %p67 = scmp.ne.s32.totalorder %s62, %s64
      %p68 = scmp.eq.s32.totalorder %s28, 0
      %p69 = por %p67, %p68
      %p70 = scmp.ne.s32.totalorder %s62, %s64
      %p71 = scmp.eq.s32.totalorder %s33, 1
      %p72 = por %p70, %p71
      %p73 = scmp.ne.s32.totalorder %s64, %s65
      %p74 = scmp.eq.s32.totalorder %s33, 0
      %p75 = por %p73, %p74
      %p76 = scmp.ne.s32.totalorder %s64, %s65
      %p77 = scmp.eq.s32.totalorder %s34, 1
      %p78 = por %p76, %p77
      %p80 = scmp.ne.s32.totalorder %s65, %s79
      %p81 = scmp.eq.s32.totalorder %s34, 0
      %p82 = por %p80, %p81
      %s84 = sadd.s32 %s83, 1
      %p87 = scmp.eq.s32.totalorder %s28, 1
      %p88 = scmp.ne.s32.totalorder %s83, %s85
      %p89 = scmp.eq.s32.totalorder %s28, 0
      %p90 = por %p88, %p89
      %p91 = scmp.ne.s32.totalorder %s83, %s85
      %p92 = scmp.eq.s32.totalorder %s33, 1
      %p93 = por %p91, %p92
      %p94 = scmp.ne.s32.totalorder %s85, %s86
      %p95 = scmp.eq.s32.totalorder %s33, 0
      %p96 = por %p94, %p95
      %p97 = scmp.ne.s32.totalorder %s85, %s86
      %p98 = scmp.eq.s32.totalorder %s34, 1
      %p99 = por %p97, %p98
      %p101 = scmp.ne.s32.totalorder %s86, %s100
      %p102 = scmp.eq.s32.totalorder %s34, 0
      %p103 = por %p101, %p102
      %s105 = sadd.s32 %s104, 1
      %p108 = scmp.eq.s32.totalorder %s28, 1
      %p109 = scmp.ne.s32.totalorder %s104, %s106
      %p110 = scmp.eq.s32.totalorder %s28, 0
      %p111 = por %p109, %p110
      %p112 = scmp.ne.s32.totalorder %s104, %s106
      %p113 = scmp.eq.s32.totalorder %s33, 1
      %p114 = por %p112, %p113
      %p115 = scmp.ne.s32.totalorder %s106, %s107
      %p116 = scmp.eq.s32.totalorder %s33, 0
      %p117 = por %p115, %p116
      %p118 = scmp.ne.s32.totalorder %s106, %s107
      %p119 = scmp.eq.s32.totalorder %s34, 1
      %p120 = por %p118, %p119
      %p122 = scmp.ne.s32.totalorder %s107, %s121
      %p123 = scmp.eq.s32.totalorder %s34, 0
      %p124 = por %p122, %p123
      %s126 = sadd.s32 %s125, 1
      %p129 = scmp.eq.s32.totalorder %s28, 1
      %p130 = scmp.ne.s32.totalorder %s125, %s127
      %p131 = scmp.eq.s32.totalorder %s28, 0
      %p132 = por %p130, %p131
      %p133 = scmp.ne.s32.totalorder %s125, %s127
      %p134 = scmp.eq.s32.totalorder %s33, 1
      %p135 = por %p133, %p134
      %p136 = scmp.ne.s32.totalorder %s127, %s128
      %p137 = scmp.eq.s32.totalorder %s33, 0
      %p138 = por %p136, %p137
      %p139 = scmp.ne.s32.totalorder %s127, %s128
      %p140 = scmp.eq.s32.totalorder %s34, 1
      %p141 = por %p139, %p140
      %p143 = scmp.ne.s32.totalorder %s128, %s142
      %p144 = scmp.eq.s32.totalorder %s34, 0
      %p145 = por %p143, %p144
      %s147 = sadd.s32 %s146, 1
      %p150 = scmp.eq.s32.totalorder %s28, 1
      %p151 = scmp.ne.s32.totalorder %s146, %s148
      %p152 = scmp.eq.s32.totalorder %s28, 0
      %p153 = por %p151, %p152
      %p154 = scmp.ne.s32.totalorder %s146, %s148
      %p155 = scmp.eq.s32.totalorder %s33, 1
      %p156 = por %p154, %p155
      %p157 = scmp.ne.s32.totalorder %s148, %s149
      %p158 = scmp.eq.s32.totalorder %s33, 0
      %p159 = por %p157, %p158
      %p160 = scmp.ne.s32.totalorder %s148, %s149
      %p161 = scmp.eq.s32.totalorder %s34, 1
      %p162 = por %p160, %p161
      %p164 = scmp.ne.s32.totalorder %s149, %s163
      %p165 = scmp.eq.s32.totalorder %s34, 0
      %p166 = por %p164, %p165
      %s168 = sadd.s32 %s167, 1
      %p171 = scmp.eq.s32.totalorder %s28, 1
      %p172 = scmp.ne.s32.totalorder %s167, %s169
      %p173 = scmp.eq.s32.totalorder %s28, 0
      %p174 = por %p172, %p173
      %p175 = scmp.ne.s32.totalorder %s167, %s169
      %p176 = scmp.eq.s32.totalorder %s33, 1
      %p177 = por %p175, %p176
      %p178 = scmp.ne.s32.totalorder %s169, %s170
      %p179 = scmp.eq.s32.totalorder %s33, 0
      %p180 = por %p178, %p179
      %p181 = scmp.ne.s32.totalorder %s169, %s170
      %p182 = scmp.eq.s32.totalorder %s34, 1
      %p183 = por %p181, %p182
      %p185 = scmp.ne.s32.totalorder %s170, %s184
      %p186 = scmp.eq.s32.totalorder %s34, 0
      %p187 = por %p185, %p186
      %s189 = sadd.s32 %s188, 1
      %p192 = scmp.eq.s32.totalorder %s28, 1
      %p193 = scmp.ne.s32.totalorder %s188, %s190
      %p194 = scmp.eq.s32.totalorder %s28, 0
      %p195 = por %p193, %p194
      %p196 = scmp.ne.s32.totalorder %s188, %s190
      %p197 = scmp.eq.s32.totalorder %s33, 1
      %p198 = por %p196, %p197
      %p199 = scmp.ne.s32.totalorder %s190, %s191
      %p200 = scmp.eq.s32.totalorder %s33, 0
      %p201 = por %p199, %p200
      %p202 = scmp.ne.s32.totalorder %s190, %s191
      %p203 = scmp.eq.s32.totalorder %s34, 1
      %p204 = por %p202, %p203
      %p206 = scmp.ne.s32.totalorder %s191, %s205
      %p207 = scmp.eq.s32.totalorder %s34, 0
      %p208 = por %p206, %p207
      %s210 = sadd.s32 %s209, 1
      %p213 = scmp.eq.s32.totalorder %s28, 1
      %p214 = scmp.ne.s32.totalorder %s209, %s211
      %p215 = scmp.eq.s32.totalorder %s28, 0
      %p216 = por %p214, %p215
      %p217 = scmp.ne.s32.totalorder %s209, %s211
      %p218 = scmp.eq.s32.totalorder %s33, 1
      %p219 = por %p217, %p218
      %p220 = scmp.ne.s32.totalorder %s211, %s212
      %p221 = scmp.eq.s32.totalorder %s33, 0
      %p222 = por %p220, %p221
      %p223 = scmp.ne.s32.totalorder %s211, %s212
      %p224 = scmp.eq.s32.totalorder %s34, 1
      %p225 = por %p223, %p224
      %p227 = scmp.ne.s32.totalorder %s212, %s226
      %p228 = scmp.eq.s32.totalorder %s34, 0
      %p229 = por %p227, %p228
      %s231 = sadd.s32 %s230, 1
      %p234 = scmp.eq.s32.totalorder %s28, 1
      %p235 = scmp.ne.s32.totalorder %s230, %s232
      %p236 = scmp.eq.s32.totalorder %s28, 0
      %p237 = por %p235, %p236
      %p238 = scmp.ne.s32.totalorder %s230, %s232
      %p239 = scmp.eq.s32.totalorder %s33, 1
      %p240 = por %p238, %p239
      %p241 = scmp.ne.s32.totalorder %s232, %s233
      %p242 = scmp.eq.s32.totalorder %s33, 0
      %p243 = por %p241, %p242
      %p244 = scmp.ne.s32.totalorder %s232, %s233
      %p245 = scmp.eq.s32.totalorder %s34, 1
      %p246 = por %p244, %p245
      %p248 = scmp.ne.s32.totalorder %s233, %s247
      %p249 = scmp.eq.s32.totalorder %s34, 0
      %p250 = por %p248, %p249
      %s252 = sadd.s32 %s251, 1
      %p255 = scmp.eq.s32.totalorder %s28, 1
      %p256 = scmp.ne.s32.totalorder %s251, %s253
      %p257 = scmp.eq.s32.totalorder %s28, 0
      %p258 = por %p256, %p257
      %p259 = scmp.ne.s32.totalorder %s251, %s253
      %p260 = scmp.eq.s32.totalorder %s33, 1
      %p261 = por %p259, %p260
      %p262 = scmp.ne.s32.totalorder %s253, %s254
      %p263 = scmp.eq.s32.totalorder %s33, 0
      %p264 = por %p262, %p263
      %p265 = scmp.ne.s32.totalorder %s253, %s254
      %p266 = scmp.eq.s32.totalorder %s34, 1
      %p267 = por %p265, %p266
      %p269 = scmp.ne.s32.totalorder %s254, %s268
      %p270 = scmp.eq.s32.totalorder %s34, 0
      %p271 = por %p269, %p270
      %s273 = sadd.s32 %s272, 1
      %p276 = scmp.eq.s32.totalorder %s28, 1
      %p277 = scmp.ne.s32.totalorder %s272, %s274
      %p278 = scmp.eq.s32.totalorder %s28, 0
      %p279 = por %p277, %p278
      %p280 = scmp.ne.s32.totalorder %s272, %s274
      %p281 = scmp.eq.s32.totalorder %s33, 1
      %p282 = por %p280, %p281
      %p283 = scmp.ne.s32.totalorder %s274, %s275
      %p284 = scmp.eq.s32.totalorder %s33, 0
      %p285 = por %p283, %p284
      %p286 = scmp.ne.s32.totalorder %s274, %s275
      %p287 = scmp.eq.s32.totalorder %s34, 1
      %p288 = por %p286, %p287
      %p290 = scmp.ne.s32.totalorder %s275, %s289
      %p291 = scmp.eq.s32.totalorder %s34, 0
      %p292 = por %p290, %p291
      %s294 = sadd.s32 %s293, 1
      %p297 = scmp.eq.s32.totalorder %s28, 1
      %p298 = scmp.ne.s32.totalorder %s293, %s295
      %p299 = scmp.eq.s32.totalorder %s28, 0
      %p300 = por %p298, %p299
      %p301 = scmp.ne.s32.totalorder %s293, %s295
      %p302 = scmp.eq.s32.totalorder %s33, 1
      %p303 = por %p301, %p302
      %p304 = scmp.ne.s32.totalorder %s295, %s296
      %p305 = scmp.eq.s32.totalorder %s33, 0
      %p306 = por %p304, %p305
      %p307 = scmp.ne.s32.totalorder %s295, %s296
      %p308 = scmp.eq.s32.totalorder %s34, 1
      %p309 = por %p307, %p308
      %p311 = scmp.ne.s32.totalorder %s296, %s310
      %p312 = scmp.eq.s32.totalorder %s34, 0
      %p313 = por %p311, %p312
      %s314 = ssub.s32 %s28, %s35
      %p315 = scmp.eq.s32.totalorder %s314, 0
      %s317 = sadd.s32 %s316, 1
      %s318 = scalar_select %p315, %s316, %s317
      %p321 = pneg %p315
      %p322 = scmp.eq.s32.totalorder %s28, 1
      %p323 = por %p321, %p322
      %p324 = scmp.ne.s32.totalorder %s316, %s319
      %p325 = scmp.eq.s32.totalorder %s28, 0
      %p326 = por %p324, %p325
      %p327 = scmp.ne.s32.totalorder %s316, %s319
      %p328 = scmp.eq.s32.totalorder %s33, 1
      %p329 = por %p327, %p328
      %p330 = scmp.ne.s32.totalorder %s319, %s320
      %p331 = scmp.eq.s32.totalorder %s33, 0
      %p332 = por %p330, %p331
      %p333 = scmp.ne.s32.totalorder %s319, %s320
      %p334 = scmp.eq.s32.totalorder %s34, 1
      %p335 = por %p333, %p334
      %p337 = scmp.ne.s32.totalorder %s320, %s336
      %p338 = scmp.eq.s32.totalorder %s34, 0
      %p339 = por %p337, %p338
      %s340 = ssub.s32 %s28, %s35
      %p341 = scmp.eq.s32.totalorder %s340, 0
      %s343 = sadd.s32 %s342, 1
      %s344 = scalar_select %p341, %s342, %s343
      %p347 = pneg %p341
      %p348 = scmp.eq.s32.totalorder %s28, 1
      %p349 = por %p347, %p348
      %p350 = scmp.ne.s32.totalorder %s342, %s345
      %p351 = scmp.eq.s32.totalorder %s28, 0
      %p352 = por %p350, %p351
      %p353 = scmp.ne.s32.totalorder %s342, %s345
      %p354 = scmp.eq.s32.totalorder %s33, 1
      %p355 = por %p353, %p354
      %p356 = scmp.ne.s32.totalorder %s345, %s346
      %p357 = scmp.eq.s32.totalorder %s33, 0
      %p358 = por %p356, %p357
      %p359 = scmp.ne.s32.totalorder %s345, %s346
      %p360 = scmp.eq.s32.totalorder %s34, 1
      %p361 = por %p359, %p360
      %p363 = scmp.ne.s32.totalorder %s346, %s362
      %p364 = scmp.eq.s32.totalorder %s34, 0
      %p365 = por %p363, %p364
      %s366 = ssub.s32 %s28, %s35
      %p367 = scmp.eq.s32.totalorder %s366, 0
      %s369 = sadd.s32 %s368, 1
      %s370 = scalar_select %p367, %s368, %s369
      %p373 = pneg %p367
      %p374 = scmp.eq.s32.totalorder %s28, 1
      %p375 = por %p373, %p374
      %p376 = scmp.ne.s32.totalorder %s368, %s371
      %p377 = scmp.eq.s32.totalorder %s28, 0
      %p378 = por %p376, %p377
      %p379 = scmp.ne.s32.totalorder %s368, %s371
      %p380 = scmp.eq.s32.totalorder %s33, 1
      %p381 = por %p379, %p380
      %p382 = scmp.ne.s32.totalorder %s371, %s372
      %p383 = scmp.eq.s32.totalorder %s33, 0
      %p384 = por %p382, %p383
      %p385 = scmp.ne.s32.totalorder %s371, %s372
      %p386 = scmp.eq.s32.totalorder %s34, 1
      %p387 = por %p385, %p386
      %p389 = scmp.ne.s32.totalorder %s372, %s388
      %p390 = scmp.eq.s32.totalorder %s34, 0
      %p391 = por %p389, %p390
      %p392 = scmp.le.s32.totalorder 1, %s28
      %p393 = scmp.lt.s32.totalorder %s28, 3
      %p394 = pnand %p392, %p393
      %p395 = pneg %p394
      // Predicated region
      $region9: #{tpu_custom_call.1} parent=5 // pred_check
        _
      $region10: #{tpu_custom_call.1} parent=5 // pred_check_branch
        %397 = sbr.rel (%p394) target = $region12
      $region11: #{tpu_custom_call.1} parent=5 // pred_region
        %s398 = ssub.s32 %s28, 1
        // Predicated region
        $region13: #{tpu_custom_call.1} parent=11 // pred_check
          %p399 = pneg %p75
        $region14: #{tpu_custom_call.1} parent=11 // pred_check_branch
          %401 = sbr.rel (%p399) target = $region16
        $region15: #{tpu_custom_call.1} parent=11 // pred_region
          _
        $region16: #{tpu_custom_call.1} parent=11 // pred_fallthru
          _
        // Predicated region
        $region17: #{tpu_custom_call.1} parent=11 // pred_check
          %p402 = pneg %p96
        $region18: #{tpu_custom_call.1} parent=11 // pred_check_branch
          %404 = sbr.rel (%p402) target = $region20
        $region19: #{tpu_custom_call.1} parent=11 // pred_region
          _
        $region20: #{tpu_custom_call.1} parent=11 // pred_fallthru
          _
        // Predicated region
        $region21: #{tpu_custom_call.1} parent=11 // pred_check
          %p405 = pneg %p117
        $region22: #{tpu_custom_call.1} parent=11 // pred_check_branch
          %407 = sbr.rel (%p405) target = $region24
        $region23: #{tpu_custom_call.1} parent=11 // pred_region
          _
        $region24: #{tpu_custom_call.1} parent=11 // pred_fallthru
          _
        // Predicated region
        $region25: #{tpu_custom_call.1} parent=11 // pred_check
          %p408 = pneg %p138
        $region26: #{tpu_custom_call.1} parent=11 // pred_check_branch
          %410 = sbr.rel (%p408) target = $region28
        $region27: #{tpu_custom_call.1} parent=11 // pred_region
          _
        $region28: #{tpu_custom_call.1} parent=11 // pred_fallthru
          _
        // Predicated region
        $region29: #{tpu_custom_call.1} parent=11 // pred_check
          %p411 = pneg %p159
        $region30: #{tpu_custom_call.1} parent=11 // pred_check_branch
          %413 = sbr.rel (%p411) target = $region32
        $region31: #{tpu_custom_call.1} parent=11 // pred_region
          _
        $region32: #{tpu_custom_call.1} parent=11 // pred_fallthru
          _
        // Predicated region
        $region33: #{tpu_custom_call.1} parent=11 // pred_check
          %p414 = pneg %p180
        $region34: #{tpu_custom_call.1} parent=11 // pred_check_branch
          %416 = sbr.rel (%p414) target = $region36
        $region35: #{tpu_custom_call.1} parent=11 // pred_region
          _
        $region36: #{tpu_custom_call.1} parent=11 // pred_fallthru
          _
        // Predicated region
        $region37: #{tpu_custom_call.1} parent=11 // pred_check
          %p417 = pneg %p201
        $region38: #{tpu_custom_call.1} parent=11 // pred_check_branch
          %419 = sbr.rel (%p417) target = $region40
        $region39: #{tpu_custom_call.1} parent=11 // pred_region
          _
        $region40: #{tpu_custom_call.1} parent=11 // pred_fallthru
          _
        // Predicated region
        $region41: #{tpu_custom_call.1} parent=11 // pred_check
          %p420 = pneg %p222
        $region42: #{tpu_custom_call.1} parent=11 // pred_check_branch
          %422 = sbr.rel (%p420) target = $region44
        $region43: #{tpu_custom_call.1} parent=11 // pred_region
          _
        $region44: #{tpu_custom_call.1} parent=11 // pred_fallthru
          _
        // Predicated region
        $region45: #{tpu_custom_call.1} parent=11 // pred_check
          %p423 = pneg %p243
        $region46: #{tpu_custom_call.1} parent=11 // pred_check_branch
          %425 = sbr.rel (%p423) target = $region48
        $region47: #{tpu_custom_call.1} parent=11 // pred_region
          _
        $region48: #{tpu_custom_call.1} parent=11 // pred_fallthru
          _
        // Predicated region
        $region49: #{tpu_custom_call.1} parent=11 // pred_check
          %p426 = pneg %p264
        $region50: #{tpu_custom_call.1} parent=11 // pred_check_branch
          %428 = sbr.rel (%p426) target = $region52
        $region51: #{tpu_custom_call.1} parent=11 // pred_region
          _
        $region52: #{tpu_custom_call.1} parent=11 // pred_fallthru
          _
        // Predicated region
        $region53: #{tpu_custom_call.1} parent=11 // pred_check
          %p429 = pneg %p285
        $region54: #{tpu_custom_call.1} parent=11 // pred_check_branch
          %431 = sbr.rel (%p429) target = $region56
        $region55: #{tpu_custom_call.1} parent=11 // pred_region
          _
        $region56: #{tpu_custom_call.1} parent=11 // pred_fallthru
          _
        // Predicated region
        $region57: #{tpu_custom_call.1} parent=11 // pred_check
          %p432 = pneg %p306
        $region58: #{tpu_custom_call.1} parent=11 // pred_check_branch
          %434 = sbr.rel (%p432) target = $region60
        $region59: #{tpu_custom_call.1} parent=11 // pred_region
          _
        $region60: #{tpu_custom_call.1} parent=11 // pred_fallthru
          _
      $region12: #{tpu_custom_call.1} parent=5 // pred_fallthru
        _
      %p435 = scmp.lt.s32.totalorder %s28, 2
      // Predicated region
      $region61: #{tpu_custom_call.1} parent=5 // pred_check
        %p436 = pneg %p435
      $region62: #{tpu_custom_call.1} parent=5 // pred_check_branch
        %438 = sbr.rel (%p436) target = $region64
      $region63: #{tpu_custom_call.1} parent=5 // pred_region
        // Predicated region
        $region65: #{tpu_custom_call.1} parent=63 // pred_check
          %p439 = pneg %p48
        $region66: #{tpu_custom_call.1} parent=63 // pred_check_branch
          %441 = sbr.rel (%p439) target = $region68
        $region67: #{tpu_custom_call.1} parent=63 // pred_region
          %p442 = scmp.lt.s32.totalorder %s28, 1
          %s443 = scalar_select %p442, %s28, 1
          %s444 = smul.addr %s443, 8
          %s445 = scalar_lea.vmem %s0, %s444
        $region68: #{tpu_custom_call.1} parent=63 // pred_fallthru
          _
      $region64: #{tpu_custom_call.1} parent=5 // pred_fallthru
        _
      %p446 = scmp.le.s32.totalorder 1, %s28
      %p447 = scmp.lt.s32.totalorder %s28, 3
      %p448 = pnand %p446, %p447
      %p449 = pneg %p448
      // Predicated region
      $region69: #{tpu_custom_call.1} parent=5 // pred_check
        _
      $region70: #{tpu_custom_call.1} parent=5 // pred_check_branch
        %451 = sbr.rel (%p448) target = $region72
      $region71: #{tpu_custom_call.1} parent=5 // pred_region
        %s452 = ssub.s32 %s28, 1
        %p453 = scmp.lt.s32.totalorder %s33, 1
        %s454 = scalar_select %p453, %s33, 1
        %s455 = smul.addr %s454, 8
        %s456 = scalar_lea.vmem %s0, %s455
        %p457 = pneg %p54
        %p458 = pneg %p51
        %p459 = pneg %p75
        %p460 = pneg %p72
        %p461 = pneg %p96
        %p462 = pneg %p93
        %p463 = pneg %p117
        %p464 = pneg %p114
        %p465 = pneg %p138
        %p466 = pneg %p135
        %p467 = pneg %p159
        %p468 = pneg %p156
        %p469 = pneg %p180
        %p470 = pneg %p177
        %p471 = pneg %p201
        %p472 = pneg %p198
        %p473 = pneg %p222
        %p474 = pneg %p219
        %p475 = pneg %p243
        %p476 = pneg %p240
        %p477 = pneg %p264
        %p478 = pneg %p261
        %p479 = pneg %p285
        %p480 = pneg %p282
        %p481 = pneg %p306
        %p482 = pneg %p303
        %p483 = pneg %p332
        %p484 = pneg %p329
        %s485 = sand.u32 %s319, 1
        %s486 = scalar_lea.sflag [#allocation3], %s485
        %s487 = sand.u32 %s319, 1
        %s488 = smul.addr %s487, 8
        %s489 = scalar_lea.vmem [#allocation2], %s488
        %p490 = pneg %p358
        %p491 = pneg %p355
        %s492 = sand.u32 %s33, 1
        %s493 = scalar_lea.sflag [#allocation5], %s492
        %s494 = sand.u32 %s345, 1
        %s495 = smul.addr %s494, 4
        %s496 = scalar_lea.vmem [#allocation4], %s495
        %p497 = pneg %p384
        %p498 = pneg %p381
        %s499 = sand.u32 %s33, 1
        %s500 = scalar_lea.sflag [#allocation5], %s499
        %s501 = sand.u32 %s371, 1
        %s502 = smul.addr %s501, 4
        %s503 = scalar_lea.vmem [#allocation6], %s502
        %p504 = scmp.lt.s32.totalorder %s33, 1
        %s505 = scalar_select %p504, %s33, 1
        %s506 = smul.addr %s505, 8
        %s507 = scalar_lea.vmem %s0, %s506
        %v509 = vld [vmem:[%s507] sm:$0xff]
        %v510 = vld [vmem:[%s1] sm:$0x1]
        %v511 = vld [vmem:[%s2] sm:$0x1]
        %vm512 = vcmask 261120
        %v513 = vsel %vm512, %v509, 0.0
        %514 = vadd.xlane.f32.xlu0 %v513
        %v515 = vpop.xlane.xlu0 %514
        %v516 = vrcp.pop 32.0
        %v517 = vmul.f32 %v515, %v516
        %v518 = vsub.f32 %v509, %v517
        %v519 = vmul.f32 %v518, %v518
        %v520 = vsel %vm512, %v519, 0.0
        %521 = vadd.xlane.f32.xlu0 %v520
        %v522 = vpop.xlane.xlu0 %521
        %v523 = vmul.f32 %v522, %v516
        %v524 = vadd.f32 %v523, 1e-05
        %v525 = vrsqrt.pop %v524
        %v526 = vmul.f32 %v518, %v525
        %v528 = vlaneseq
        %v529 = vshrl.u32 %v528, 7
        %v530 = vsub.s32 0, %v529
        %v531 = vrot.slane %v510, %v530
        %v533 = vmul.f32 %v526, %v531
        %v535 = vlaneseq
        %v536 = vshrl.u32 %v535, 7
        %v537 = vsub.s32 0, %v536
        %v538 = vrot.slane %v511, %v537
        %v540 = vadd.f32 %v533, %v538
        %v541 = vpack.c.bf16 %v540, %v540
        %v542 = vld [vmem:[%s3] sm:$0xf]
        %v543 = vld [vmem:[%s3 + $0x4] sm:$0xf]
        %v544 = vld [vmem:[%s3 + $0x8] sm:$0xf]
        %v545 = vld [vmem:[%s3 + $0xc] sm:$0xf]
        %v546 = vld [vmem:[%s4] sm:$0x1]
        %v548 = vlaneseq
        %v549 = vshrl.u32 %v548, 7
        %v550 = vsub.s32 0, %v549
        %v551 = vrot.slane %v546, %v550
        %v557 = vunpack.c.l.b16 %v542
        %v558 = vunpack.c.l.b16 %v543
        %v559 = vunpack.c.l.b16 %v544
        %v560 = vunpack.c.l.b16 %v545
        %v561 = vpack.c.b16 %v558, %v557
        %v562 = vpack.c.b16 %v560, %v559
        %v566 = vsel %vm512, %v541, 0
        %568 = vmatprep.subr.bf16.mxu0 0
        %569 = vmatpush1.bf16.msra.mxu0 %v561
        %570 = vmatprep.subr.bf16.mxu0 0
        %571 = vmatpush1.bf16.msra.mxu0 %v562
        %572 = vmatprep.subr.bf16.mxu0 0
        %573 = vmatpush1.bf16.msra.mxu0 0
        %574 = vmatprep.subr.bf16.mxu0 0
        %575 = vmatpush1.bf16.msra.mxu0 0
        %576 = vmatprep.subr.bf16.mxu0 0
        %577 = vmatpush1.bf16.msra.mxu0 0
        %578 = vmatprep.subr.bf16.mxu0 0
        %579 = vmatpush1.bf16.msra.mxu0 0
        %580 = vmatprep.subr.bf16.mxu0 0
        %581 = vmatpush1.bf16.msra.mxu0 0
        %582 = vmatprep.subr.bf16.mxu0 0
        %583 = vmatpush1.bf16.msra.mxu0 0
        %584 = vmatprep.subr.bf16.mxu0 0
        %585 = vmatpush1.bf16.msra.mxu0 0
        %586 = vmatprep.subr.bf16.mxu0 0
        %587 = vmatpush1.bf16.msra.mxu0 0
        %588 = vmatprep.subr.bf16.mxu0 0
        %589 = vmatpush1.bf16.msra.mxu0 0
        %590 = vmatprep.subr.bf16.mxu0 0
        %591 = vmatpush1.bf16.msra.mxu0 0
        %592 = vmatprep.subr.bf16.mxu0 0
        %593 = vmatpush1.bf16.msra.mxu0 0
        %594 = vmatprep.subr.bf16.mxu0 0
        %595 = vmatpush1.bf16.msra.mxu0 0
        %596 = vmatprep.subr.bf16.mxu0 0
        %597 = vmatpush1.bf16.msra.mxu0 0
        %598 = vmatprep.subr.bf16.mxu0 0
        %599 = vmatpush1.bf16.msra.mxu0 0
        %600 = vmatprep.mubr.bf16.mxu0 0
        %601 = vmatmul.mubr.bf16.gmra.mrb[0].mxu0 %v566
        %v602 = vpop.f32.mrb[0].mxu0
        %v603 = vadd.f32 %v551, %v602
        %v604 = vpop.f32.mrb[0].mxu0
        %v605 = vpop.f32.mrb[0].mxu0
        %v606 = vpop.f32.mrb[0].mxu0
        %607 = vdwg.mxu0
        %v608 = vpack.c.bf16 %v603, %v603
        %v610 = vunpack.c.l.b16 %v608
        %v611 = vpack.c.b16 %v610, %v610
        %612 = vrot.lane.b32.xlu0 %v611, 96
        %v613 = vpop.permute.xlu0 %612
        %vm615 = vcmask 257024
        %616 = vst.msk [vmem:[%s496] sm:$0xf] %vm615, %v613
        %617 = vrot.lane.b32.xlu0 %v611, 64
        %v618 = vpop.permute.xlu0 %617
        %620 = vst.msk [vmem:[%s503] sm:$0xf] %vm615, %v618
        %622 = vrot.lane.b32.xlu0 %v603, 120
        %v623 = vpop.permute.xlu0 %622
        %625 = vrot.lane.b32.xlu0 %v603, 112
        %v626 = vpop.permute.xlu0 %625
        %628 = vrot.lane.b32.xlu0 %v603, 104
        %v629 = vpop.permute.xlu0 %628
        %v631 = vcombine.low %v603, %v626
        %v632 = vcombine.high %v603, %v626
        %v634 = vunpack.c.l.s4 1983009808
        %v635 = vunpack.c.0.s8 %v634
        %v636 = vlaneseq
        %v637 = vshrl.u32 %v636, 7
        %v638 = vsub.s32 %v635, %v637
        %v639 = vrot.slane %v631, %v638
        %v641 = vunpack.c.l.s4 1983009808
        %v642 = vunpack.c.0.s8 %v641
        %v643 = vlaneseq
        %v644 = vshrl.u32 %v643, 7
        %v645 = vsub.s32 %v642, %v644
        %v646 = vrot.slane %v632, %v645
        %v647 = vcombine.low %v623, %v629
        %v648 = vcombine.high %v623, %v629
        %v650 = vunpack.c.l.s4 1983009808
        %v651 = vunpack.c.0.s8 %v650
        %v652 = vlaneseq
        %v653 = vshrl.u32 %v652, 7
        %v654 = vsub.s32 %v651, %v653
        %v655 = vrot.slane %v647, %v654
        %v657 = vunpack.c.l.s4 1983009808
        %v658 = vunpack.c.0.s8 %v657
        %v659 = vlaneseq
        %v660 = vshrl.u32 %v659, 7
        %v661 = vsub.s32 %v658, %v660
        %v662 = vrot.slane %v648, %v661
        %v663 = vcombine.low %v639, %v655
        %v664 = vcombine.high %v639, %v655
        %v666 = vunpack.c.l.s4 1934713408
        %v667 = vunpack.c.0.s8 %v666
        %v668 = vlaneseq
        %v669 = vshrl.u32 %v668, 7
        %v670 = vsub.s32 %v667, %v669
        %v671 = vrot.slane %v663, %v670
        %v673 = vunpack.c.l.s4 1934713408
        %v674 = vunpack.c.0.s8 %v673
        %v675 = vlaneseq
        %v676 = vshrl.u32 %v675, 7
        %v677 = vsub.s32 %v674, %v676
        %v678 = vrot.slane %v664, %v677
        %v679 = vcombine.low %v646, %v662
        %v680 = vcombine.high %v646, %v662
        %v682 = vunpack.c.l.s4 1934713408
        %v683 = vunpack.c.0.s8 %v682
        %v684 = vlaneseq
        %v685 = vshrl.u32 %v684, 7
        %v686 = vsub.s32 %v683, %v685
        %v687 = vrot.slane %v679, %v686
        %v689 = vunpack.c.l.s4 1934713408
        %v690 = vunpack.c.0.s8 %v689
        %v691 = vlaneseq
        %v692 = vshrl.u32 %v691, 7
        %v693 = vsub.s32 %v690, %v692
        %v694 = vrot.slane %v680, %v693
        %v695 = vcombine.high %v671, 0.0
        %v696 = vcombine.high %v678, 0.0
        %v697 = vcombine.high %v687, 0.0
        %v698 = vcombine.high %v694, 0.0
        %v699 = vcombine.low %v671, %v678
        %v701 = vunpack.c.l.s4 1983009808
        %v702 = vunpack.c.0.s8 %v701
        %v703 = vlaneseq
        %v704 = vshrl.u32 %v703, 7
        %v705 = vsub.s32 %v702, %v704
        %v706 = vrot.slane %v699, %v705
        %v707 = vcombine.low %v695, %v696
        %v709 = vunpack.c.l.s4 1983009808
        %v710 = vunpack.c.0.s8 %v709
        %v711 = vlaneseq
        %v712 = vshrl.u32 %v711, 7
        %v713 = vsub.s32 %v710, %v712
        %v714 = vrot.slane %v707, %v713
        %v715 = vcombine.low %v687, %v694
        %v717 = vunpack.c.l.s4 1983009808
        %v718 = vunpack.c.0.s8 %v717
        %v719 = vlaneseq
        %v720 = vshrl.u32 %v719, 7
        %v721 = vsub.s32 %v718, %v720
        %v722 = vrot.slane %v715, %v721
        %v723 = vcombine.low %v697, %v698
        %v725 = vunpack.c.l.s4 1983009808
        %v726 = vunpack.c.0.s8 %v725
        %v727 = vlaneseq
        %v728 = vshrl.u32 %v727, 7
        %v729 = vsub.s32 %v726, %v728
        %v730 = vrot.slane %v723, %v729
        %v731 = vcombine.low %v706, %v714
        %v732 = vcombine.high %v706, %v714
        %v734 = vunpack.c.l.s4 1934713408
        %v735 = vunpack.c.0.s8 %v734
        %v736 = vlaneseq
        %v737 = vshrl.u32 %v736, 7
        %v738 = vsub.s32 %v735, %v737
        %v739 = vrot.slane %v731, %v738
        %v741 = vunpack.c.l.s4 1934713408
        %v742 = vunpack.c.0.s8 %v741
        %v743 = vlaneseq
        %v744 = vshrl.u32 %v743, 7
        %v745 = vsub.s32 %v742, %v744
        %v746 = vrot.slane %v732, %v745
        %v747 = vcombine.low %v722, %v730
        %v748 = vcombine.high %v722, %v730
        %v750 = vunpack.c.l.s4 1934713408
        %v751 = vunpack.c.0.s8 %v750
        %v752 = vlaneseq
        %v753 = vshrl.u32 %v752, 7
        %v754 = vsub.s32 %v751, %v753
        %v755 = vrot.slane %v747, %v754
        %v757 = vunpack.c.l.s4 1934713408
        %v758 = vunpack.c.0.s8 %v757
        %v759 = vlaneseq
        %v760 = vshrl.u32 %v759, 7
        %v761 = vsub.s32 %v758, %v760
        %v762 = vrot.slane %v748, %v761
        %v763 = vcombine.low %v739, %v755
        %v764 = vcombine.high %v739, %v755
        %v765 = vcombine.low %v746, %v762
        %v766 = vcombine.high %v746, %v762
        %v767 = vpack.c.bf16 %v763, %v763
        %v768 = vpack.c.bf16 %v764, %v764
        %v769 = vpack.c.bf16 %v765, %v765
        %v770 = vpack.c.bf16 %v766, %v766
        %771 = vrot.lane.b32.xlu0 %v603, 96
        %v772 = vpop.permute.xlu0 %771
        %773 = vrot.lane.b32.xlu0 %v623, 96
        %v774 = vpop.permute.xlu0 %773
        %775 = vrot.lane.b32.xlu0 %v626, 96
        %v776 = vpop.permute.xlu0 %775
        %777 = vrot.lane.b32.xlu0 %v629, 96
        %v778 = vpop.permute.xlu0 %777
        %v783 = vcombine.low %v772, %v776
        %v784 = vcombine.high %v772, %v776
        %v786 = vunpack.c.l.s4 1983009808
        %v787 = vunpack.c.0.s8 %v786
        %v788 = vlaneseq
        %v789 = vshrl.u32 %v788, 7
        %v790 = vsub.s32 %v787, %v789
        %v791 = vrot.slane %v783, %v790
        %v793 = vunpack.c.l.s4 1983009808
        %v794 = vunpack.c.0.s8 %v793
        %v795 = vlaneseq
        %v796 = vshrl.u32 %v795, 7
        %v797 = vsub.s32 %v794, %v796
        %v798 = vrot.slane %v784, %v797
        %v799 = vcombine.low %v774, %v778
        %v800 = vcombine.high %v774, %v778
        %v802 = vunpack.c.l.s4 1983009808
        %v803 = vunpack.c.0.s8 %v802
        %v804 = vlaneseq
        %v805 = vshrl.u32 %v804, 7
        %v806 = vsub.s32 %v803, %v805
        %v807 = vrot.slane %v799, %v806
        %v809 = vunpack.c.l.s4 1983009808
        %v810 = vunpack.c.0.s8 %v809
        %v811 = vlaneseq
        %v812 = vshrl.u32 %v811, 7
        %v813 = vsub.s32 %v810, %v812
        %v814 = vrot.slane %v800, %v813
        %v815 = vcombine.low %v791, %v807
        %v816 = vcombine.high %v791, %v807
        %v818 = vunpack.c.l.s4 1934713408
        %v819 = vunpack.c.0.s8 %v818
        %v820 = vlaneseq
        %v821 = vshrl.u32 %v820, 7
        %v822 = vsub.s32 %v819, %v821
        %v823 = vrot.slane %v815, %v822
        %v825 = vunpack.c.l.s4 1934713408
        %v826 = vunpack.c.0.s8 %v825
        %v827 = vlaneseq
        %v828 = vshrl.u32 %v827, 7
        %v829 = vsub.s32 %v826, %v828
        %v830 = vrot.slane %v816, %v829
        %v831 = vcombine.low %v798, %v814
        %v832 = vcombine.high %v798, %v814
        %v834 = vunpack.c.l.s4 1934713408
        %v835 = vunpack.c.0.s8 %v834
        %v836 = vlaneseq
        %v837 = vshrl.u32 %v836, 7
        %v838 = vsub.s32 %v835, %v837
        %v839 = vrot.slane %v831, %v838
        %v841 = vunpack.c.l.s4 1934713408
        %v842 = vunpack.c.0.s8 %v841
        %v843 = vlaneseq
        %v844 = vshrl.u32 %v843, 7
        %v845 = vsub.s32 %v842, %v844
        %v846 = vrot.slane %v832, %v845
        %v847 = vcombine.high %v823, 0.0
        %v848 = vcombine.high %v830, 0.0
        %v849 = vcombine.high %v839, 0.0
        %v850 = vcombine.high %v846, 0.0
        %v851 = vcombine.low %v823, %v830
        %v853 = vunpack.c.l.s4 1983009808
        %v854 = vunpack.c.0.s8 %v853
        %v855 = vlaneseq
        %v856 = vshrl.u32 %v855, 7
        %v857 = vsub.s32 %v854, %v856
        %v858 = vrot.slane %v851, %v857
        %v859 = vcombine.low %v847, %v848
        %v861 = vunpack.c.l.s4 1983009808
        %v862 = vunpack.c.0.s8 %v861
        %v863 = vlaneseq
        %v864 = vshrl.u32 %v863, 7
        %v865 = vsub.s32 %v862, %v864
        %v866 = vrot.slane %v859, %v865
        %v867 = vcombine.low %v839, %v846
        %v869 = vunpack.c.l.s4 1983009808
        %v870 = vunpack.c.0.s8 %v869
        %v871 = vlaneseq
        %v872 = vshrl.u32 %v871, 7
        %v873 = vsub.s32 %v870, %v872
        %v874 = vrot.slane %v867, %v873
        %v875 = vcombine.low %v849, %v850
        %v877 = vunpack.c.l.s4 1983009808
        %v878 = vunpack.c.0.s8 %v877
        %v879 = vlaneseq
        %v880 = vshrl.u32 %v879, 7
        %v881 = vsub.s32 %v878, %v880
        %v882 = vrot.slane %v875, %v881
        %v883 = vcombine.low %v858, %v866
        %v884 = vcombine.high %v858, %v866
        %v886 = vunpack.c.l.s4 1934713408
        %v887 = vunpack.c.0.s8 %v886
        %v888 = vlaneseq
        %v889 = vshrl.u32 %v888, 7
        %v890 = vsub.s32 %v887, %v889
        %v891 = vrot.slane %v883, %v890
        %v893 = vunpack.c.l.s4 1934713408
        %v894 = vunpack.c.0.s8 %v893
        %v895 = vlaneseq
        %v896 = vshrl.u32 %v895, 7
        %v897 = vsub.s32 %v894, %v896
        %v898 = vrot.slane %v884, %v897
        %v899 = vcombine.low %v874, %v882
        %v900 = vcombine.high %v874, %v882
        %v902 = vunpack.c.l.s4 1934713408
        %v903 = vunpack.c.0.s8 %v902
        %v904 = vlaneseq
        %v905 = vshrl.u32 %v904, 7
        %v906 = vsub.s32 %v903, %v905
        %v907 = vrot.slane %v899, %v906
        %v909 = vunpack.c.l.s4 1934713408
        %v910 = vunpack.c.0.s8 %v909
        %v911 = vlaneseq
        %v912 = vshrl.u32 %v911, 7
        %v913 = vsub.s32 %v910, %v912
        %v914 = vrot.slane %v900, %v913
        %v915 = vcombine.low %v891, %v907
        %v916 = vcombine.high %v891, %v907
        %v917 = vcombine.low %v898, %v914
        %v918 = vcombine.high %v898, %v914
        %v919 = vpack.c.bf16 %v915, %v915
        %v920 = vpack.c.bf16 %v916, %v916
        %v921 = vpack.c.bf16 %v917, %v917
        %v922 = vpack.c.bf16 %v918, %v918
        %923 = vrot.lane.b32.xlu0 %v603, 64
        %v924 = vpop.permute.xlu0 %923
        %925 = vrot.lane.b32.xlu0 %v623, 64
        %v926 = vpop.permute.xlu0 %925
        %927 = vrot.lane.b32.xlu0 %v626, 64
        %v928 = vpop.permute.xlu0 %927
        %929 = vrot.lane.b32.xlu0 %v629, 64
        %v930 = vpop.permute.xlu0 %929
        %v935 = vcombine.low %v924, %v928
        %v936 = vcombine.high %v924, %v928
        %v938 = vunpack.c.l.s4 1983009808
        %v939 = vunpack.c.0.s8 %v938
        %v940 = vlaneseq
        %v941 = vshrl.u32 %v940, 7
        %v942 = vsub.s32 %v939, %v941
        %v943 = vrot.slane %v935, %v942
        %v945 = vunpack.c.l.s4 1983009808
        %v946 = vunpack.c.0.s8 %v945
        %v947 = vlaneseq
        %v948 = vshrl.u32 %v947, 7
        %v949 = vsub.s32 %v946, %v948
        %v950 = vrot.slane %v936, %v949
        %v951 = vcombine.low %v926, %v930
        %v952 = vcombine.high %v926, %v930
        %v954 = vunpack.c.l.s4 1983009808
        %v955 = vunpack.c.0.s8 %v954
        %v956 = vlaneseq
        %v957 = vshrl.u32 %v956, 7
        %v958 = vsub.s32 %v955, %v957
        %v959 = vrot.slane %v951, %v958
        %v961 = vunpack.c.l.s4 1983009808
        %v962 = vunpack.c.0.s8 %v961
        %v963 = vlaneseq
        %v964 = vshrl.u32 %v963, 7
        %v965 = vsub.s32 %v962, %v964
        %v966 = vrot.slane %v952, %v965
        %v967 = vcombine.low %v943, %v959
        %v968 = vcombine.high %v943, %v959
        %v970 = vunpack.c.l.s4 1934713408
        %v971 = vunpack.c.0.s8 %v970
        %v972 = vlaneseq
        %v973 = vshrl.u32 %v972, 7
        %v974 = vsub.s32 %v971, %v973
        %v975 = vrot.slane %v967, %v974
        %v977 = vunpack.c.l.s4 1934713408
        %v978 = vunpack.c.0.s8 %v977
        %v979 = vlaneseq
        %v980 = vshrl.u32 %v979, 7
        %v981 = vsub.s32 %v978, %v980
        %v982 = vrot.slane %v968, %v981
        %v983 = vcombine.low %v950, %v966
        %v984 = vcombine.high %v950, %v966
        %v986 = vunpack.c.l.s4 1934713408
        %v987 = vunpack.c.0.s8 %v986
        %v988 = vlaneseq
        %v989 = vshrl.u32 %v988, 7
        %v990 = vsub.s32 %v987, %v989
        %v991 = vrot.slane %v983, %v990
        %v993 = vunpack.c.l.s4 1934713408
        %v994 = vunpack.c.0.s8 %v993
        %v995 = vlaneseq
        %v996 = vshrl.u32 %v995, 7
        %v997 = vsub.s32 %v994, %v996
        %v998 = vrot.slane %v984, %v997
        %v999 = vcombine.high %v975, 0.0
        %v1000 = vcombine.high %v982, 0.0
        %v1001 = vcombine.high %v991, 0.0
        %v1002 = vcombine.high %v998, 0.0
        %v1003 = vcombine.low %v975, %v982
        %v1005 = vunpack.c.l.s4 1983009808
        %v1006 = vunpack.c.0.s8 %v1005
        %v1007 = vlaneseq
        %v1008 = vshrl.u32 %v1007, 7
        %v1009 = vsub.s32 %v1006, %v1008
        %v1010 = vrot.slane %v1003, %v1009
        %v1011 = vcombine.low %v999, %v1000
        %v1013 = vunpack.c.l.s4 1983009808
        %v1014 = vunpack.c.0.s8 %v1013
        %v1015 = vlaneseq
        %v1016 = vshrl.u32 %v1015, 7
        %v1017 = vsub.s32 %v1014, %v1016
        %v1018 = vrot.slane %v1011, %v1017
        %v1019 = vcombine.low %v991, %v998
        %v1021 = vunpack.c.l.s4 1983009808
        %v1022 = vunpack.c.0.s8 %v1021
        %v1023 = vlaneseq
        %v1024 = vshrl.u32 %v1023, 7
        %v1025 = vsub.s32 %v1022, %v1024
        %v1026 = vrot.slane %v1019, %v1025
        %v1027 = vcombine.low %v1001, %v1002
        %v1029 = vunpack.c.l.s4 1983009808
        %v1030 = vunpack.c.0.s8 %v1029
        %v1031 = vlaneseq
        %v1032 = vshrl.u32 %v1031, 7
        %v1033 = vsub.s32 %v1030, %v1032
        %v1034 = vrot.slane %v1027, %v1033
        %v1035 = vcombine.low %v1010, %v1018
        %v1036 = vcombine.high %v1010, %v1018
        %v1038 = vunpack.c.l.s4 1934713408
        %v1039 = vunpack.c.0.s8 %v1038
        %v1040 = vlaneseq
        %v1041 = vshrl.u32 %v1040, 7
        %v1042 = vsub.s32 %v1039, %v1041
        %v1043 = vrot.slane %v1035, %v1042
        %v1045 = vunpack.c.l.s4 1934713408
        %v1046 = vunpack.c.0.s8 %v1045
        %v1047 = vlaneseq
        %v1048 = vshrl.u32 %v1047, 7
        %v1049 = vsub.s32 %v1046, %v1048
        %v1050 = vrot.slane %v1036, %v1049
        %v1051 = vcombine.low %v1026, %v1034
        %v1052 = vcombine.high %v1026, %v1034
        %v1054 = vunpack.c.l.s4 1934713408
        %v1055 = vunpack.c.0.s8 %v1054
        %v1056 = vlaneseq
        %v1057 = vshrl.u32 %v1056, 7
        %v1058 = vsub.s32 %v1055, %v1057
        %v1059 = vrot.slane %v1051, %v1058
        %v1061 = vunpack.c.l.s4 1934713408
        %v1062 = vunpack.c.0.s8 %v1061
        %v1063 = vlaneseq
        %v1064 = vshrl.u32 %v1063, 7
        %v1065 = vsub.s32 %v1062, %v1064
        %v1066 = vrot.slane %v1052, %v1065
        %v1067 = vcombine.low %v1043, %v1059
        %v1068 = vcombine.high %v1043, %v1059
        %v1069 = vcombine.low %v1050, %v1066
        %v1070 = vcombine.high %v1050, %v1066
        %v1071 = vpack.c.bf16 %v1067, %v1067
        %v1072 = vpack.c.bf16 %v1068, %v1068
        %v1073 = vpack.c.bf16 %v1069, %v1069
        %v1074 = vpack.c.bf16 %v1070, %v1070
        %vm1075 = vcmask 64512
        %v1077 = vsel %vm1075, %v767, 0
        %v1080 = vsel %vm1075, %v919, 0
        %1082 = vmatprep.subr.bf16.mxu0 0
        %1083 = vmatpush1.bf16.xpose.msra.mxu0 %v1080
        %1084 = vmatprep.subr.bf16.mxu0 0
        %1085 = vmatpush1.bf16.xpose.msra.mxu0 0
        %1086 = vmatprep.subr.bf16.mxu0 0
        %1087 = vmatpush1.bf16.xpose.msra.mxu0 0
        %1088 = vmatprep.subr.bf16.mxu0 0
        %1089 = vmatpush1.bf16.xpose.msra.mxu0 0
        %1090 = vmatprep.subr.bf16.mxu0 0
        %1091 = vmatpush1.bf16.xpose.msra.mxu0 0
        %1092 = vmatprep.subr.bf16.mxu0 0
        %1093 = vmatpush1.bf16.xpose.msra.mxu0 0
        %1094 = vmatprep.subr.bf16.mxu0 0
        %1095 = vmatpush1.bf16.xpose.msra.mxu0 0
        %1096 = vmatprep.subr.bf16.mxu0 0
        %1097 = vmatpush1.bf16.xpose.msra.mxu0 0
        %1098 = vmatprep.subr.bf16.mxu0 0
        %1099 = vmatpush1.bf16.xpose.msra.mxu0 0
        %1100 = vmatprep.subr.bf16.mxu0 0
        %1101 = vmatpush1.bf16.xpose.msra.mxu0 0
        %1102 = vmatprep.subr.bf16.mxu0 0
        %1103 = vmatpush1.bf16.xpose.msra.mxu0 0
        %1104 = vmatprep.subr.bf16.mxu0 0
        %1105 = vmatpush1.bf16.xpose.msra.mxu0 0
        %1106 = vmatprep.subr.bf16.mxu0 0
        %1107 = vmatpush1.bf16.xpose.msra.mxu0 0
        %1108 = vmatprep.subr.bf16.mxu0 0
        %1109 = vmatpush1.bf16.xpose.msra.mxu0 0
        %1110 = vmatprep.subr.bf16.mxu0 0
        %1111 = vmatpush1.bf16.xpose.msra.mxu0 0
        %1112 = vmatprep.subr.bf16.mxu0 0
        %1113 = vmatpush1.bf16.xpose.msra.mxu0 0
        %1114 = vmatprep.mubr.bf16.mxu0 0
        %1115 = vmatmul.mubr.bf16.gmra.mrb[0].mxu0 %v1077
        %v1116 = vpop.f32.mrb[0].mxu0
        %v1117 = vadd.f32 0.0, %v1116
        %v1118 = vpop.f32.mrb[0].mxu0
        %v1119 = vpop.f32.mrb[0].mxu0
        %v1120 = vpop.f32.mrb[0].mxu0
        %1121 = vdwg.mxu0
        %v1123 = vsel %vm1075, %v768, 0
        %v1126 = vsel %vm1075, %v920, 0
        %1128 = vmatprep.subr.bf16.mxu0 0
        %1129 = vmatpush1.bf16.xpose.msra.mxu0 %v1126
        %1130 = vmatprep.subr.bf16.mxu0 0
        %1131 = vmatpush1.bf16.xpose.msra.mxu0 0
        %1132 = vmatprep.subr.bf16.mxu0 0
        %1133 = vmatpush1.bf16.xpose.msra.mxu0 0
        %1134 = vmatprep.subr.bf16.mxu0 0
        %1135 = vmatpush1.bf16.xpose.msra.mxu0 0
        %1136 = vmatprep.subr.bf16.mxu0 0
        %1137 = vmatpush1.bf16.xpose.msra.mxu0 0
        %1138 = vmatprep.subr.bf16.mxu0 0
        %1139 = vmatpush1.bf16.xpose.msra.mxu0 0
        %1140 = vmatprep.subr.bf16.mxu0 0
        %1141 = vmatpush1.bf16.xpose.msra.mxu0 0
        %1142 = vmatprep.subr.bf16.mxu0 0
        %1143 = vmatpush1.bf16.xpose.msra.mxu0 0
        %1144 = vmatprep.subr.bf16.mxu0 0
        %1145 = vmatpush1.bf16.xpose.msra.mxu0 0
        %1146 = vmatprep.subr.bf16.mxu0 0
        %1147 = vmatpush1.bf16.xpose.msra.mxu0 0
        %1148 = vmatprep.subr.bf16.mxu0 0
        %1149 = vmatpush1.bf16.xpose.msra.mxu0 0
        %1150 = vmatprep.subr.bf16.mxu0 0
        %1151 = vmatpush1.bf16.xpose.msra.mxu0 0
        %1152 = vmatprep.subr.bf16.mxu0 0
        %1153 = vmatpush1.bf16.xpose.msra.mxu0 0
        %1154 = vmatprep.subr.bf16.mxu0 0
        %1155 = vmatpush1.bf16.xpose.msra.mxu0 0
        %1156 = vmatprep.subr.bf16.mxu0 0
        %1157 = vmatpush1.bf16.xpose.msra.mxu0 0
        %1158 = vmatprep.subr.bf16.mxu0 0
        %1159 = vmatpush1.bf16.xpose.msra.mxu0 0
        %1160 = vmatprep.mubr.bf16.mxu0 0
        %1161 = vmatmul.mubr.bf16.gmra.mrb[0].mxu0 %v1123
        %v1162 = vpop.f32.mrb[0].mxu0
        %v1163 = vadd.f32 0.0, %v1162
        %v1164 = vpop.f32.mrb[0].mxu0
        %v1165 = vpop.f32.mrb[0].mxu0
        %v1166 = vpop.f32.mrb[0].mxu0
        %1167 = vdwg.mxu0
        %v1169 = vsel %vm1075, %v769, 0
        %v1172 = vsel %vm1075, %v921, 0
        %1174 = vmatprep.subr.bf16.mxu0 0
        %1175 = vmatpush1.bf16.xpose.msra.mxu0 %v1172
        %1176 = vmatprep.subr.bf16.mxu0 0
        %1177 = vmatpush1.bf16.xpose.msra.mxu0 0
        %1178 = vmatprep.subr.bf16.mxu0 0
        %1179 = vmatpush1.bf16.xpose.msra.mxu0 0
        %1180 = vmatprep.subr.bf16.mxu0 0
        %1181 = vmatpush1.bf16.xpose.msra.mxu0 0
        %1182 = vmatprep.subr.bf16.mxu0 0
        %1183 = vmatpush1.bf16.xpose.msra.mxu0 0
        %1184 = vmatprep.subr.bf16.mxu0 0
        %1185 = vmatpush1.bf16.xpose.msra.mxu0 0
        %1186 = vmatprep.subr.bf16.mxu0 0
        %1187 = vmatpush1.bf16.xpose.msra.mxu0 0
        %1188 = vmatprep.subr.bf16.mxu0 0
        %1189 = vmatpush1.bf16.xpose.msra.mxu0 0
        %1190 = vmatprep.subr.bf16.mxu0 0
        %1191 = vmatpush1.bf16.xpose.msra.mxu0 0
        %1192 = vmatprep.subr.bf16.mxu0 0
        %1193 = vmatpush1.bf16.xpose.msra.mxu0 0
        %1194 = vmatprep.subr.bf16.mxu0 0
        %1195 = vmatpush1.bf16.xpose.msra.mxu0 0
        %1196 = vmatprep.subr.bf16.mxu0 0
        %1197 = vmatpush1.bf16.xpose.msra.mxu0 0
        %1198 = vmatprep.subr.bf16.mxu0 0
        %1199 = vmatpush1.bf16.xpose.msra.mxu0 0
        %1200 = vmatprep.subr.bf16.mxu0 0
        %1201 = vmatpush1.bf16.xpose.msra.mxu0 0
        %1202 = vmatprep.subr.bf16.mxu0 0
        %1203 = vmatpush1.bf16.xpose.msra.mxu0 0
        %1204 = vmatprep.subr.bf16.mxu0 0
        %1205 = vmatpush1.bf16.xpose.msra.mxu0 0
        %1206 = vmatprep.mubr.bf16.mxu0 0
        %1207 = vmatmul.mubr.bf16.gmra.mrb[0].mxu0 %v1169
        %v1208 = vpop.f32.mrb[0].mxu0
        %v1209 = vadd.f32 0.0, %v1208
        %v1210 = vpop.f32.mrb[0].mxu0
        %v1211 = vpop.f32.mrb[0].mxu0
        %v1212 = vpop.f32.mrb[0].mxu0
        %1213 = vdwg.mxu0
        %v1215 = vsel %vm1075, %v770, 0
        %v1218 = vsel %vm1075, %v922, 0
        %1220 = vmatprep.subr.bf16.mxu0 0
        %1221 = vmatpush1.bf16.xpose.msra.mxu0 %v1218
        %1222 = vmatprep.subr.bf16.mxu0 0
        %1223 = vmatpush1.bf16.xpose.msra.mxu0 0
        %1224 = vmatprep.subr.bf16.mxu0 0
        %1225 = vmatpush1.bf16.xpose.msra.mxu0 0
        %1226 = vmatprep.subr.bf16.mxu0 0
        %1227 = vmatpush1.bf16.xpose.msra.mxu0 0
        %1228 = vmatprep.subr.bf16.mxu0 0
        %1229 = vmatpush1.bf16.xpose.msra.mxu0 0
        %1230 = vmatprep.subr.bf16.mxu0 0
        %1231 = vmatpush1.bf16.xpose.msra.mxu0 0
        %1232 = vmatprep.subr.bf16.mxu0 0
        %1233 = vmatpush1.bf16.xpose.msra.mxu0 0
        %1234 = vmatprep.subr.bf16.mxu0 0
        %1235 = vmatpush1.bf16.xpose.msra.mxu0 0
        %1236 = vmatprep.subr.bf16.mxu0 0
        %1237 = vmatpush1.bf16.xpose.msra.mxu0 0
        %1238 = vmatprep.subr.bf16.mxu0 0
        %1239 = vmatpush1.bf16.xpose.msra.mxu0 0
        %1240 = vmatprep.subr.bf16.mxu0 0
        %1241 = vmatpush1.bf16.xpose.msra.mxu0 0
        %1242 = vmatprep.subr.bf16.mxu0 0
        %1243 = vmatpush1.bf16.xpose.msra.mxu0 0
        %1244 = vmatprep.subr.bf16.mxu0 0
        %1245 = vmatpush1.bf16.xpose.msra.mxu0 0
        %1246 = vmatprep.subr.bf16.mxu0 0
        %1247 = vmatpush1.bf16.xpose.msra.mxu0 0
        %1248 = vmatprep.subr.bf16.mxu0 0
        %1249 = vmatpush1.bf16.xpose.msra.mxu0 0
        %1250 = vmatprep.subr.bf16.mxu0 0
        %1251 = vmatpush1.bf16.xpose.msra.mxu0 0
        %1252 = vmatprep.mubr.bf16.mxu0 0
        %1253 = vmatmul.mubr.bf16.gmra.mrb[0].mxu0 %v1215
        %v1254 = vpop.f32.mrb[0].mxu0
        %v1255 = vadd.f32 0.0, %v1254
        %v1256 = vpop.f32.mrb[0].mxu0
        %v1257 = vpop.f32.mrb[0].mxu0
        %v1258 = vpop.f32.mrb[0].mxu0
        %1259 = vdwg.mxu0
        %v1260 = vlaneseq
        %v1261 = vshrl.u32 %v1260, 7
        %v1262 = vlaneseq
        %v1263 = vand.u32 %v1262, 127
        %vm1264 = vcmp.ge.s32.totalorder %v1261, %v1263
        %v1265 = vsel %vm1264, 1, 0
        %vm1266 = vcmp.eq.s32.totalorder %v1265, 1
        %v1267 = vsel %vm1266, %v1117, -1e+30
        %v1268 = vsel %vm1266, %v1163, -1e+30
        %v1269 = vsel %vm1266, %v1209, -1e+30
        %v1270 = vsel %vm1266, %v1255, -1e+30
        %v1271 = vsel %vm1075, %v1267, -inf
        %1272 = vmax.xlane.f32.xlu0 %v1271
        %v1273 = vpop.xlane.xlu0 %1272
        %v1274 = vsel %vm1075, %v1268, -inf
        %1275 = vmax.xlane.f32.xlu0 %v1274
        %v1276 = vpop.xlane.xlu0 %1275
        %v1277 = vsel %vm1075, %v1269, -inf
        %1278 = vmax.xlane.f32.xlu0 %v1277
        %v1279 = vpop.xlane.xlu0 %1278
        %v1280 = vsel %vm1075, %v1270, -inf
        %1281 = vmax.xlane.f32.xlu0 %v1280
        %v1282 = vpop.xlane.xlu0 %1281
        %v1283 = vmax.f32 %v1273, -1e+30
        %v1284 = vmax.f32 %v1276, -1e+30
        %v1285 = vmax.f32 %v1279, -1e+30
        %v1286 = vmax.f32 %v1282, -1e+30
        %v1287 = vsub.f32 -1e+30, %v1283
        %v1288 = vsub.f32 -1e+30, %v1284
        %v1289 = vsub.f32 -1e+30, %v1285
        %v1290 = vsub.f32 -1e+30, %v1286
        %v1291 = vmul.f32 %v1287, 1.442695
        %v1292 = vpow.pop %v1291
        %v1293 = vmul.f32 %v1288, 1.442695
        %v1294 = vpow.pop %v1293
        %v1295 = vmul.f32 %v1289, 1.442695
        %v1296 = vpow.pop %v1295
        %v1297 = vmul.f32 %v1290, 1.442695
        %v1298 = vpow.pop %v1297
        %v1299 = vsub.f32 %v1267, %v1283
        %v1300 = vsub.f32 %v1268, %v1284
        %v1301 = vsub.f32 %v1269, %v1285
        %v1302 = vsub.f32 %v1270, %v1286
        %v1303 = vmul.f32 %v1299, 1.442695
        %v1304 = vpow.pop %v1303
        %v1305 = vmul.f32 %v1300, 1.442695
        %v1306 = vpow.pop %v1305
        %v1307 = vmul.f32 %v1301, 1.442695
        %v1308 = vpow.pop %v1307
        %v1309 = vmul.f32 %v1302, 1.442695
        %v1310 = vpow.pop %v1309
        %v1311 = vmul.f32 %v1292, 0.0
        %v1312 = vmul.f32 %v1294, 0.0
        %v1313 = vmul.f32 %v1296, 0.0
        %v1314 = vmul.f32 %v1298, 0.0
        %v1315 = vsel %vm1075, %v1304, 0.0
        %1316 = vadd.xlane.f32.xlu0 %v1315
        %v1317 = vpop.xlane.xlu0 %1316
        %v1318 = vsel %vm1075, %v1306, 0.0
        %1319 = vadd.xlane.f32.xlu0 %v1318
        %v1320 = vpop.xlane.xlu0 %1319
        %v1321 = vsel %vm1075, %v1308, 0.0
        %1322 = vadd.xlane.f32.xlu0 %v1321
        %v1323 = vpop.xlane.xlu0 %1322
        %v1324 = vsel %vm1075, %v1310, 0.0
        %1325 = vadd.xlane.f32.xlu0 %v1324
        %v1326 = vpop.xlane.xlu0 %1325
        %v1327 = vadd.f32 %v1311, %v1317
        %v1328 = vadd.f32 %v1312, %v1320
        %v1329 = vadd.f32 %v1313, %v1323
        %v1330 = vadd.f32 %v1314, %v1326
        %v1331 = vpack.c.bf16 %v1304, %v1304
        %v1332 = vpack.c.bf16 %v1306, %v1306
        %v1333 = vpack.c.bf16 %v1308, %v1308
        %v1334 = vpack.c.bf16 %v1310, %v1310
        %v1336 = vsel %vm1075, %v1331, 0
        %vm1338 = vcmask 1043456
        %v1340 = vsel %vm1338, %v1071, 0
        %1342 = vmatprep.subr.bf16.mxu0 0
        %1343 = vmatpush1.bf16.msra.mxu0 %v1340
        %1344 = vmatprep.subr.bf16.mxu0 0
        %1345 = vmatpush1.bf16.msra.mxu0 0
        %1346 = vmatprep.subr.bf16.mxu0 0
        %1347 = vmatpush1.bf16.msra.mxu0 0
        %1348 = vmatprep.subr.bf16.mxu0 0
        %1349 = vmatpush1.bf16.msra.mxu0 0
        %1350 = vmatprep.subr.bf16.mxu0 0
        %1351 = vmatpush1.bf16.msra.mxu0 0
        %1352 = vmatprep.subr.bf16.mxu0 0
        %1353 = vmatpush1.bf16.msra.mxu0 0
        %1354 = vmatprep.subr.bf16.mxu0 0
        %1355 = vmatpush1.bf16.msra.mxu0 0
        %1356 = vmatprep.subr.bf16.mxu0 0
        %1357 = vmatpush1.bf16.msra.mxu0 0
        %1358 = vmatprep.subr.bf16.mxu0 0
        %1359 = vmatpush1.bf16.msra.mxu0 0
        %1360 = vmatprep.subr.bf16.mxu0 0
        %1361 = vmatpush1.bf16.msra.mxu0 0
        %1362 = vmatprep.subr.bf16.mxu0 0
        %1363 = vmatpush1.bf16.msra.mxu0 0
        %1364 = vmatprep.subr.bf16.mxu0 0
        %1365 = vmatpush1.bf16.msra.mxu0 0
        %1366 = vmatprep.subr.bf16.mxu0 0
        %1367 = vmatpush1.bf16.msra.mxu0 0
        %1368 = vmatprep.subr.bf16.mxu0 0
        %1369 = vmatpush1.bf16.msra.mxu0 0
        %1370 = vmatprep.subr.bf16.mxu0 0
        %1371 = vmatpush1.bf16.msra.mxu0 0
        %1372 = vmatprep.subr.bf16.mxu0 0
        %1373 = vmatpush1.bf16.msra.mxu0 0
        %1374 = vmatprep.mubr.bf16.mxu0 0
        %1375 = vmatmul.mubr.bf16.gmra.mrb[0].mxu0 %v1336
        %v1376 = vpop.f32.mrb[0].mxu0
        %v1377 = vadd.f32 0.0, %v1376
        %v1378 = vpop.f32.mrb[0].mxu0
        %v1379 = vpop.f32.mrb[0].mxu0
        %v1380 = vpop.f32.mrb[0].mxu0
        %1381 = vdwg.mxu0
        %v1383 = vsel %vm1075, %v1332, 0
        %v1386 = vsel %vm1338, %v1072, 0
        %1388 = vmatprep.subr.bf16.mxu0 0
        %1389 = vmatpush1.bf16.msra.mxu0 %v1386
        %1390 = vmatprep.subr.bf16.mxu0 0
        %1391 = vmatpush1.bf16.msra.mxu0 0
        %1392 = vmatprep.subr.bf16.mxu0 0
        %1393 = vmatpush1.bf16.msra.mxu0 0
        %1394 = vmatprep.subr.bf16.mxu0 0
        %1395 = vmatpush1.bf16.msra.mxu0 0
        %1396 = vmatprep.subr.bf16.mxu0 0
        %1397 = vmatpush1.bf16.msra.mxu0 0
        %1398 = vmatprep.subr.bf16.mxu0 0
        %1399 = vmatpush1.bf16.msra.mxu0 0
        %1400 = vmatprep.subr.bf16.mxu0 0
        %1401 = vmatpush1.bf16.msra.mxu0 0
        %1402 = vmatprep.subr.bf16.mxu0 0
        %1403 = vmatpush1.bf16.msra.mxu0 0
        %1404 = vmatprep.subr.bf16.mxu0 0
        %1405 = vmatpush1.bf16.msra.mxu0 0
        %1406 = vmatprep.subr.bf16.mxu0 0
        %1407 = vmatpush1.bf16.msra.mxu0 0
        %1408 = vmatprep.subr.bf16.mxu0 0
        %1409 = vmatpush1.bf16.msra.mxu0 0
        %1410 = vmatprep.subr.bf16.mxu0 0
        %1411 = vmatpush1.bf16.msra.mxu0 0
        %1412 = vmatprep.subr.bf16.mxu0 0
        %1413 = vmatpush1.bf16.msra.mxu0 0
        %1414 = vmatprep.subr.bf16.mxu0 0
        %1415 = vmatpush1.bf16.msra.mxu0 0
        %1416 = vmatprep.subr.bf16.mxu0 0
        %1417 = vmatpush1.bf16.msra.mxu0 0
        %1418 = vmatprep.subr.bf16.mxu0 0
        %1419 = vmatpush1.bf16.msra.mxu0 0
        %1420 = vmatprep.mubr.bf16.mxu0 0
        %1421 = vmatmul.mubr.bf16.gmra.mrb[0].mxu0 %v1383
        %v1422 = vpop.f32.mrb[0].mxu0
        %v1423 = vadd.f32 0.0, %v1422
        %v1424 = vpop.f32.mrb[0].mxu0
        %v1425 = vpop.f32.mrb[0].mxu0
        %v1426 = vpop.f32.mrb[0].mxu0
        %1427 = vdwg.mxu0
        %v1429 = vsel %vm1075, %v1333, 0
        %v1432 = vsel %vm1338, %v1073, 0
        %1434 = vmatprep.subr.bf16.mxu0 0
        %1435 = vmatpush1.bf16.msra.mxu0 %v1432
        %1436 = vmatprep.subr.bf16.mxu0 0
        %1437 = vmatpush1.bf16.msra.mxu0 0
        %1438 = vmatprep.subr.bf16.mxu0 0
        %1439 = vmatpush1.bf16.msra.mxu0 0
        %1440 = vmatprep.subr.bf16.mxu0 0
        %1441 = vmatpush1.bf16.msra.mxu0 0
        %1442 = vmatprep.subr.bf16.mxu0 0
        %1443 = vmatpush1.bf16.msra.mxu0 0
        %1444 = vmatprep.subr.bf16.mxu0 0
        %1445 = vmatpush1.bf16.msra.mxu0 0
        %1446 = vmatprep.subr.bf16.mxu0 0
        %1447 = vmatpush1.bf16.msra.mxu0 0
        %1448 = vmatprep.subr.bf16.mxu0 0
        %1449 = vmatpush1.bf16.msra.mxu0 0
        %1450 = vmatprep.subr.bf16.mxu0 0
        %1451 = vmatpush1.bf16.msra.mxu0 0
        %1452 = vmatprep.subr.bf16.mxu0 0
        %1453 = vmatpush1.bf16.msra.mxu0 0
        %1454 = vmatprep.subr.bf16.mxu0 0
        %1455 = vmatpush1.bf16.msra.mxu0 0
        %1456 = vmatprep.subr.bf16.mxu0 0
        %1457 = vmatpush1.bf16.msra.mxu0 0
        %1458 = vmatprep.subr.bf16.mxu0 0
        %1459 = vmatpush1.bf16.msra.mxu0 0
        %1460 = vmatprep.subr.bf16.mxu0 0
        %1461 = vmatpush1.bf16.msra.mxu0 0
        %1462 = vmatprep.subr.bf16.mxu0 0
        %1463 = vmatpush1.bf16.msra.mxu0 0
        %1464 = vmatprep.subr.bf16.mxu0 0
        %1465 = vmatpush1.bf16.msra.mxu0 0
        %1466 = vmatprep.mubr.bf16.mxu0 0
        %1467 = vmatmul.mubr.bf16.gmra.mrb[0].mxu0 %v1429
        %v1468 = vpop.f32.mrb[0].mxu0
        %v1469 = vadd.f32 0.0, %v1468
        %v1470 = vpop.f32.mrb[0].mxu0
        %v1471 = vpop.f32.mrb[0].mxu0
        %v1472 = vpop.f32.mrb[0].mxu0
        %1473 = vdwg.mxu0
        %v1475 = vsel %vm1075, %v1334, 0
        %v1478 = vsel %vm1338, %v1074, 0
        %1480 = vmatprep.subr.bf16.mxu0 0
        %1481 = vmatpush1.bf16.msra.mxu0 %v1478
        %1482 = vmatprep.subr.bf16.mxu0 0
        %1483 = vmatpush1.bf16.msra.mxu0 0
        %1484 = vmatprep.subr.bf16.mxu0 0
        %1485 = vmatpush1.bf16.msra.mxu0 0
        %1486 = vmatprep.subr.bf16.mxu0 0
        %1487 = vmatpush1.bf16.msra.mxu0 0
        %1488 = vmatprep.subr.bf16.mxu0 0
        %1489 = vmatpush1.bf16.msra.mxu0 0
        %1490 = vmatprep.subr.bf16.mxu0 0
        %1491 = vmatpush1.bf16.msra.mxu0 0
        %1492 = vmatprep.subr.bf16.mxu0 0
        %1493 = vmatpush1.bf16.msra.mxu0 0
        %1494 = vmatprep.subr.bf16.mxu0 0
        %1495 = vmatpush1.bf16.msra.mxu0 0
        %1496 = vmatprep.subr.bf16.mxu0 0
        %1497 = vmatpush1.bf16.msra.mxu0 0
        %1498 = vmatprep.subr.bf16.mxu0 0
        %1499 = vmatpush1.bf16.msra.mxu0 0
        %1500 = vmatprep.subr.bf16.mxu0 0
        %1501 = vmatpush1.bf16.msra.mxu0 0
        %1502 = vmatprep.subr.bf16.mxu0 0
        %1503 = vmatpush1.bf16.msra.mxu0 0
        %1504 = vmatprep.subr.bf16.mxu0 0
        %1505 = vmatpush1.bf16.msra.mxu0 0
        %1506 = vmatprep.subr.bf16.mxu0 0
        %1507 = vmatpush1.bf16.msra.mxu0 0
        %1508 = vmatprep.subr.bf16.mxu0 0
        %1509 = vmatpush1.bf16.msra.mxu0 0
        %1510 = vmatprep.subr.bf16.mxu0 0
        %1511 = vmatpush1.bf16.msra.mxu0 0
        %1512 = vmatprep.mubr.bf16.mxu0 0
        %1513 = vmatmul.mubr.bf16.gmra.mrb[0].mxu0 %v1475
        %v1514 = vpop.f32.mrb[0].mxu0
        %v1515 = vadd.f32 0.0, %v1514
        %v1516 = vpop.f32.mrb[0].mxu0
        %v1517 = vpop.f32.mrb[0].mxu0
        %v1518 = vpop.f32.mrb[0].mxu0
        %1519 = vdwg.mxu0
        %v1520 = vadd.f32 %v1311, %v1377
        %v1521 = vadd.f32 %v1312, %v1423
        %v1522 = vadd.f32 %v1313, %v1469
        %v1523 = vadd.f32 %v1314, %v1515
        %v1524 = vrcp.pop %v1327
        %v1525 = vrcp.pop %v1328
        %v1526 = vrcp.pop %v1329
        %v1527 = vrcp.pop %v1330
        %v1528 = vmul.f32 %v1520, %v1524
        %v1529 = vmul.f32 %v1521, %v1525
        %v1530 = vmul.f32 %v1522, %v1526
        %v1531 = vmul.f32 %v1523, %v1527
        %v1532 = vcombine.low %v1528, %v1530
        %v1533 = vcombine.high %v1528, %v1530
        %v1535 = vunpack.c.l.s4 1983009808
        %v1536 = vunpack.c.0.s8 %v1535
        %v1537 = vlaneseq
        %v1538 = vshrl.u32 %v1537, 7
        %v1539 = vsub.s32 %v1536, %v1538
        %v1540 = vrot.slane %v1532, %v1539
        %v1542 = vunpack.c.l.s4 1983009808
        %v1543 = vunpack.c.0.s8 %v1542
        %v1544 = vlaneseq
        %v1545 = vshrl.u32 %v1544, 7
        %v1546 = vsub.s32 %v1543, %v1545
        %v1547 = vrot.slane %v1533, %v1546
        %v1548 = vcombine.low %v1529, %v1531
        %v1549 = vcombine.high %v1529, %v1531
        %v1551 = vunpack.c.l.s4 1983009808
        %v1552 = vunpack.c.0.s8 %v1551
        %v1553 = vlaneseq
        %v1554 = vshrl.u32 %v1553, 7
        %v1555 = vsub.s32 %v1552, %v1554
        %v1556 = vrot.slane %v1548, %v1555
        %v1558 = vunpack.c.l.s4 1983009808
        %v1559 = vunpack.c.0.s8 %v1558
        %v1560 = vlaneseq
        %v1561 = vshrl.u32 %v1560, 7
        %v1562 = vsub.s32 %v1559, %v1561
        %v1563 = vrot.slane %v1549, %v1562
        %v1564 = vcombine.low %v1540, %v1556
        %v1565 = vcombine.high %v1540, %v1556
        %v1567 = vunpack.c.l.s4 1934713408
        %v1568 = vunpack.c.0.s8 %v1567
        %v1569 = vlaneseq
        %v1570 = vshrl.u32 %v1569, 7
        %v1571 = vsub.s32 %v1568, %v1570
        %v1572 = vrot.slane %v1564, %v1571
        %v1574 = vunpack.c.l.s4 1934713408
        %v1575 = vunpack.c.0.s8 %v1574
        %v1576 = vlaneseq
        %v1577 = vshrl.u32 %v1576, 7
        %v1578 = vsub.s32 %v1575, %v1577
        %v1579 = vrot.slane %v1565, %v1578
        %v1580 = vcombine.low %v1547, %v1563
        %v1581 = vcombine.high %v1547, %v1563
        %v1583 = vunpack.c.l.s4 1934713408
        %v1584 = vunpack.c.0.s8 %v1583
        %v1585 = vlaneseq
        %v1586 = vshrl.u32 %v1585, 7
        %v1587 = vsub.s32 %v1584, %v1586
        %v1588 = vrot.slane %v1580, %v1587
        %v1590 = vunpack.c.l.s4 1934713408
        %v1591 = vunpack.c.0.s8 %v1590
        %v1592 = vlaneseq
        %v1593 = vshrl.u32 %v1592, 7
        %v1594 = vsub.s32 %v1591, %v1593
        %v1595 = vrot.slane %v1581, %v1594
        %v1596 = vcombine.high %v1572, 0.0
        %v1597 = vcombine.high %v1579, 0.0
        %v1598 = vcombine.high %v1588, 0.0
        %v1599 = vcombine.high %v1595, 0.0
        %v1600 = vcombine.low %v1572, %v1579
        %v1602 = vunpack.c.l.s4 1983009808
        %v1603 = vunpack.c.0.s8 %v1602
        %v1604 = vlaneseq
        %v1605 = vshrl.u32 %v1604, 7
        %v1606 = vsub.s32 %v1603, %v1605
        %v1607 = vrot.slane %v1600, %v1606
        %v1608 = vcombine.low %v1596, %v1597
        %v1610 = vunpack.c.l.s4 1983009808
        %v1611 = vunpack.c.0.s8 %v1610
        %v1612 = vlaneseq
        %v1613 = vshrl.u32 %v1612, 7
        %v1614 = vsub.s32 %v1611, %v1613
        %v1615 = vrot.slane %v1608, %v1614
        %v1616 = vcombine.low %v1588, %v1595
        %v1618 = vunpack.c.l.s4 1983009808
        %v1619 = vunpack.c.0.s8 %v1618
        %v1620 = vlaneseq
        %v1621 = vshrl.u32 %v1620, 7
        %v1622 = vsub.s32 %v1619, %v1621
        %v1623 = vrot.slane %v1616, %v1622
        %v1624 = vcombine.low %v1598, %v1599
        %v1626 = vunpack.c.l.s4 1983009808
        %v1627 = vunpack.c.0.s8 %v1626
        %v1628 = vlaneseq
        %v1629 = vshrl.u32 %v1628, 7
        %v1630 = vsub.s32 %v1627, %v1629
        %v1631 = vrot.slane %v1624, %v1630
        %v1632 = vcombine.low %v1607, %v1615
        %v1633 = vcombine.high %v1607, %v1615
        %v1635 = vunpack.c.l.s4 1934713408
        %v1636 = vunpack.c.0.s8 %v1635
        %v1637 = vlaneseq
        %v1638 = vshrl.u32 %v1637, 7
        %v1639 = vsub.s32 %v1636, %v1638
        %v1640 = vrot.slane %v1632, %v1639
        %v1642 = vunpack.c.l.s4 1934713408
        %v1643 = vunpack.c.0.s8 %v1642
        %v1644 = vlaneseq
        %v1645 = vshrl.u32 %v1644, 7
        %v1646 = vsub.s32 %v1643, %v1645
        %v1647 = vrot.slane %v1633, %v1646
        %v1648 = vcombine.low %v1623, %v1631
        %v1649 = vcombine.high %v1623, %v1631
        %v1651 = vunpack.c.l.s4 1934713408
        %v1652 = vunpack.c.0.s8 %v1651
        %v1653 = vlaneseq
        %v1654 = vshrl.u32 %v1653, 7
        %v1655 = vsub.s32 %v1652, %v1654
        %v1656 = vrot.slane %v1648, %v1655
        %v1658 = vunpack.c.l.s4 1934713408
        %v1659 = vunpack.c.0.s8 %v1658
        %v1660 = vlaneseq
        %v1661 = vshrl.u32 %v1660, 7
        %v1662 = vsub.s32 %v1659, %v1661
        %v1663 = vrot.slane %v1649, %v1662
        %v1664 = vcombine.low %v1640, %v1656
        %v1665 = vcombine.high %v1640, %v1656
        %v1666 = vcombine.low %v1647, %v1663
        %v1667 = vcombine.high %v1647, %v1663
        %1669 = vrot.lane.b32.xlu0 %v1665, 8
        %v1670 = vpop.permute.xlu0 %1669
        %1673 = vrot.lane.b32.xlu0 %v1666, 16
        %v1674 = vpop.permute.xlu0 %1673
        %1677 = vrot.lane.b32.xlu0 %v1667, 24
        %v1678 = vpop.permute.xlu0 %1677
        %v1680 = vsel %vm1075, %v1664, %v1670
        %vm1681 = vcmask 130048
        %v1682 = vsel %vm1681, %v1680, %v1674
        %vm1683 = vcmask 195584
        %v1684 = vsel %vm1683, %v1682, %v1678
        %v1685 = vpack.c.bf16 %v1684, %v1684
        %v1686 = vld [vmem:[%s5] sm:$0xf]
        %v1687 = vld [vmem:[%s5 + $0x4] sm:$0xf]
        %v1688 = vld [vmem:[%s5 + $0x8] sm:$0xf]
        %v1689 = vld [vmem:[%s5 + $0xc] sm:$0xf]
        %v1690 = vld [vmem:[%s6] sm:$0x1]
        %v1692 = vlaneseq
        %v1693 = vshrl.u32 %v1692, 7
        %v1694 = vsub.s32 0, %v1693
        %v1695 = vrot.slane %v1690, %v1694
        %v1701 = vunpack.c.l.b16 %v1686
        %v1702 = vunpack.c.l.b16 %v1687
        %v1703 = vunpack.c.l.b16 %v1688
        %v1704 = vunpack.c.l.b16 %v1689
        %v1705 = vpack.c.b16 %v1702, %v1701
        %v1706 = vpack.c.b16 %v1704, %v1703
        %v1710 = vsel %vm512, %v1685, 0
        %1712 = vmatprep.subr.bf16.mxu0 0
        %1713 = vmatpush1.bf16.msra.mxu0 %v1705
        %1714 = vmatprep.subr.bf16.mxu0 0
        %1715 = vmatpush1.bf16.msra.mxu0 %v1706
        %1716 = vmatprep.subr.bf16.mxu0 0
        %1717 = vmatpush1.bf16.msra.mxu0 0
        %1718 = vmatprep.subr.bf16.mxu0 0
        %1719 = vmatpush1.bf16.msra.mxu0 0
        %1720 = vmatprep.subr.bf16.mxu0 0
        %1721 = vmatpush1.bf16.msra.mxu0 0
        %1722 = vmatprep.subr.bf16.mxu0 0
        %1723 = vmatpush1.bf16.msra.mxu0 0
        %1724 = vmatprep.subr.bf16.mxu0 0
        %1725 = vmatpush1.bf16.msra.mxu0 0
        %1726 = vmatprep.subr.bf16.mxu0 0
        %1727 = vmatpush1.bf16.msra.mxu0 0
        %1728 = vmatprep.subr.bf16.mxu0 0
        %1729 = vmatpush1.bf16.msra.mxu0 0
        %1730 = vmatprep.subr.bf16.mxu0 0
        %1731 = vmatpush1.bf16.msra.mxu0 0
        %1732 = vmatprep.subr.bf16.mxu0 0
        %1733 = vmatpush1.bf16.msra.mxu0 0
        %1734 = vmatprep.subr.bf16.mxu0 0
        %1735 = vmatpush1.bf16.msra.mxu0 0
        %1736 = vmatprep.subr.bf16.mxu0 0
        %1737 = vmatpush1.bf16.msra.mxu0 0
        %1738 = vmatprep.subr.bf16.mxu0 0
        %1739 = vmatpush1.bf16.msra.mxu0 0
        %1740 = vmatprep.subr.bf16.mxu0 0
        %1741 = vmatpush1.bf16.msra.mxu0 0
        %1742 = vmatprep.subr.bf16.mxu0 0
        %1743 = vmatpush1.bf16.msra.mxu0 0
        %1744 = vmatprep.mubr.bf16.mxu0 0
        %1745 = vmatmul.mubr.bf16.gmra.mrb[0].mxu0 %v1710
        %v1746 = vpop.f32.mrb[0].mxu0
        %v1747 = vadd.f32 %v1695, %v1746
        %v1748 = vpop.f32.mrb[0].mxu0
        %v1749 = vpop.f32.mrb[0].mxu0
        %v1750 = vpop.f32.mrb[0].mxu0
        %1751 = vdwg.mxu0
        %v1752 = vadd.f32 %v509, %v1747
        %v1753 = vld [vmem:[%s7] sm:$0x1]
        %v1754 = vld [vmem:[%s8] sm:$0x1]
        %v1755 = vsel %vm512, %v1752, 0.0
        %1756 = vadd.xlane.f32.xlu0 %v1755
        %v1757 = vpop.xlane.xlu0 %1756
        %v1758 = vmul.f32 %v1757, %v516
        %v1759 = vsub.f32 %v1752, %v1758
        %v1760 = vmul.f32 %v1759, %v1759
        %v1761 = vsel %vm512, %v1760, 0.0
        %1762 = vadd.xlane.f32.xlu0 %v1761
        %v1763 = vpop.xlane.xlu0 %1762
        %v1764 = vmul.f32 %v1763, %v516
        %v1765 = vadd.f32 %v1764, 1e-05
        %v1766 = vrsqrt.pop %v1765
        %v1767 = vmul.f32 %v1759, %v1766
        %v1769 = vlaneseq
        %v1770 = vshrl.u32 %v1769, 7
        %v1771 = vsub.s32 0, %v1770
        %v1772 = vrot.slane %v1753, %v1771
        %v1774 = vmul.f32 %v1767, %v1772
        %v1776 = vlaneseq
        %v1777 = vshrl.u32 %v1776, 7
        %v1778 = vsub.s32 0, %v1777
        %v1779 = vrot.slane %v1754, %v1778
        %v1781 = vadd.f32 %v1774, %v1779
        %v1782 = vpack.c.bf16 %v1781, %v1781
        %v1783 = vld [vmem:[%s9] sm:$0xf]
        %v1784 = vld [vmem:[%s9 + $0x4] sm:$0xf]
        %v1785 = vld [vmem:[%s9 + $0x8] sm:$0xf]
        %v1786 = vld [vmem:[%s9 + $0xc] sm:$0xf]
        %v1787 = vld [vmem:[%s10] sm:$0x1]
        %v1789 = vlaneseq
        %v1790 = vshrl.u32 %v1789, 7
        %v1791 = vsub.s32 0, %v1790
        %v1792 = vrot.slane %v1787, %v1791
        %v1798 = vunpack.c.l.b16 %v1783
        %v1799 = vunpack.c.l.b16 %v1784
        %v1800 = vunpack.c.l.b16 %v1785
        %v1801 = vunpack.c.l.b16 %v1786
        %v1802 = vpack.c.b16 %v1799, %v1798
        %v1803 = vpack.c.b16 %v1801, %v1800
        %v1807 = vsel %vm512, %v1782, 0
        %1809 = vmatprep.subr.bf16.mxu0 0
        %1810 = vmatpush1.bf16.msra.mxu0 %v1802
        %1811 = vmatprep.subr.bf16.mxu0 0
        %1812 = vmatpush1.bf16.msra.mxu0 %v1803
        %1813 = vmatprep.subr.bf16.mxu0 0
        %1814 = vmatpush1.bf16.msra.mxu0 0
        %1815 = vmatprep.subr.bf16.mxu0 0
        %1816 = vmatpush1.bf16.msra.mxu0 0
        %1817 = vmatprep.subr.bf16.mxu0 0
        %1818 = vmatpush1.bf16.msra.mxu0 0
        %1819 = vmatprep.subr.bf16.mxu0 0
        %1820 = vmatpush1.bf16.msra.mxu0 0
        %1821 = vmatprep.subr.bf16.mxu0 0
        %1822 = vmatpush1.bf16.msra.mxu0 0
        %1823 = vmatprep.subr.bf16.mxu0 0
        %1824 = vmatpush1.bf16.msra.mxu0 0
        %1825 = vmatprep.subr.bf16.mxu0 0
        %1826 = vmatpush1.bf16.msra.mxu0 0
        %1827 = vmatprep.subr.bf16.mxu0 0
        %1828 = vmatpush1.bf16.msra.mxu0 0
        %1829 = vmatprep.subr.bf16.mxu0 0
        %1830 = vmatpush1.bf16.msra.mxu0 0
        %1831 = vmatprep.subr.bf16.mxu0 0
        %1832 = vmatpush1.bf16.msra.mxu0 0
        %1833 = vmatprep.subr.bf16.mxu0 0
        %1834 = vmatpush1.bf16.msra.mxu0 0
        %1835 = vmatprep.subr.bf16.mxu0 0
        %1836 = vmatpush1.bf16.msra.mxu0 0
        %1837 = vmatprep.subr.bf16.mxu0 0
        %1838 = vmatpush1.bf16.msra.mxu0 0
        %1839 = vmatprep.subr.bf16.mxu0 0
        %1840 = vmatpush1.bf16.msra.mxu0 0
        %1841 = vmatprep.mubr.bf16.mxu0 0
        %1842 = vmatmul.mubr.bf16.gmra.mrb[0].mxu0 %v1807
        %v1843 = vpop.f32.mrb[0].mxu0
        %v1844 = vadd.f32 %v1792, %v1843
        %v1845 = vpop.f32.mrb[0].mxu0
        %v1846 = vpop.f32.mrb[0].mxu0
        %v1847 = vpop.f32.mrb[0].mxu0
        %1848 = vdwg.mxu0
        %v1849 = vmul.f32 %v1844, 0.5
        %v1850 = vmul.f32 %v1844, 0.70710677
        %v1851 = verf.f32.pop %v1850
        %v1852 = vadd.f32 %v1851, 1.0
        %v1853 = vmul.f32 %v1849, %v1852
        %v1854 = vpack.c.bf16 %v1853, %v1853
        %v1855 = vld [vmem:[%s11] sm:$0xf]
        %v1856 = vld [vmem:[%s11 + $0x4] sm:$0xf]
        %v1857 = vld [vmem:[%s11 + $0x8] sm:$0xf]
        %v1858 = vld [vmem:[%s11 + $0xc] sm:$0xf]
        %v1859 = vld [vmem:[%s11 + $0x10] sm:$0xf]
        %v1860 = vld [vmem:[%s11 + $0x14] sm:$0xf]
        %v1861 = vld [vmem:[%s11 + $0x18] sm:$0xf]
        %v1862 = vld [vmem:[%s11 + $0x1c] sm:$0xf]
        %v1863 = vld [vmem:[%s11 + $0x20] sm:$0xf]
        %v1864 = vld [vmem:[%s11 + $0x24] sm:$0xf]
        %v1865 = vld [vmem:[%s11 + $0x28] sm:$0xf]
        %v1866 = vld [vmem:[%s11 + $0x2c] sm:$0xf]
        %v1867 = vld [vmem:[%s11 + $0x30] sm:$0xf]
        %v1868 = vld [vmem:[%s11 + $0x34] sm:$0xf]
        %v1869 = vld [vmem:[%s11 + $0x38] sm:$0xf]
        %v1870 = vld [vmem:[%s11 + $0x3c] sm:$0xf]
        %v1871 = vld [vmem:[%s12] sm:$0x1]
        %v1873 = vlaneseq
        %v1874 = vshrl.u32 %v1873, 7
        %v1875 = vsub.s32 0, %v1874
        %v1876 = vrot.slane %v1871, %v1875
        %v1894 = vunpack.c.l.b16 %v1855
        %v1895 = vunpack.c.l.b16 %v1856
        %v1896 = vunpack.c.l.b16 %v1857
        %v1897 = vunpack.c.l.b16 %v1858
        %v1898 = vunpack.c.l.b16 %v1859
        %v1899 = vunpack.c.l.b16 %v1860
        %v1900 = vunpack.c.l.b16 %v1861
        %v1901 = vunpack.c.l.b16 %v1862
        %v1902 = vunpack.c.l.b16 %v1863
        %v1903 = vunpack.c.l.b16 %v1864
        %v1904 = vunpack.c.l.b16 %v1865
        %v1905 = vunpack.c.l.b16 %v1866
        %v1906 = vunpack.c.l.b16 %v1867
        %v1907 = vunpack.c.l.b16 %v1868
        %v1908 = vunpack.c.l.b16 %v1869
        %v1909 = vunpack.c.l.b16 %v1870
        %v1910 = vpack.c.b16 %v1895, %v1894
        %v1911 = vpack.c.b16 %v1897, %v1896
        %v1912 = vpack.c.b16 %v1899, %v1898
        %v1913 = vpack.c.b16 %v1901, %v1900
        %v1914 = vpack.c.b16 %v1903, %v1902
        %v1915 = vpack.c.b16 %v1905, %v1904
        %v1916 = vpack.c.b16 %v1907, %v1906
        %v1917 = vpack.c.b16 %v1909, %v1908
        %1926 = vmatprep.subr.bf16.mxu0 0
        %1927 = vmatpush1.bf16.msra.mxu0 %v1910
        %1928 = vmatprep.subr.bf16.mxu0 0
        %1929 = vmatpush1.bf16.msra.mxu0 %v1911
        %1930 = vmatprep.subr.bf16.mxu0 0
        %1931 = vmatpush1.bf16.msra.mxu0 %v1912
        %1932 = vmatprep.subr.bf16.mxu0 0
        %1933 = vmatpush1.bf16.msra.mxu0 %v1913
        %1934 = vmatprep.subr.bf16.mxu0 0
        %1935 = vmatpush1.bf16.msra.mxu0 %v1914
        %1936 = vmatprep.subr.bf16.mxu0 0
        %1937 = vmatpush1.bf16.msra.mxu0 %v1915
        %1938 = vmatprep.subr.bf16.mxu0 0
        %1939 = vmatpush1.bf16.msra.mxu0 %v1916
        %1940 = vmatprep.subr.bf16.mxu0 0
        %1941 = vmatpush1.bf16.msra.mxu0 %v1917
        %1942 = vmatprep.subr.bf16.mxu0 0
        %1943 = vmatpush1.bf16.msra.mxu0 0
        %1944 = vmatprep.subr.bf16.mxu0 0
        %1945 = vmatpush1.bf16.msra.mxu0 0
        %1946 = vmatprep.subr.bf16.mxu0 0
        %1947 = vmatpush1.bf16.msra.mxu0 0
        %1948 = vmatprep.subr.bf16.mxu0 0
        %1949 = vmatpush1.bf16.msra.mxu0 0
        %1950 = vmatprep.subr.bf16.mxu0 0
        %1951 = vmatpush1.bf16.msra.mxu0 0
        %1952 = vmatprep.subr.bf16.mxu0 0
        %1953 = vmatpush1.bf16.msra.mxu0 0
        %1954 = vmatprep.subr.bf16.mxu0 0
        %1955 = vmatpush1.bf16.msra.mxu0 0
        %1956 = vmatprep.subr.bf16.mxu0 0
        %1957 = vmatpush1.bf16.msra.mxu0 0
        %1958 = vmatprep.mubr.bf16.mxu0 0
        %1959 = vmatmul.mubr.bf16.gmra.mrb[0].mxu0 %v1854
        %v1960 = vpop.f32.mrb[0].mxu0
        %v1961 = vadd.f32 %v1876, %v1960
        %v1962 = vpop.f32.mrb[0].mxu0
        %v1963 = vpop.f32.mrb[0].mxu0
        %v1964 = vpop.f32.mrb[0].mxu0
        %1965 = vdwg.mxu0
        %v1966 = vadd.f32 %v1752, %v1961
        %1967 = vst.msk [vmem:[%s489] sm:$0xff] %vm512, %v1966
        %s1968 = sand.u32 %s319, 1
        %s1969 = scalar_lea.sflag [#allocation3], %s1968
        %s1970 = sand.u32 %s319, 1
        %s1971 = smul.addr %s1970, 8
        %s1972 = scalar_lea.vmem [#allocation2], %s1971
        %s1973 = sand.u32 %s33, 1
        %s1974 = scalar_lea.sflag [#allocation5], %s1973
        %s1975 = sand.u32 %s345, 1
        %s1976 = smul.addr %s1975, 4
        %s1977 = scalar_lea.vmem [#allocation4], %s1976
        %s1978 = sand.u32 %s33, 1
        %s1979 = scalar_lea.sflag [#allocation5], %s1978
        %s1980 = sand.u32 %s371, 1
        %s1981 = smul.addr %s1980, 4
        %s1982 = scalar_lea.vmem [#allocation6], %s1981
        // Predicated region
        $region73: #{tpu_custom_call.1} parent=71 // pred_check
          %p1983 = pneg %p329
        $region74: #{tpu_custom_call.1} parent=71 // pred_check_branch
          %1985 = sbr.rel (%p1983) target = $region76
        $region75: #{tpu_custom_call.1} parent=71 // pred_region
          %s1987 = ssub.s32 128, 128
          %1988 = vsyncadd %s1969, %s1987
          %s1989 = smul.addr %s33, 128
          %s1990 = scalar_lea.hbm %s13, %s1989
          %s1992 = sshll.u32 %s1972, 4
          %s1993 = int_to_ptr.vmem [resolvable:$true] %s1992
          %1995 = dma.vmem_to_hbm [thread:$0]  %s1993, 128, %s1990, %s1969
        $region76: #{tpu_custom_call.1} parent=71 // pred_fallthru
          _
        // Predicated region
        $region77: #{tpu_custom_call.1} parent=71 // pred_check
          %p1996 = pneg %p355
        $region78: #{tpu_custom_call.1} parent=71 // pred_check_branch
          %1998 = sbr.rel (%p1996) target = $region80
        $region79: #{tpu_custom_call.1} parent=71 // pred_region
          %s2000 = ssub.s32 64, 64
          %2001 = vsyncadd %s1974, %s2000
          %s2002 = smul.addr %s33, 64
          %s2003 = scalar_lea.hbm %s14, %s2002
          %s2005 = sshll.u32 %s1977, 4
          %s2006 = int_to_ptr.vmem [resolvable:$true] %s2005
          %2008 = dma.vmem_to_hbm [thread:$0]  %s2006, 64, %s2003, %s1974
        $region80: #{tpu_custom_call.1} parent=71 // pred_fallthru
          _
        // Predicated region
        $region81: #{tpu_custom_call.1} parent=71 // pred_check
          %p2009 = pneg %p381
        $region82: #{tpu_custom_call.1} parent=71 // pred_check_branch
          %2011 = sbr.rel (%p2009) target = $region84
        $region83: #{tpu_custom_call.1} parent=71 // pred_region
          %s2013 = ssub.s32 64, 64
          %2014 = vsyncadd %s1979, %s2013
          %s2015 = smul.addr %s33, 64
          %s2016 = scalar_lea.hbm %s15, %s2015
          %s2018 = sshll.u32 %s1982, 4
          %s2019 = int_to_ptr.vmem [resolvable:$true] %s2018
          %2021 = dma.vmem_to_hbm [thread:$0]  %s2019, 64, %s2016, %s1979
        $region84: #{tpu_custom_call.1} parent=71 // pred_fallthru
          _
      $region72: #{tpu_custom_call.1} parent=5 // pred_fallthru
        _
      %p2022 = scmp.le.s32.totalorder 2, %s28
      // Predicated region
      $region85: #{tpu_custom_call.1} parent=5 // pred_check
        %p2023 = pneg %p2022
      $region86: #{tpu_custom_call.1} parent=5 // pred_check_branch
        %2025 = sbr.rel (%p2023) target = $region88
      $region87: #{tpu_custom_call.1} parent=5 // pred_region
        %s2026 = ssub.s32 %s28, 2
        // Predicated region
        $region89: #{tpu_custom_call.1} parent=87 // pred_check
          %p2027 = pneg %p335
        $region90: #{tpu_custom_call.1} parent=87 // pred_check_branch
          %2029 = sbr.rel (%p2027) target = $region92
        $region91: #{tpu_custom_call.1} parent=87 // pred_region
          %s2030 = sand.u32 %s320, 1
          %s2031 = scalar_lea.sflag [#allocation3], %s2030
          %s2032 = sand.u32 %s320, 1
          %s2033 = smul.addr %s2032, 8
          %s2034 = scalar_lea.vmem [#allocation2], %s2033
          %2035 = dma.done %s2031, 128
        $region92: #{tpu_custom_call.1} parent=87 // pred_fallthru
          _
        // Predicated region
        $region93: #{tpu_custom_call.1} parent=87 // pred_check
          %p2036 = pneg %p361
        $region94: #{tpu_custom_call.1} parent=87 // pred_check_branch
          %2038 = sbr.rel (%p2036) target = $region96
        $region95: #{tpu_custom_call.1} parent=87 // pred_region
          %s2039 = sand.u32 %s34, 1
          %s2040 = scalar_lea.sflag [#allocation5], %s2039
          %s2041 = sand.u32 %s346, 1
          %s2042 = smul.addr %s2041, 4
          %s2043 = scalar_lea.vmem [#allocation4], %s2042
          %2044 = dma.done %s2040, 64
        $region96: #{tpu_custom_call.1} parent=87 // pred_fallthru
          _
        // Predicated region
        $region97: #{tpu_custom_call.1} parent=87 // pred_check
          %p2045 = pneg %p387
        $region98: #{tpu_custom_call.1} parent=87 // pred_check_branch
          %2047 = sbr.rel (%p2045) target = $region100
        $region99: #{tpu_custom_call.1} parent=87 // pred_region
          %s2048 = sand.u32 %s34, 1
          %s2049 = scalar_lea.sflag [#allocation5], %s2048
          %s2050 = sand.u32 %s372, 1
          %s2051 = smul.addr %s2050, 4
          %s2052 = scalar_lea.vmem [#allocation6], %s2051
          %2053 = dma.done %s2049, 64
        $region100: #{tpu_custom_call.1} parent=87 // pred_fallthru
          _
      $region88: #{tpu_custom_call.1} parent=5 // pred_fallthru
        _
    $region6: #{tpu_custom_call.1} parent=1 // loop_footer
      %s32 = sadd.s32 1, %s28
    $region7: #{tpu_custom_call.1} parent=1 // loop_footer_branch
      %27 = sbr.rel target = $region3
    $region8: #{tpu_custom_call.1} parent=1 // loop_exit
      _
    %2054 = vsyncpa [#allocation3], 1
    %s2055 = scalar_lea.sflag [#allocation3], 1
    %2056 = vsyncpa %s2055, 1
    %2057 = vsyncpa [#allocation5], 1
    %s2058 = scalar_lea.sflag [#allocation5], 1
    %2059 = vsyncpa %s2058, 1

// kernel: tpu_custom_call.1
$region0: #{tpu_custom_call.1}
  #allocation0 [shape = 'u32[]', space=smem, size = 0x4, offset = 0x4, fixed_abs, tag = 'smem constant byte address 0x4 - core index']
  #allocation1 [shape = 'u32[144,128]{1,0:T(1,128)}', space=vmem, size = 0x12000, scoped, tag = 'internal scratch']
  %s0 = inlined_call_operand.vmem [shape: f32[2,8,32], index: 0, kind: input, shape index: {}]
  %s1 = inlined_call_operand.vmem [shape: f32[1,32], index: 1, kind: input, shape index: {}]
  %s2 = inlined_call_operand.vmem [shape: f32[1,32], index: 2, kind: input, shape index: {}]
  %s3 = inlined_call_operand.vmem [shape: bf16[32,96], index: 3, kind: input, shape index: {}]
  %s4 = inlined_call_operand.vmem [shape: f32[1,96], index: 4, kind: input, shape index: {}]
  %s5 = inlined_call_operand.vmem [shape: bf16[32,32], index: 5, kind: input, shape index: {}]
  %s6 = inlined_call_operand.vmem [shape: f32[1,32], index: 6, kind: input, shape index: {}]
  %s7 = inlined_call_operand.vmem [shape: f32[1,32], index: 7, kind: input, shape index: {}]
  %s8 = inlined_call_operand.vmem [shape: f32[1,32], index: 8, kind: input, shape index: {}]
  %s9 = inlined_call_operand.vmem [shape: bf16[32,128], index: 9, kind: input, shape index: {}]
  %s10 = inlined_call_operand.vmem [shape: f32[1,128], index: 10, kind: input, shape index: {}]
  %s11 = inlined_call_operand.vmem [shape: bf16[128,32], index: 11, kind: input, shape index: {}]
  %s12 = inlined_call_operand.vmem [shape: f32[1,32], index: 12, kind: input, shape index: {}]
  %s13 = inlined_call_operand.hbm [shape: f32[2,8,32], index: 13, kind: output, shape index: {0}]
  %s14 = inlined_call_operand.hbm [shape: bf16[2,8,32], index: 14, kind: output, shape index: {1}]
  %s15 = inlined_call_operand.hbm [shape: bf16[2,8,32], index: 15, kind: output, shape index: {2}]
  %16 = xla_tuple %s13, %s14, %s15
  %s17 = sld [smem:[#allocation0]]
  $region101: #{tpu_custom_call.1} parent=0
    _
  %s19 = ssub.s32 1, %s17
  %s20 = scalar_select 0, %s19, %s17
  $region1: #{tpu_custom_call.1} parent=0
    #allocation2 [shape = 'u8[8192]{0}', space=vmem, size = 0x2000, scoped, tag = 'output window, operand 0']
    #allocation3 [shape = 's32[2]{0}', space=sflag, size = 0x8, scoped, tag = 'scoped memory for tpu_custom_call.1']
    #allocation4 [shape = 'u8[4096]{0}', space=vmem, size = 0x1000, scoped, tag = 'output window, operand 1']
    #allocation5 [shape = 's32[2]{0}', space=sflag, size = 0x8, scoped, tag = 'scoped memory for tpu_custom_call.1']
    #allocation6 [shape = 'u8[4096]{0}', space=vmem, size = 0x1000, scoped, tag = 'output window, operand 2']
    %21 = vsyncpa [#allocation3], 0
    %s22 = scalar_lea.sflag [#allocation3], 1
    %23 = vsyncpa %s22, 0
    %24 = vsyncpa [#allocation5], 0
    %s25 = scalar_lea.sflag [#allocation5], 1
    %26 = vsyncpa %s25, 0
    loop: start=0, step=1, limit=4
    $region2: #{tpu_custom_call.1} parent=1 // loop_pre_header
      _
    $region3: #{tpu_custom_call.1} parent=1 // loop_header
      %s28 = sphi 0, %s32
      %p29 = scmp.ge.s32.totalorder %s28, 4
      %s38 = sphi 0, %s40
      %s41 = sphi 0, %s38
      %s42 = sphi 0, %s41
      %s58 = sphi 0, %s42
      %s62 = sphi 0, %s62
      %s64 = sphi 0, %s62
      %s65 = sphi 0, %s64
      %s79 = sphi 0, %s65
      %s83 = sphi 0, %s83
      %s85 = sphi 0, %s83
      %s86 = sphi 0, %s85
      %s100 = sphi 0, %s86
      %s104 = sphi 0, %s104
      %s106 = sphi 0, %s104
      %s107 = sphi 0, %s106
      %s121 = sphi 0, %s107
      %s125 = sphi 0, %s125
      %s127 = sphi 0, %s125
      %s128 = sphi 0, %s127
      %s142 = sphi 0, %s128
      %s146 = sphi 0, %s146
      %s148 = sphi 0, %s146
      %s149 = sphi 0, %s148
      %s163 = sphi 0, %s149
      %s167 = sphi 0, %s167
      %s169 = sphi 0, %s167
      %s170 = sphi 0, %s169
      %s184 = sphi 0, %s170
      %s188 = sphi 0, %s188
      %s190 = sphi 0, %s188
      %s191 = sphi 0, %s190
      %s205 = sphi 0, %s191
      %s209 = sphi 0, %s209
      %s211 = sphi 0, %s209
      %s212 = sphi 0, %s211
      %s226 = sphi 0, %s212
      %s230 = sphi 0, %s230
      %s232 = sphi 0, %s230
      %s233 = sphi 0, %s232
      %s247 = sphi 0, %s233
      %s251 = sphi 0, %s251
      %s253 = sphi 0, %s251
      %s254 = sphi 0, %s253
      %s268 = sphi 0, %s254
      %s272 = sphi 0, %s272
      %s274 = sphi 0, %s272
      %s275 = sphi 0, %s274
      %s289 = sphi 0, %s275
      %s293 = sphi 0, %s293
      %s295 = sphi 0, %s293
      %s296 = sphi 0, %s295
      %s310 = sphi 0, %s296
      %s316 = sphi 0, %s318
      %s319 = sphi 0, %s316
      %s320 = sphi 0, %s319
      %s336 = sphi 0, %s320
      %s342 = sphi 0, %s344
      %s345 = sphi 0, %s342
      %s346 = sphi 0, %s345
      %s362 = sphi 0, %s346
      %s368 = sphi 0, %s370
      %s371 = sphi 0, %s368
      %s372 = sphi 0, %s371
      %s388 = sphi 0, %s372
    $region4: #{tpu_custom_call.1} parent=1 // loop_header_branch
      %31 = sbr.rel (%p29) target = $region8
    $region5: #{tpu_custom_call.1} parent=1 // loop_body
      %s33 = ssub.s32 %s28, 1
      %s34 = ssub.s32 %s28, 2
      %s35 = sadd.s32 %s28, 1
      %s36 = ssub.s32 %s28, %s35
      %p37 = scmp.eq.s32.totalorder %s36, 0
      %s39 = sadd.s32 %s38, 1
      %s40 = scalar_select %p37, %s38, %s39
      %p43 = pneg %p37
      %p44 = scmp.eq.s32.totalorder %s28, 1
      %p45 = por %p43, %p44
      %p46 = scmp.ne.s32.totalorder %s38, %s41
      %p47 = scmp.eq.s32.totalorder %s28, 0
      %p48 = por %p46, %p47
      %p49 = scmp.ne.s32.totalorder %s38, %s41
      %p50 = scmp.eq.s32.totalorder %s33, 1
      %p51 = por %p49, %p50
      %p52 = scmp.ne.s32.totalorder %s41, %s42
      %p53 = scmp.eq.s32.totalorder %s33, 0
      %p54 = por %p52, %p53
      %p55 = scmp.ne.s32.totalorder %s41, %s42
      %p56 = scmp.eq.s32.totalorder %s34, 1
      %p57 = por %p55, %p56
      %p59 = scmp.ne.s32.totalorder %s42, %s58
      %p60 = scmp.eq.s32.totalorder %s34, 0
      %p61 = por %p59, %p60
      %s63 = sadd.s32 %s62, 1
      %p66 = scmp.eq.s32.totalorder %s28, 1
      %p67 = scmp.ne.s32.totalorder %s62, %s64
      %p68 = scmp.eq.s32.totalorder %s28, 0
      %p69 = por %p67, %p68
      %p70 = scmp.ne.s32.totalorder %s62, %s64
      %p71 = scmp.eq.s32.totalorder %s33, 1
      %p72 = por %p70, %p71
      %p73 = scmp.ne.s32.totalorder %s64, %s65
      %p74 = scmp.eq.s32.totalorder %s33, 0
      %p75 = por %p73, %p74
      %p76 = scmp.ne.s32.totalorder %s64, %s65
      %p77 = scmp.eq.s32.totalorder %s34, 1
      %p78 = por %p76, %p77
      %p80 = scmp.ne.s32.totalorder %s65, %s79
      %p81 = scmp.eq.s32.totalorder %s34, 0
      %p82 = por %p80, %p81
      %s84 = sadd.s32 %s83, 1
      %p87 = scmp.eq.s32.totalorder %s28, 1
      %p88 = scmp.ne.s32.totalorder %s83, %s85
      %p89 = scmp.eq.s32.totalorder %s28, 0
      %p90 = por %p88, %p89
      %p91 = scmp.ne.s32.totalorder %s83, %s85
      %p92 = scmp.eq.s32.totalorder %s33, 1
      %p93 = por %p91, %p92
      %p94 = scmp.ne.s32.totalorder %s85, %s86
      %p95 = scmp.eq.s32.totalorder %s33, 0
      %p96 = por %p94, %p95
      %p97 = scmp.ne.s32.totalorder %s85, %s86
      %p98 = scmp.eq.s32.totalorder %s34, 1
      %p99 = por %p97, %p98
      %p101 = scmp.ne.s32.totalorder %s86, %s100
      %p102 = scmp.eq.s32.totalorder %s34, 0
      %p103 = por %p101, %p102
      %s105 = sadd.s32 %s104, 1
      %p108 = scmp.eq.s32.totalorder %s28, 1
      %p109 = scmp.ne.s32.totalorder %s104, %s106
      %p110 = scmp.eq.s32.totalorder %s28, 0
      %p111 = por %p109, %p110
      %p112 = scmp.ne.s32.totalorder %s104, %s106
      %p113 = scmp.eq.s32.totalorder %s33, 1
      %p114 = por %p112, %p113
      %p115 = scmp.ne.s32.totalorder %s106, %s107
      %p116 = scmp.eq.s32.totalorder %s33, 0
      %p117 = por %p115, %p116
      %p118 = scmp.ne.s32.totalorder %s106, %s107
      %p119 = scmp.eq.s32.totalorder %s34, 1
      %p120 = por %p118, %p119
      %p122 = scmp.ne.s32.totalorder %s107, %s121
      %p123 = scmp.eq.s32.totalorder %s34, 0
      %p124 = por %p122, %p123
      %s126 = sadd.s32 %s125, 1
      %p129 = scmp.eq.s32.totalorder %s28, 1
      %p130 = scmp.ne.s32.totalorder %s125, %s127
      %p131 = scmp.eq.s32.totalorder %s28, 0
      %p132 = por %p130, %p131
      %p133 = scmp.ne.s32.totalorder %s125, %s127
      %p134 = scmp.eq.s32.totalorder %s33, 1
      %p135 = por %p133, %p134
      %p136 = scmp.ne.s32.totalorder %s127, %s128
      %p137 = scmp.eq.s32.totalorder %s33, 0
      %p138 = por %p136, %p137
      %p139 = scmp.ne.s32.totalorder %s127, %s128
      %p140 = scmp.eq.s32.totalorder %s34, 1
      %p141 = por %p139, %p140
      %p143 = scmp.ne.s32.totalorder %s128, %s142
      %p144 = scmp.eq.s32.totalorder %s34, 0
      %p145 = por %p143, %p144
      %s147 = sadd.s32 %s146, 1
      %p150 = scmp.eq.s32.totalorder %s28, 1
      %p151 = scmp.ne.s32.totalorder %s146, %s148
      %p152 = scmp.eq.s32.totalorder %s28, 0
      %p153 = por %p151, %p152
      %p154 = scmp.ne.s32.totalorder %s146, %s148
      %p155 = scmp.eq.s32.totalorder %s33, 1
      %p156 = por %p154, %p155
      %p157 = scmp.ne.s32.totalorder %s148, %s149
      %p158 = scmp.eq.s32.totalorder %s33, 0
      %p159 = por %p157, %p158
      %p160 = scmp.ne.s32.totalorder %s148, %s149
      %p161 = scmp.eq.s32.totalorder %s34, 1
      %p162 = por %p160, %p161
      %p164 = scmp.ne.s32.totalorder %s149, %s163
      %p165 = scmp.eq.s32.totalorder %s34, 0
      %p166 = por %p164, %p165
      %s168 = sadd.s32 %s167, 1
      %p171 = scmp.eq.s32.totalorder %s28, 1
      %p172 = scmp.ne.s32.totalorder %s167, %s169
      %p173 = scmp.eq.s32.totalorder %s28, 0
      %p174 = por %p172, %p173
      %p175 = scmp.ne.s32.totalorder %s167, %s169
      %p176 = scmp.eq.s32.totalorder %s33, 1
      %p177 = por %p175, %p176
      %p178 = scmp.ne.s32.totalorder %s169, %s170
      %p179 = scmp.eq.s32.totalorder %s33, 0
      %p180 = por %p178, %p179
      %p181 = scmp.ne.s32.totalorder %s169, %s170
      %p182 = scmp.eq.s32.totalorder %s34, 1
      %p183 = por %p181, %p182
      %p185 = scmp.ne.s32.totalorder %s170, %s184
      %p186 = scmp.eq.s32.totalorder %s34, 0
      %p187 = por %p185, %p186
      %s189 = sadd.s32 %s188, 1
      %p192 = scmp.eq.s32.totalorder %s28, 1
      %p193 = scmp.ne.s32.totalorder %s188, %s190
      %p194 = scmp.eq.s32.totalorder %s28, 0
      %p195 = por %p193, %p194
      %p196 = scmp.ne.s32.totalorder %s188, %s190
      %p197 = scmp.eq.s32.totalorder %s33, 1
      %p198 = por %p196, %p197
      %p199 = scmp.ne.s32.totalorder %s190, %s191
      %p200 = scmp.eq.s32.totalorder %s33, 0
      %p201 = por %p199, %p200
      %p202 = scmp.ne.s32.totalorder %s190, %s191
      %p203 = scmp.eq.s32.totalorder %s34, 1
      %p204 = por %p202, %p203
      %p206 = scmp.ne.s32.totalorder %s191, %s205
      %p207 = scmp.eq.s32.totalorder %s34, 0
      %p208 = por %p206, %p207
      %s210 = sadd.s32 %s209, 1
      %p213 = scmp.eq.s32.totalorder %s28, 1
      %p214 = scmp.ne.s32.totalorder %s209, %s211
      %p215 = scmp.eq.s32.totalorder %s28, 0
      %p216 = por %p214, %p215
      %p217 = scmp.ne.s32.totalorder %s209, %s211
      %p218 = scmp.eq.s32.totalorder %s33, 1
      %p219 = por %p217, %p218
      %p220 = scmp.ne.s32.totalorder %s211, %s212
      %p221 = scmp.eq.s32.totalorder %s33, 0
      %p222 = por %p220, %p221
      %p223 = scmp.ne.s32.totalorder %s211, %s212
      %p224 = scmp.eq.s32.totalorder %s34, 1
      %p225 = por %p223, %p224
      %p227 = scmp.ne.s32.totalorder %s212, %s226
      %p228 = scmp.eq.s32.totalorder %s34, 0
      %p229 = por %p227, %p228
      %s231 = sadd.s32 %s230, 1
      %p234 = scmp.eq.s32.totalorder %s28, 1
      %p235 = scmp.ne.s32.totalorder %s230, %s232
      %p236 = scmp.eq.s32.totalorder %s28, 0
      %p237 = por %p235, %p236
      %p238 = scmp.ne.s32.totalorder %s230, %s232
      %p239 = scmp.eq.s32.totalorder %s33, 1
      %p240 = por %p238, %p239
      %p241 = scmp.ne.s32.totalorder %s232, %s233
      %p242 = scmp.eq.s32.totalorder %s33, 0
      %p243 = por %p241, %p242
      %p244 = scmp.ne.s32.totalorder %s232, %s233
      %p245 = scmp.eq.s32.totalorder %s34, 1
      %p246 = por %p244, %p245
      %p248 = scmp.ne.s32.totalorder %s233, %s247
      %p249 = scmp.eq.s32.totalorder %s34, 0
      %p250 = por %p248, %p249
      %s252 = sadd.s32 %s251, 1
      %p255 = scmp.eq.s32.totalorder %s28, 1
      %p256 = scmp.ne.s32.totalorder %s251, %s253
      %p257 = scmp.eq.s32.totalorder %s28, 0
      %p258 = por %p256, %p257
      %p259 = scmp.ne.s32.totalorder %s251, %s253
      %p260 = scmp.eq.s32.totalorder %s33, 1
      %p261 = por %p259, %p260
      %p262 = scmp.ne.s32.totalorder %s253, %s254
      %p263 = scmp.eq.s32.totalorder %s33, 0
      %p264 = por %p262, %p263
      %p265 = scmp.ne.s32.totalorder %s253, %s254
      %p266 = scmp.eq.s32.totalorder %s34, 1
      %p267 = por %p265, %p266
      %p269 = scmp.ne.s32.totalorder %s254, %s268
      %p270 = scmp.eq.s32.totalorder %s34, 0
      %p271 = por %p269, %p270
      %s273 = sadd.s32 %s272, 1
      %p276 = scmp.eq.s32.totalorder %s28, 1
      %p277 = scmp.ne.s32.totalorder %s272, %s274
      %p278 = scmp.eq.s32.totalorder %s28, 0
      %p279 = por %p277, %p278
      %p280 = scmp.ne.s32.totalorder %s272, %s274
      %p281 = scmp.eq.s32.totalorder %s33, 1
      %p282 = por %p280, %p281
      %p283 = scmp.ne.s32.totalorder %s274, %s275
      %p284 = scmp.eq.s32.totalorder %s33, 0
      %p285 = por %p283, %p284
      %p286 = scmp.ne.s32.totalorder %s274, %s275
      %p287 = scmp.eq.s32.totalorder %s34, 1
      %p288 = por %p286, %p287
      %p290 = scmp.ne.s32.totalorder %s275, %s289
      %p291 = scmp.eq.s32.totalorder %s34, 0
      %p292 = por %p290, %p291
      %s294 = sadd.s32 %s293, 1
      %p297 = scmp.eq.s32.totalorder %s28, 1
      %p298 = scmp.ne.s32.totalorder %s293, %s295
      %p299 = scmp.eq.s32.totalorder %s28, 0
      %p300 = por %p298, %p299
      %p301 = scmp.ne.s32.totalorder %s293, %s295
      %p302 = scmp.eq.s32.totalorder %s33, 1
      %p303 = por %p301, %p302
      %p304 = scmp.ne.s32.totalorder %s295, %s296
      %p305 = scmp.eq.s32.totalorder %s33, 0
      %p306 = por %p304, %p305
      %p307 = scmp.ne.s32.totalorder %s295, %s296
      %p308 = scmp.eq.s32.totalorder %s34, 1
      %p309 = por %p307, %p308
      %p311 = scmp.ne.s32.totalorder %s296, %s310
      %p312 = scmp.eq.s32.totalorder %s34, 0
      %p313 = por %p311, %p312
      %s314 = ssub.s32 %s28, %s35
      %p315 = scmp.eq.s32.totalorder %s314, 0
      %s317 = sadd.s32 %s316, 1
      %s318 = scalar_select %p315, %s316, %s317
      %p321 = pneg %p315
      %p322 = scmp.eq.s32.totalorder %s28, 1
      %p323 = por %p321, %p322
      %p324 = scmp.ne.s32.totalorder %s316, %s319
      %p325 = scmp.eq.s32.totalorder %s28, 0
      %p326 = por %p324, %p325
      %p327 = scmp.ne.s32.totalorder %s316, %s319
      %p328 = scmp.eq.s32.totalorder %s33, 1
      %p329 = por %p327, %p328
      %p330 = scmp.ne.s32.totalorder %s319, %s320
      %p331 = scmp.eq.s32.totalorder %s33, 0
      %p332 = por %p330, %p331
      %p333 = scmp.ne.s32.totalorder %s319, %s320
      %p334 = scmp.eq.s32.totalorder %s34, 1
      %p335 = por %p333, %p334
      %p337 = scmp.ne.s32.totalorder %s320, %s336
      %p338 = scmp.eq.s32.totalorder %s34, 0
      %p339 = por %p337, %p338
      %s340 = ssub.s32 %s28, %s35
      %p341 = scmp.eq.s32.totalorder %s340, 0
      %s343 = sadd.s32 %s342, 1
      %s344 = scalar_select %p341, %s342, %s343
      %p347 = pneg %p341
      %p348 = scmp.eq.s32.totalorder %s28, 1
      %p349 = por %p347, %p348
      %p350 = scmp.ne.s32.totalorder %s342, %s345
      %p351 = scmp.eq.s32.totalorder %s28, 0
      %p352 = por %p350, %p351
      %p353 = scmp.ne.s32.totalorder %s342, %s345
      %p354 = scmp.eq.s32.totalorder %s33, 1
      %p355 = por %p353, %p354
      %p356 = scmp.ne.s32.totalorder %s345, %s346
      %p357 = scmp.eq.s32.totalorder %s33, 0
      %p358 = por %p356, %p357
      %p359 = scmp.ne.s32.totalorder %s345, %s346
      %p360 = scmp.eq.s32.totalorder %s34, 1
      %p361 = por %p359, %p360
      %p363 = scmp.ne.s32.totalorder %s346, %s362
      %p364 = scmp.eq.s32.totalorder %s34, 0
      %p365 = por %p363, %p364
      %s366 = ssub.s32 %s28, %s35
      %p367 = scmp.eq.s32.totalorder %s366, 0
      %s369 = sadd.s32 %s368, 1
      %s370 = scalar_select %p367, %s368, %s369
      %p373 = pneg %p367
      %p374 = scmp.eq.s32.totalorder %s28, 1
      %p375 = por %p373, %p374
      %p376 = scmp.ne.s32.totalorder %s368, %s371
      %p377 = scmp.eq.s32.totalorder %s28, 0
      %p378 = por %p376, %p377
      %p379 = scmp.ne.s32.totalorder %s368, %s371
      %p380 = scmp.eq.s32.totalorder %s33, 1
      %p381 = por %p379, %p380
      %p382 = scmp.ne.s32.totalorder %s371, %s372
      %p383 = scmp.eq.s32.totalorder %s33, 0
      %p384 = por %p382, %p383
      %p385 = scmp.ne.s32.totalorder %s371, %s372
      %p386 = scmp.eq.s32.totalorder %s34, 1
      %p387 = por %p385, %p386
      %p389 = scmp.ne.s32.totalorder %s372, %s388
      %p390 = scmp.eq.s32.totalorder %s34, 0
      %p391 = por %p389, %p390
      %p392 = scmp.le.s32.totalorder 1, %s28
      %p393 = scmp.lt.s32.totalorder %s28, 3
      %p394 = pnand %p392, %p393
      %p395 = pneg %p394
      // Predicated region
      $region9: #{tpu_custom_call.1} parent=5 // pred_check
        _
      $region10: #{tpu_custom_call.1} parent=5 // pred_check_branch
        %397 = sbr.rel (%p394) target = $region12
      $region11: #{tpu_custom_call.1} parent=5 // pred_region
        %s398 = ssub.s32 %s28, 1
        // Predicated region
        $region13: #{tpu_custom_call.1} parent=11 // pred_check
          %p399 = pneg %p75
        $region14: #{tpu_custom_call.1} parent=11 // pred_check_branch
          %401 = sbr.rel (%p399) target = $region16
        $region15: #{tpu_custom_call.1} parent=11 // pred_region
          _
        $region16: #{tpu_custom_call.1} parent=11 // pred_fallthru
          _
        // Predicated region
        $region17: #{tpu_custom_call.1} parent=11 // pred_check
          %p402 = pneg %p96
        $region18: #{tpu_custom_call.1} parent=11 // pred_check_branch
          %404 = sbr.rel (%p402) target = $region20
        $region19: #{tpu_custom_call.1} parent=11 // pred_region
          _
        $region20: #{tpu_custom_call.1} parent=11 // pred_fallthru
          _
        // Predicated region
        $region21: #{tpu_custom_call.1} parent=11 // pred_check
          %p405 = pneg %p117
        $region22: #{tpu_custom_call.1} parent=11 // pred_check_branch
          %407 = sbr.rel (%p405) target = $region24
        $region23: #{tpu_custom_call.1} parent=11 // pred_region
          _
        $region24: #{tpu_custom_call.1} parent=11 // pred_fallthru
          _
        // Predicated region
        $region25: #{tpu_custom_call.1} parent=11 // pred_check
          %p408 = pneg %p138
        $region26: #{tpu_custom_call.1} parent=11 // pred_check_branch
          %410 = sbr.rel (%p408) target = $region28
        $region27: #{tpu_custom_call.1} parent=11 // pred_region
          _
        $region28: #{tpu_custom_call.1} parent=11 // pred_fallthru
          _
        // Predicated region
        $region29: #{tpu_custom_call.1} parent=11 // pred_check
          %p411 = pneg %p159
        $region30: #{tpu_custom_call.1} parent=11 // pred_check_branch
          %413 = sbr.rel (%p411) target = $region32
        $region31: #{tpu_custom_call.1} parent=11 // pred_region
          _
        $region32: #{tpu_custom_call.1} parent=11 // pred_fallthru
          _
        // Predicated region
        $region33: #{tpu_custom_call.1} parent=11 // pred_check
          %p414 = pneg %p180
        $region34: #{tpu_custom_call.1} parent=11 // pred_check_branch
          %416 = sbr.rel (%p414) target = $region36
        $region35: #{tpu_custom_call.1} parent=11 // pred_region
          _
        $region36: #{tpu_custom_call.1} parent=11 // pred_fallthru
          _
        // Predicated region
        $region37: #{tpu_custom_call.1} parent=11 // pred_check
          %p417 = pneg %p201
        $region38: #{tpu_custom_call.1} parent=11 // pred_check_branch
          %419 = sbr.rel (%p417) target = $region40
        $region39: #{tpu_custom_call.1} parent=11 // pred_region
          _
        $region40: #{tpu_custom_call.1} parent=11 // pred_fallthru
          _
        // Predicated region
        $region41: #{tpu_custom_call.1} parent=11 // pred_check
          %p420 = pneg %p222
        $region42: #{tpu_custom_call.1} parent=11 // pred_check_branch
          %422 = sbr.rel (%p420) target = $region44
        $region43: #{tpu_custom_call.1} parent=11 // pred_region
          _
        $region44: #{tpu_custom_call.1} parent=11 // pred_fallthru
          _
        // Predicated region
        $region45: #{tpu_custom_call.1} parent=11 // pred_check
          %p423 = pneg %p243
        $region46: #{tpu_custom_call.1} parent=11 // pred_check_branch
          %425 = sbr.rel (%p423) target = $region48
        $region47: #{tpu_custom_call.1} parent=11 // pred_region
          _
        $region48: #{tpu_custom_call.1} parent=11 // pred_fallthru
          _
        // Predicated region
        $region49: #{tpu_custom_call.1} parent=11 // pred_check
          %p426 = pneg %p264
        $region50: #{tpu_custom_call.1} parent=11 // pred_check_branch
          %428 = sbr.rel (%p426) target = $region52
        $region51: #{tpu_custom_call.1} parent=11 // pred_region
          _
        $region52: #{tpu_custom_call.1} parent=11 // pred_fallthru
          _
        // Predicated region
        $region53: #{tpu_custom_call.1} parent=11 // pred_check
          %p429 = pneg %p285
        $region54: #{tpu_custom_call.1} parent=11 // pred_check_branch
          %431 = sbr.rel (%p429) target = $region56
        $region55: #{tpu_custom_call.1} parent=11 // pred_region
          _
        $region56: #{tpu_custom_call.1} parent=11 // pred_fallthru
          _
        // Predicated region
        $region57: #{tpu_custom_call.1} parent=11 // pred_check
          %p432 = pneg %p306
        $region58: #{tpu_custom_call.1} parent=11 // pred_check_branch
          %434 = sbr.rel (%p432) target = $region60
        $region59: #{tpu_custom_call.1} parent=11 // pred_region
          _
        $region60: #{tpu_custom_call.1} parent=11 // pred_fallthru
          _
      $region12: #{tpu_custom_call.1} parent=5 // pred_fallthru
        _
      %p435 = scmp.lt.s32.totalorder %s28, 2
      // Predicated region
      $region61: #{tpu_custom_call.1} parent=5 // pred_check
        %p436 = pneg %p435
      $region62: #{tpu_custom_call.1} parent=5 // pred_check_branch
        %438 = sbr.rel (%p436) target = $region64
      $region63: #{tpu_custom_call.1} parent=5 // pred_region
        // Predicated region
        $region65: #{tpu_custom_call.1} parent=63 // pred_check
          %p439 = pneg %p48
        $region66: #{tpu_custom_call.1} parent=63 // pred_check_branch
          %441 = sbr.rel (%p439) target = $region68
        $region67: #{tpu_custom_call.1} parent=63 // pred_region
          %p442 = scmp.lt.s32.totalorder %s28, 1
          %s443 = scalar_select %p442, %s28, 1
          %s444 = smul.addr %s443, 8
          %s445 = scalar_lea.vmem %s0, %s444
        $region68: #{tpu_custom_call.1} parent=63 // pred_fallthru
          _
      $region64: #{tpu_custom_call.1} parent=5 // pred_fallthru
        _
      %p446 = scmp.le.s32.totalorder 1, %s28
      %p447 = scmp.lt.s32.totalorder %s28, 3
      %p448 = pnand %p446, %p447
      %p449 = pneg %p448
      // Predicated region
      $region69: #{tpu_custom_call.1} parent=5 // pred_check
        _
      $region70: #{tpu_custom_call.1} parent=5 // pred_check_branch
        %451 = sbr.rel (%p448) target = $region72
      $region71: #{tpu_custom_call.1} parent=5 // pred_region
        %s452 = ssub.s32 %s28, 1
        %p453 = scmp.lt.s32.totalorder %s33, 1
        %s454 = scalar_select %p453, %s33, 1
        %s455 = smul.addr %s454, 8
        %s456 = scalar_lea.vmem %s0, %s455
        %p457 = pneg %p54
        %p458 = pneg %p51
        %p459 = pneg %p75
        %p460 = pneg %p72
        %p461 = pneg %p96
        %p462 = pneg %p93
        %p463 = pneg %p117
        %p464 = pneg %p114
        %p465 = pneg %p138
        %p466 = pneg %p135
        %p467 = pneg %p159
        %p468 = pneg %p156
        %p469 = pneg %p180
        %p470 = pneg %p177
        %p471 = pneg %p201
        %p472 = pneg %p198
        %p473 = pneg %p222
        %p474 = pneg %p219
        %p475 = pneg %p243
        %p476 = pneg %p240
        %p477 = pneg %p264
        %p478 = pneg %p261
        %p479 = pneg %p285
        %p480 = pneg %p282
        %p481 = pneg %p306
        %p482 = pneg %p303
        %p483 = pneg %p332
        %p484 = pneg %p329
        %s485 = sand.u32 %s319, 1
        %s486 = scalar_lea.sflag [#allocation3], %s485
        %s487 = sand.u32 %s319, 1
        %s488 = smul.addr %s487, 8
        %s489 = scalar_lea.vmem [#allocation2], %s488
        %p490 = pneg %p358
        %p491 = pneg %p355
        %s492 = sand.u32 %s33, 1
        %s493 = scalar_lea.sflag [#allocation5], %s492
        %s494 = sand.u32 %s345, 1
        %s495 = smul.addr %s494, 4
        %s496 = scalar_lea.vmem [#allocation4], %s495
        %p497 = pneg %p384
        %p498 = pneg %p381
        %s499 = sand.u32 %s33, 1
        %s500 = scalar_lea.sflag [#allocation5], %s499
        %s501 = sand.u32 %s371, 1
        %s502 = smul.addr %s501, 4
        %s503 = scalar_lea.vmem [#allocation6], %s502
        %p504 = scmp.lt.s32.totalorder %s33, 1
        %s505 = scalar_select %p504, %s33, 1
        %s506 = smul.addr %s505, 8
        %s507 = scalar_lea.vmem %s0, %s506
        %v509 = vld [vmem:[%s507] sm:$0xff]
        %v510 = vld [vmem:[%s1] sm:$0x1]
        %v511 = vld [vmem:[%s2] sm:$0x1]
        %vm512 = vcmask 261120
        %v513 = vsel %vm512, %v509, 0.0
        %514 = vadd.xlane.f32.xlu0 %v513
        %v515 = vpop.xlane.xlu0 %514
        %v516 = vrcp.pop 32.0
        %v517 = vmul.f32 %v515, %v516
        %v518 = vsub.f32 %v509, %v517
        %v519 = vmul.f32 %v518, %v518
        %v520 = vsel %vm512, %v519, 0.0
        %521 = vadd.xlane.f32.xlu0 %v520
        %v522 = vpop.xlane.xlu0 %521
        %v523 = vmul.f32 %v522, %v516
        %v524 = vadd.f32 %v523, 1e-05
        %v525 = vrsqrt.pop %v524
        %v526 = vmul.f32 %v518, %v525
        %v528 = vlaneseq
        %v529 = vshrl.u32 %v528, 7
        %v530 = vsub.s32 0, %v529
        %v531 = vrot.slane %v510, %v530
        %v533 = vmul.f32 %v526, %v531
        %v535 = vlaneseq
        %v536 = vshrl.u32 %v535, 7
        %v537 = vsub.s32 0, %v536
        %v538 = vrot.slane %v511, %v537
        %v540 = vadd.f32 %v533, %v538
        %v541 = vpack.c.bf16 %v540, %v540
        %v542 = vld [vmem:[%s3] sm:$0xf]
        %v543 = vld [vmem:[%s3 + $0x4] sm:$0xf]
        %v544 = vld [vmem:[%s3 + $0x8] sm:$0xf]
        %v545 = vld [vmem:[%s3 + $0xc] sm:$0xf]
        %v546 = vld [vmem:[%s4] sm:$0x1]
        %v548 = vlaneseq
        %v549 = vshrl.u32 %v548, 7
        %v550 = vsub.s32 0, %v549
        %v551 = vrot.slane %v546, %v550
        %v557 = vunpack.c.l.b16 %v542
        %v558 = vunpack.c.l.b16 %v543
        %v559 = vunpack.c.l.b16 %v544
        %v560 = vunpack.c.l.b16 %v545
        %v561 = vpack.c.b16 %v558, %v557
        %v562 = vpack.c.b16 %v560, %v559
        %v566 = vsel %vm512, %v541, 0
        %568 = vmatprep.subr.bf16.mxu0 0
        %569 = vmatpush1.bf16.msra.mxu0 %v561
        %570 = vmatprep.subr.bf16.mxu0 0
        %571 = vmatpush1.bf16.msra.mxu0 %v562
        %572 = vmatprep.subr.bf16.mxu0 0
        %573 = vmatpush1.bf16.msra.mxu0 0
        %574 = vmatprep.subr.bf16.mxu0 0
        %575 = vmatpush1.bf16.msra.mxu0 0
        %576 = vmatprep.subr.bf16.mxu0 0
        %577 = vmatpush1.bf16.msra.mxu0 0
        %578 = vmatprep.subr.bf16.mxu0 0
        %579 = vmatpush1.bf16.msra.mxu0 0
        %580 = vmatprep.subr.bf16.mxu0 0
        %581 = vmatpush1.bf16.msra.mxu0 0
        %582 = vmatprep.subr.bf16.mxu0 0
        %583 = vmatpush1.bf16.msra.mxu0 0
        %584 = vmatprep.subr.bf16.mxu0 0
        %585 = vmatpush1.bf16.msra.mxu0 0
        %586 = vmatprep.subr.bf16.mxu0 0
        %587 = vmatpush1.bf16.msra.mxu0 0
        %588 = vmatprep.subr.bf16.mxu0 0
        %589 = vmatpush1.bf16.msra.mxu0 0
        %590 = vmatprep.subr.bf16.mxu0 0
        %591 = vmatpush1.bf16.msra.mxu0 0
        %592 = vmatprep.subr.bf16.mxu0 0
        %593 = vmatpush1.bf16.msra.mxu0 0
        %594 = vmatprep.subr.bf16.mxu0 0
        %595 = vmatpush1.bf16.msra.mxu0 0
        %596 = vmatprep.subr.bf16.mxu0 0
        %597 = vmatpush1.bf16.msra.mxu0 0
        %598 = vmatprep.subr.bf16.mxu0 0
        %599 = vmatpush1.bf16.msra.mxu0 0
        %600 = vmatprep.mubr.bf16.mxu0 0
        %601 = vmatmul.mubr.bf16.gmra.mrb[0].mxu0 %v566
        %v602 = vpop.f32.mrb[0].mxu0
        %v603 = vadd.f32 %v551, %v602
        %v604 = vpop.f32.mrb[0].mxu0
        %v605 = vpop.f32.mrb[0].mxu0
        %v606 = vpop.f32.mrb[0].mxu0
        %607 = vdwg.mxu0
        %v608 = vpack.c.bf16 %v603, %v603
        %v610 = vunpack.c.l.b16 %v608
        %v611 = vpack.c.b16 %v610, %v610
        %612 = vrot.lane.b32.xlu0 %v611, 96
        %v613 = vpop.permute.xlu0 %612
        %vm615 = vcmask 257024
        %616 = vst.msk [vmem:[%s496] sm:$0xf] %vm615, %v613
        %617 = vrot.lane.b32.xlu0 %v611, 64
        %v618 = vpop.permute.xlu0 %617
        %620 = vst.msk [vmem:[%s503] sm:$0xf] %vm615, %v618
        %622 = vrot.lane.b32.xlu0 %v603, 120
        %v623 = vpop.permute.xlu0 %622
        %625 = vrot.lane.b32.xlu0 %v603, 112
        %v626 = vpop.permute.xlu0 %625
        %628 = vrot.lane.b32.xlu0 %v603, 104
        %v629 = vpop.permute.xlu0 %628
        %v631 = vcombine.low %v603, %v626
        %v632 = vcombine.high %v603, %v626
        %v634 = vunpack.c.l.s4 1983009808
        %v635 = vunpack.c.0.s8 %v634
        %v636 = vlaneseq
        %v637 = vshrl.u32 %v636, 7
        %v638 = vsub.s32 %v635, %v637
        %v639 = vrot.slane %v631, %v638
        %v641 = vunpack.c.l.s4 1983009808
        %v642 = vunpack.c.0.s8 %v641
        %v643 = vlaneseq
        %v644 = vshrl.u32 %v643, 7
        %v645 = vsub.s32 %v642, %v644
        %v646 = vrot.slane %v632, %v645
        %v647 = vcombine.low %v623, %v629
        %v648 = vcombine.high %v623, %v629
        %v650 = vunpack.c.l.s4 1983009808
        %v651 = vunpack.c.0.s8 %v650
        %v652 = vlaneseq
        %v653 = vshrl.u32 %v652, 7
        %v654 = vsub.s32 %v651, %v653
        %v655 = vrot.slane %v647, %v654
        %v657 = vunpack.c.l.s4 1983009808
        %v658 = vunpack.c.0.s8 %v657
        %v659 = vlaneseq
        %v660 = vshrl.u32 %v659, 7
        %v661 = vsub.s32 %v658, %v660
        %v662 = vrot.slane %v648, %v661
        %v663 = vcombine.low %v639, %v655
        %v664 = vcombine.high %v639, %v655
        %v666 = vunpack.c.l.s4 1934713408
        %v667 = vunpack.c.0.s8 %v666
        %v668 = vlaneseq
        %v669 = vshrl.u32 %v668, 7
        %v670 = vsub.s32 %v667, %v669
        %v671 = vrot.slane %v663, %v670
        %v673 = vunpack.c.l.s4 1934713408
        %v674 = vunpack.c.0.s8 %v673
        %v675 = vlaneseq
        %v676 = vshrl.u32 %v675, 7
        %v677 = vsub.s32 %v674, %v676
        %v678 = vrot.slane %v664, %v677
        %v679 = vcombine.low %v646, %v662
        %v680 = vcombine.high %v646, %v662
        %v682 = vunpack.c.l.s4 1934713408
        %v683 = vunpack.c.0.s8 %v682
        %v684 = vlaneseq
        %v685 = vshrl.u32 %v684, 7
        %v686 = vsub.s32 %v683, %v685
        %v687 = vrot.slane %v679, %v686
        %v689 = vunpack.c.l.s4 1934713408
        %v690 = vunpack.c.0.s8 %v689
        %v691 = vlaneseq
        %v692 = vshrl.u32 %v691, 7
        %v693 = vsub.s32 %v690, %v692
        %v694 = vrot.slane %v680, %v693
        %v695 = vcombine.high %v671, 0.0
        %v696 = vcombine.high %v678, 0.0
        %v697 = vcombine.high %v687, 0.0
        %v698 = vcombine.high %v694, 0.0
        %v699 = vcombine.low %v671, %v678
        %v701 = vunpack.c.l.s4 1983009808
        %v702 = vunpack.c.0.s8 %v701
        %v703 = vlaneseq
        %v704 = vshrl.u32 %v703, 7
        %v705 = vsub.s32 %v702, %v704
        %v706 = vrot.slane %v699, %v705
        %v707 = vcombine.low %v695, %v696
        %v709 = vunpack.c.l.s4 1983009808
        %v710 = vunpack.c.0.s8 %v709
        %v711 = vlaneseq
        %v712 = vshrl.u32 %v711, 7
        %v713 = vsub.s32 %v710, %v712
        %v714 = vrot.slane %v707, %v713
        %v715 = vcombine.low %v687, %v694
        %v717 = vunpack.c.l.s4 1983009808
        %v718 = vunpack.c.0.s8 %v717
        %v719 = vlaneseq
        %v720 = vshrl.u32 %v719, 7
        %v721 = vsub.s32 %v718, %v720
        %v722 = vrot.slane %v715, %v721
        %v723 = vcombine.low %v697, %v698
        %v725 = vunpack.c.l.s4 1983009808
        %v726 = vunpack.c.0.s8 %v725
        %v727 = vlaneseq
        %v728 = vshrl.u32 %v727, 7
        %v729 = vsub.s32 %v726, %v728
        %v730 = vrot.slane %v723, %v729
        %v731 = vcombine.low %v706, %v714
        %v732 = vcombine.high %v706, %v714
        %v734 = vunpack.c.l.s4 1934713408
        %v735 = vunpack.c.0.s8 %v734
        %v736 = vlaneseq
        %v737 = vshrl.u32 %v736, 7
        %v738 = vsub.s32 %v735, %v737
        %v739 = vrot.slane %v731, %v738
        %v741 = vunpack.c.l.s4 1934713408
        %v742 = vunpack.c.0.s8 %v741
        %v743 = vlaneseq
        %v744 = vshrl.u32 %v743, 7
        %v745 = vsub.s32 %v742, %v744
        %v746 = vrot.slane %v732, %v745
        %v747 = vcombine.low %v722, %v730
        %v748 = vcombine.high %v722, %v730
        %v750 = vunpack.c.l.s4 1934713408
        %v751 = vunpack.c.0.s8 %v750
        %v752 = vlaneseq
        %v753 = vshrl.u32 %v752, 7
        %v754 = vsub.s32 %v751, %v753
        %v755 = vrot.slane %v747, %v754
        %v757 = vunpack.c.l.s4 1934713408
        %v758 = vunpack.c.0.s8 %v757
        %v759 = vlaneseq
        %v760 = vshrl.u32 %v759, 7
        %v761 = vsub.s32 %v758, %v760
        %v762 = vrot.slane %v748, %v761
        %v763 = vcombine.low %v739, %v755
        %v764 = vcombine.high %v739, %v755
        %v765 = vcombine.low %v746, %v762
        %v766 = vcombine.high %v746, %v762
        %v767 = vpack.c.bf16 %v763, %v763
        %v768 = vpack.c.bf16 %v764, %v764
        %v769 = vpack.c.bf16 %v765, %v765
        %v770 = vpack.c.bf16 %v766, %v766
        %771 = vrot.lane.b32.xlu0 %v603, 96
        %v772 = vpop.permute.xlu0 %771
        %773 = vrot.lane.b32.xlu0 %v623, 96
        %v774 = vpop.permute.xlu0 %773
        %775 = vrot.lane.b32.xlu0 %v626, 96
        %v776 = vpop.permute.xlu0 %775
        %777 = vrot.lane.b32.xlu0 %v629, 96
        %v778 = vpop.permute.xlu0 %777
        %v783 = vcombine.low %v772, %v776
        %v784 = vcombine.high %v772, %v776
        %v786 = vunpack.c.l.s4 1983009808
        %v787 = vunpack.c.0.s8 %v786
        %v788 = vlaneseq
        %v789 = vshrl.u32 %v788, 7
        %v790 = vsub.s32 %v787, %v789
        %v791 = vrot.slane %v783, %v790
        %v793 = vunpack.c.l.s4 1983009808
        %v794 = vunpack.c.0.s8 %v793
        %v795 = vlaneseq
        %v796 = vshrl.u32 %v795, 7
        %v797 = vsub.s32 %v794, %v796
        %v798 = vrot.slane %v784, %v797
        %v799 = vcombine.low %v774, %v778
        %v800 = vcombine.high %v774, %v778
        %v802 = vunpack.c.l.s4 1983009808
        %v803 = vunpack.c.0.s8 %v802
        %v804 = vlaneseq
        %v805 = vshrl.u32 %v804, 7
        %v806 = vsub.s32 %v803, %v805
        %v807 = vrot.slane %v799, %v806
        %v809 = vunpack.c.l.s4 1983009808
        %v810 = vunpack.c.0.s8 %v809
        %v811 = vlaneseq
        %v812 = vshrl.u32 %v811, 7
        %v813 = vsub.s32 %v810, %v812
        %v814 = vrot.slane %v800, %v813
        %v815 = vcombine.low %v791, %v807
        %v816 = vcombine.high %v791, %v807
        %v818 = vunpack.c.l.s4 1934713408
        %v819 = vunpack.c.0.s8 %v818
        %v820 = vlaneseq
        %v821 = vshrl.u32 %v820, 7
        %v822 = vsub.s32 %v819, %v821
        %v823 = vrot.slane %v815, %v822
        %v825 = vunpack.c.l.s4 1934713408
        %v826 = vunpack.c.0.s8 %v825
        %v827 = vlaneseq
        %v828 = vshrl.u32 %v827, 7
        %v829 = vsub.s32 %v826, %v828
        %v830 = vrot.slane %v816, %v829
        %v831 = vcombine.low %v798, %v814
        %v832 = vcombine.high %v798, %v814
        %v834 = vunpack.c.l.s4 1934713408
        %v835 = vunpack.c.0.s8 %v834
        %v836 = vlaneseq
        %v837 = vshrl.u32 %v836, 7
        %v838 = vsub.s32 %v835, %v837
        %v839 = vrot.slane %v831, %v838
        %v841 = vunpack.c.l.s4 1934713408
        %v842 = vunpack.c.0.s8 %v841
        %v843 = vlaneseq
        %v844 = vshrl.u32 %v843, 7
        %v845 = vsub.s32 %v842, %v844
        %v846 = vrot.slane %v832, %v845
        %v847 = vcombine.high %v823, 0.0
        %v848 = vcombine.high %v830, 0.0
        %v849 = vcombine.high %v839, 0.0
        %v850 = vcombine.high %v846, 0.0
        %v851 = vcombine.low %v823, %v830
        %v853 = vunpack.c.l.s4 1983009808
        %v854 = vunpack.c.0.s8 %v853
        %v855 = vlaneseq
        %v856 = vshrl.u32 %v855, 7
        %v857 = vsub.s32 %v854, %v856
        %v858 = vrot.slane %v851, %v857
        %v859 = vcombine.low %v847, %v848
        %v861 = vunpack.c.l.s4 1983009808
        %v862 = vunpack.c.0.s8 %v861
        %v863 = vlaneseq
        %v864 = vshrl.u32 %v863, 7
        %v865 = vsub.s32 %v862, %v864
        %v866 = vrot.slane %v859, %v865
        %v867 = vcombine.low %v839, %v846
        %v869 = vunpack.c.l.s4 1983009808
        %v870 = vunpack.c.0.s8 %v869
        %v871 = vlaneseq
        %v872 = vshrl.u32 %v871, 7
        %v873 = vsub.s32 %v870, %v872
        %v874 = vrot.slane %v867, %v873
        %v875 = vcombine.low %v849, %v850
        %v877 = vunpack.c.l.s4 1983009808
        %v878 = vunpack.c.0.s8 %v877
        %v879 = vlaneseq
        %v880 = vshrl.u32 %v879, 7
        %v881 = vsub.s32 %v878, %v880
        %v882 = vrot.slane %v875, %v881
        %v883 = vcombine.low %v858, %v866
        %v884 = vcombine.high %v858, %v866
        %v886 = vunpack.c.l.s4 1934713408
        %v887 = vunpack.c.0.s8 %v886
        %v888 = vlaneseq
        %v889 = vshrl.u32 %v888, 7
        %v890 = vsub.s32 %v887, %v889
        %v891 = vrot.slane %v883, %v890
        %v893 = vunpack.c.l.s4 1934713408
        %v894 = vunpack.c.0.s8 %v893
        %v895 = vlaneseq
        %v896 = vshrl.u32 %v895, 7
        %v897 = vsub.s32 %v894, %v896
        %v898 = vrot.slane %v884, %v897
        %v899 = vcombine.low %v874, %v882
        %v900 = vcombine.high %v874, %v882
        %v902 = vunpack.c.l.s4 1934713408
        %v903 = vunpack.c.0.s8 %v902
        %v904 = vlaneseq
        %v905 = vshrl.u32 %v904, 7
        %v906 = vsub.s32 %v903, %v905
        %v907 = vrot.slane %v899, %v906
        %v909 = vunpack.c.l.s4 1934713408
        %v910 = vunpack.c.0.s8 %v909
        %v911 = vlaneseq
        %v912 = vshrl.u32 %v911, 7
        %v913 = vsub.s32 %v910, %v912
        %v914 = vrot.slane %v900, %v913
        %v915 = vcombine.low %v891, %v907
        %v916 = vcombine.high %v891, %v907
        %v917 = vcombine.low %v898, %v914
        %v918 = vcombine.high %v898, %v914
        %v919 = vpack.c.bf16 %v915, %v915
        %v920 = vpack.c.bf16 %v916, %v916
        %v921 = vpack.c.bf16 %v917, %v917
        %v922 = vpack.c.bf16 %v918, %v918
        %923 = vrot.lane.b32.xlu0 %v603, 64
        %v924 = vpop.permute.xlu0 %923
        %925 = vrot.lane.b32.xlu0 %v623, 64
        %v926 = vpop.permute.xlu0 %925
        %927 = vrot.lane.b32.xlu0 %v626, 64
        %v928 = vpop.permute.xlu0 %927
        %929 = vrot.lane.b32.xlu0 %v629, 64
        %v930 = vpop.permute.xlu0 %929
        %v935 = vcombine.low %v924, %v928
        %v936 = vcombine.high %v924, %v928
        %v938 = vunpack.c.l.s4 1983009808
        %v939 = vunpack.c.0.s8 %v938
        %v940 = vlaneseq
        %v941 = vshrl.u32 %v940, 7
        %v942 = vsub.s32 %v939, %v941
        %v943 = vrot.slane %v935, %v942
        %v945 = vunpack.c.l.s4 1983009808
        %v946 = vunpack.c.0.s8 %v945
        %v947 = vlaneseq
        %v948 = vshrl.u32 %v947, 7
        %v949 = vsub.s32 %v946, %v948
        %v950 = vrot.slane %v936, %v949
        %v951 = vcombine.low %v926, %v930
        %v952 = vcombine.high %v926, %v930
        %v954 = vunpack.c.l.s4 1983009808
        %v955 = vunpack.c.0.s8 %v954
        %v956 = vlaneseq
        %v957 = vshrl.u32 %v956, 7
        %v958 = vsub.s32 %v955, %v957
        %v959 = vrot.slane %v951, %v958
        %v961 = vunpack.c.l.s4 1983009808
        %v962 = vunpack.c.0.s8 %v961
        %v963 = vlaneseq
        %v964 = vshrl.u32 %v963, 7
        %v965 = vsub.s32 %v962, %v964
        %v966 = vrot.slane %v952, %v965
        %v967 = vcombine.low %v943, %v959
        %v968 = vcombine.high %v943, %v959
        %v970 = vunpack.c.l.s4 1934713408
        %v971 = vunpack.c.0.s8 %v970
        %v972 = vlaneseq
        %v973 = vshrl.u32 %v972, 7
        %v974 = vsub.s32 %v971, %v973
        %v975 = vrot.slane %v967, %v974
        %v977 = vunpack.c.l.s4 1934713408
        %v978 = vunpack.c.0.s8 %v977
        %v979 = vlaneseq
        %v980 = vshrl.u32 %v979, 7
        %v981 = vsub.s32 %v978, %v980
        %v982 = vrot.slane %v968, %v981
        %v983 = vcombine.low %v950, %v966
        %v984 = vcombine.high %v950, %v966
        %v986 = vunpack.c.l.s4 1934713408
        %v987 = vunpack.c.0.s8 %v986
        %v988 = vlaneseq
        %v989 = vshrl.u32 %v988, 7
        %v990 = vsub.s32 %v987, %v989
        %v991 = vrot.slane %v983, %v990
        %v993 = vunpack.c.l.s4 1934713408
        %v994 = vunpack.c.0.s8 %v993
        %v995 = vlaneseq
        %v996 = vshrl.u32 %v995, 7
        %v997 = vsub.s32 %v994, %v996
        %v998 = vrot.slane %v984, %v997
        %v999 = vcombine.high %v975, 0.0
        %v1000 = vcombine.high %v982, 0.0
        %v1001 = vcombine.high %v991, 0.0
        %v1002 = vcombine.high %v998, 0.0
        %v1003 = vcombine.low %v975, %v982
        %v1005 = vunpack.c.l.s4 1983009808
        %v1006 = vunpack.c.0.s8 %v1005
        %v1007 = vlaneseq
        %v1008 = vshrl.u32 %v1007, 7
        %v1009 = vsub.s32 %v1006, %v1008
        %v1010 = vrot.slane %v1003, %v1009
        %v1011 = vcombine.low %v999, %v1000
        %v1013 = vunpack.c.l.s4 1983009808
        %v1014 = vunpack.c.0.s8 %v1013
        %v1015 = vlaneseq
        %v1016 = vshrl.u32 %v1015, 7
        %v1017 = vsub.s32 %v1014, %v1016
        %v1018 = vrot.slane %v1011, %v1017
        %v1019 = vcombine.low %v991, %v998
        %v1021 = vunpack.c.l.s4 1983009808
        %v1022 = vunpack.c.0.s8 %v1021
        %v1023 = vlaneseq
        %v1024 = vshrl.u32 %v1023, 7
        %v1025 = vsub.s32 %v1022, %v1024
        %v1026 = vrot.slane %v1019, %v1025
        %v1027 = vcombine.low %v1001, %v1002
        %v1029 = vunpack.c.l.s4 1983009808
        %v1030 = vunpack.c.0.s8 %v1029
        %v1031 = vlaneseq
        %v1032 = vshrl.u32 %v1031, 7
        %v1033 = vsub.s32 %v1030, %v1032
        %v1034 = vrot.slane %v1027, %v1033
        %v1035 = vcombine.low %v1010, %v1018
        %v1036 = vcombine.high %v1010, %v1018
        %v1038 = vunpack.c.l.s4 1934713408
        %v1039 = vunpack.c.0.s8 %v1038
        %v1040 = vlaneseq
        %v1041 = vshrl.u32 %v1040, 7
        %v1042 = vsub.s32 %v1039, %v1041
        %v1043 = vrot.slane %v1035, %v1042
        %v1045 = vunpack.c.l.s4 1934713408
        %v1046 = vunpack.c.0.s8 %v1045
        %v1047 = vlaneseq
        %v1048 = vshrl.u32 %v1047, 7
        %v1049 = vsub.s32 %v1046, %v1048
        %v1050 = vrot.slane %v1036, %v1049
        %v1051 = vcombine.low %v1026, %v1034
        %v1052 = vcombine.high %v1026, %v1034
        %v1054 = vunpack.c.l.s4 1934713408
        %v1055 = vunpack.c.0.s8 %v1054
        %v1056 = vlaneseq
        %v1057 = vshrl.u32 %v1056, 7
        %v1058 = vsub.s32 %v1055, %v1057
        %v1059 = vrot.slane %v1051, %v1058
        %v1061 = vunpack.c.l.s4 1934713408
        %v1062 = vunpack.c.0.s8 %v1061
        %v1063 = vlaneseq
        %v1064 = vshrl.u32 %v1063, 7
        %v1065 = vsub.s32 %v1062, %v1064
        %v1066 = vrot.slane %v1052, %v1065
        %v1067 = vcombine.low %v1043, %v1059
        %v1068 = vcombine.high %v1043, %v1059
        %v1069 = vcombine.low %v1050, %v1066
        %v1070 = vcombine.high %v1050, %v1066
        %v1071 = vpack.c.bf16 %v1067, %v1067
        %v1072 = vpack.c.bf16 %v1068, %v1068
        %v1073 = vpack.c.bf16 %v1069, %v1069
        %v1074 = vpack.c.bf16 %v1070, %v1070
        %vm1075 = vcmask 64512
        %v1077 = vsel %vm1075, %v767, 0
        %v1080 = vsel %vm1075, %v919, 0
        %1082 = vmatprep.subr.bf16.mxu0 0
        %1083 = vmatpush1.bf16.xpose.msra.mxu0 %v1080
        %1084 = vmatprep.subr.bf16.mxu0 0
        %1085 = vmatpush1.bf16.xpose.msra.mxu0 0
        %1086 = vmatprep.subr.bf16.mxu0 0
        %1087 = vmatpush1.bf16.xpose.msra.mxu0 0
        %1088 = vmatprep.subr.bf16.mxu0 0
        %1089 = vmatpush1.bf16.xpose.msra.mxu0 0
        %1090 = vmatprep.subr.bf16.mxu0 0
        %1091 = vmatpush1.bf16.xpose.msra.mxu0 0
        %1092 = vmatprep.subr.bf16.mxu0 0
        %1093 = vmatpush1.bf16.xpose.msra.mxu0 0
        %1094 = vmatprep.subr.bf16.mxu0 0
        %1095 = vmatpush1.bf16.xpose.msra.mxu0 0
        %1096 = vmatprep.subr.bf16.mxu0 0
        %1097 = vmatpush1.bf16.xpose.msra.mxu0 0
        %1098 = vmatprep.subr.bf16.mxu0 0
        %1099 = vmatpush1.bf16.xpose.msra.mxu0 0
        %1100 = vmatprep.subr.bf16.mxu0 0
        %1101 = vmatpush1.bf16.xpose.msra.mxu0 0
        %1102 = vmatprep.subr.bf16.mxu0 0
        %1103 = vmatpush1.bf16.xpose.msra.mxu0 0
        %1104 = vmatprep.subr.bf16.mxu0 0
        %1105 = vmatpush1.bf16.xpose.msra.mxu0 0
        %1106 = vmatprep.subr.bf16.mxu0 0
        %1107 = vmatpush1.bf16.xpose.msra.mxu0 0
        %1108 = vmatprep.subr.bf16.mxu0 0
        %1109 = vmatpush1.bf16.xpose.msra.mxu0 0
        %1110 = vmatprep.subr.bf16.mxu0 0
        %1111 = vmatpush1.bf16.xpose.msra.mxu0 0
        %1112 = vmatprep.subr.bf16.mxu0 0
        %1113 = vmatpush1.bf16.xpose.msra.mxu0 0
        %1114 = vmatprep.mubr.bf16.mxu0 0
        %1115 = vmatmul.mubr.bf16.gmra.mrb[0].mxu0 %v1077
        %v1116 = vpop.f32.mrb[0].mxu0
        %v1117 = vadd.f32 0.0, %v1116
        %v1118 = vpop.f32.mrb[0].mxu0
        %v1119 = vpop.f32.mrb[0].mxu0
        %v1120 = vpop.f32.mrb[0].mxu0
        %1121 = vdwg.mxu0
        %v1123 = vsel %vm1075, %v768, 0
        %v1126 = vsel %vm1075, %v920, 0
        %1128 = vmatprep.subr.bf16.mxu0 0
        %1129 = vmatpush1.bf16.xpose.msra.mxu0 %v1126
        %1130 = vmatprep.subr.bf16.mxu0 0
        %1131 = vmatpush1.bf16.xpose.msra.mxu0 0
        %1132 = vmatprep.subr.bf16.mxu0 0
        %1133 = vmatpush1.bf16.xpose.msra.mxu0 0
        %1134 = vmatprep.subr.bf16.mxu0 0
        %1135 = vmatpush1.bf16.xpose.msra.mxu0 0
        %1136 = vmatprep.subr.bf16.mxu0 0
        %1137 = vmatpush1.bf16.xpose.msra.mxu0 0
        %1138 = vmatprep.subr.bf16.mxu0 0
        %1139 = vmatpush1.bf16.xpose.msra.mxu0 0
        %1140 = vmatprep.subr.bf16.mxu0 0
        %1141 = vmatpush1.bf16.xpose.msra.mxu0 0
        %1142 = vmatprep.subr.bf16.mxu0 0
        %1143 = vmatpush1.bf16.xpose.msra.mxu0 0
        %1144 = vmatprep.subr.bf16.mxu0 0
        %1145 = vmatpush1.bf16.xpose.msra.mxu0 0
        %1146 = vmatprep.subr.bf16.mxu0 0
        %1147 = vmatpush1.bf16.xpose.msra.mxu0 0
        %1148 = vmatprep.subr.bf16.mxu0 0
        %1149 = vmatpush1.bf16.xpose.msra.mxu0 0
        %1150 = vmatprep.subr.bf16.mxu0 0
        %1151 = vmatpush1.bf16.xpose.msra.mxu0 0
        %1152 = vmatprep.subr.bf16.mxu0 0
        %1153 = vmatpush1.bf16.xpose.msra.mxu0 0
        %1154 = vmatprep.subr.bf16.mxu0 0
        %1155 = vmatpush1.bf16.xpose.msra.mxu0 0
        %1156 = vmatprep.subr.bf16.mxu0 0
        %1157 = vmatpush1.bf16.xpose.msra.mxu0 0
        %1158 = vmatprep.subr.bf16.mxu0 0
        %1159 = vmatpush1.bf16.xpose.msra.mxu0 0
        %1160 = vmatprep.mubr.bf16.mxu0 0
        %1161 = vmatmul.mubr.bf16.gmra.mrb[0].mxu0 %v1123
        %v1162 = vpop.f32.mrb[0].mxu0
        %v1163 = vadd.f32 0.0, %v1162
        %v1164 = vpop.f32.mrb[0].mxu0
        %v1165 = vpop.f32.mrb[0].mxu0
        %v1166 = vpop.f32.mrb[0].mxu0
        %1167 = vdwg.mxu0
        %v1169 = vsel %vm1075, %v769, 0
        %v1172 = vsel %vm1075, %v921, 0
        %1174 = vmatprep.subr.bf16.mxu0 0
        %1175 = vmatpush1.bf16.xpose.msra.mxu0 %v1172
        %1176 = vmatprep.subr.bf16.mxu0 0
        %1177 = vmatpush1.bf16.xpose.msra.mxu0 0
        %1178 = vmatprep.subr.bf16.mxu0 0
        %1179 = vmatpush1.bf16.xpose.msra.mxu0 0
        %1180 = vmatprep.subr.bf16.mxu0 0
        %1181 = vmatpush1.bf16.xpose.msra.mxu0 0
        %1182 = vmatprep.subr.bf16.mxu0 0
        %1183 = vmatpush1.bf16.xpose.msra.mxu0 0
        %1184 = vmatprep.subr.bf16.mxu0 0
        %1185 = vmatpush1.bf16.xpose.msra.mxu0 0
        %1186 = vmatprep.subr.bf16.mxu0 0
        %1187 = vmatpush1.bf16.xpose.msra.mxu0 0
        %1188 = vmatprep.subr.bf16.mxu0 0
        %1189 = vmatpush1.bf16.xpose.msra.mxu0 0
        %1190 = vmatprep.subr.bf16.mxu0 0
        %1191 = vmatpush1.bf16.xpose.msra.mxu0 0
        %1192 = vmatprep.subr.bf16.mxu0 0
        %1193 = vmatpush1.bf16.xpose.msra.mxu0 0
        %1194 = vmatprep.subr.bf16.mxu0 0
        %1195 = vmatpush1.bf16.xpose.msra.mxu0 0
        %1196 = vmatprep.subr.bf16.mxu0 0
        %1197 = vmatpush1.bf16.xpose.msra.mxu0 0
        %1198 = vmatprep.subr.bf16.mxu0 0
        %1199 = vmatpush1.bf16.xpose.msra.mxu0 0
        %1200 = vmatprep.subr.bf16.mxu0 0
        %1201 = vmatpush1.bf16.xpose.msra.mxu0 0
        %1202 = vmatprep.subr.bf16.mxu0 0
        %1203 = vmatpush1.bf16.xpose.msra.mxu0 0
        %1204 = vmatprep.subr.bf16.mxu0 0
        %1205 = vmatpush1.bf16.xpose.msra.mxu0 0
        %1206 = vmatprep.mubr.bf16.mxu0 0
        %1207 = vmatmul.mubr.bf16.gmra.mrb[0].mxu0 %v1169
        %v1208 = vpop.f32.mrb[0].mxu0
        %v1209 = vadd.f32 0.0, %v1208
        %v1210 = vpop.f32.mrb[0].mxu0
        %v1211 = vpop.f32.mrb[0].mxu0
        %v1212 = vpop.f32.mrb[0].mxu0
        %1213 = vdwg.mxu0
        %v1215 = vsel %vm1075, %v770, 0
        %v1218 = vsel %vm1075, %v922, 0
        %1220 = vmatprep.subr.bf16.mxu0 0
        %1221 = vmatpush1.bf16.xpose.msra.mxu0 %v1218
        %1222 = vmatprep.subr.bf16.mxu0 0
        %1223 = vmatpush1.bf16.xpose.msra.mxu0 0
        %1224 = vmatprep.subr.bf16.mxu0 0
        %1225 = vmatpush1.bf16.xpose.msra.mxu0 0
        %1226 = vmatprep.subr.bf16.mxu0 0
        %1227 = vmatpush1.bf16.xpose.msra.mxu0 0
        %1228 = vmatprep.subr.bf16.mxu0 0
        %1229 = vmatpush1.bf16.xpose.msra.mxu0 0
        %1230 = vmatprep.subr.bf16.mxu0 0
        %1231 = vmatpush1.bf16.xpose.msra.mxu0 0
        %1232 = vmatprep.subr.bf16.mxu0 0
        %1233 = vmatpush1.bf16.xpose.msra.mxu0 0
        %1234 = vmatprep.subr.bf16.mxu0 0
        %1235 = vmatpush1.bf16.xpose.msra.mxu0 0
        %1236 = vmatprep.subr.bf16.mxu0 0
        %1237 = vmatpush1.bf16.xpose.msra.mxu0 0
        %1238 = vmatprep.subr.bf16.mxu0 0
        %1239 = vmatpush1.bf16.xpose.msra.mxu0 0
        %1240 = vmatprep.subr.bf16.mxu0 0
        %1241 = vmatpush1.bf16.xpose.msra.mxu0 0
        %1242 = vmatprep.subr.bf16.mxu0 0
        %1243 = vmatpush1.bf16.xpose.msra.mxu0 0
        %1244 = vmatprep.subr.bf16.mxu0 0
        %1245 = vmatpush1.bf16.xpose.msra.mxu0 0
        %1246 = vmatprep.subr.bf16.mxu0 0
        %1247 = vmatpush1.bf16.xpose.msra.mxu0 0
        %1248 = vmatprep.subr.bf16.mxu0 0
        %1249 = vmatpush1.bf16.xpose.msra.mxu0 0
        %1250 = vmatprep.subr.bf16.mxu0 0
        %1251 = vmatpush1.bf16.xpose.msra.mxu0 0
        %1252 = vmatprep.mubr.bf16.mxu0 0
        %1253 = vmatmul.mubr.bf16.gmra.mrb[0].mxu0 %v1215
        %v1254 = vpop.f32.mrb[0].mxu0
        %v1255 = vadd.f32 0.0, %v1254
        %v1256 = vpop.f32.mrb[0].mxu0
        %v1257 = vpop.f32.mrb[0].mxu0
        %v1258 = vpop.f32.mrb[0].mxu0
        %1259 = vdwg.mxu0
        %v1260 = vlaneseq
        %v1261 = vshrl.u32 %v1260, 7
        %v1262 = vlaneseq
        %v1263 = vand.u32 %v1262, 127
        %vm1264 = vcmp.ge.s32.totalorder %v1261, %v1263
        %v1265 = vsel %vm1264, 1, 0
        %vm1266 = vcmp.eq.s32.totalorder %v1265, 1
        %v1267 = vsel %vm1266, %v1117, -1e+30
        %v1268 = vsel %vm1266, %v1163, -1e+30
        %v1269 = vsel %vm1266, %v1209, -1e+30
        %v1270 = vsel %vm1266, %v1255, -1e+30
        %v1271 = vsel %vm1075, %v1267, -inf
        %1272 = vmax.xlane.f32.xlu0 %v1271
        %v1273 = vpop.xlane.xlu0 %1272
        %v1274 = vsel %vm1075, %v1268, -inf
        %1275 = vmax.xlane.f32.xlu0 %v1274
        %v1276 = vpop.xlane.xlu0 %1275
        %v1277 = vsel %vm1075, %v1269, -inf
        %1278 = vmax.xlane.f32.xlu0 %v1277
        %v1279 = vpop.xlane.xlu0 %1278
        %v1280 = vsel %vm1075, %v1270, -inf
        %1281 = vmax.xlane.f32.xlu0 %v1280
        %v1282 = vpop.xlane.xlu0 %1281
        %v1283 = vmax.f32 %v1273, -1e+30
        %v1284 = vmax.f32 %v1276, -1e+30
        %v1285 = vmax.f32 %v1279, -1e+30
        %v1286 = vmax.f32 %v1282, -1e+30
        %v1287 = vsub.f32 -1e+30, %v1283
        %v1288 = vsub.f32 -1e+30, %v1284
        %v1289 = vsub.f32 -1e+30, %v1285
        %v1290 = vsub.f32 -1e+30, %v1286
        %v1291 = vmul.f32 %v1287, 1.442695
        %v1292 = vpow.pop %v1291
        %v1293 = vmul.f32 %v1288, 1.442695
        %v1294 = vpow.pop %v1293
        %v1295 = vmul.f32 %v1289, 1.442695
        %v1296 = vpow.pop %v1295
        %v1297 = vmul.f32 %v1290, 1.442695
        %v1298 = vpow.pop %v1297
        %v1299 = vsub.f32 %v1267, %v1283
        %v1300 = vsub.f32 %v1268, %v1284
        %v1301 = vsub.f32 %v1269, %v1285
        %v1302 = vsub.f32 %v1270, %v1286
        %v1303 = vmul.f32 %v1299, 1.442695
        %v1304 = vpow.pop %v1303
        %v1305 = vmul.f32 %v1300, 1.442695
        %v1306 = vpow.pop %v1305
        %v1307 = vmul.f32 %v1301, 1.442695
        %v1308 = vpow.pop %v1307
        %v1309 = vmul.f32 %v1302, 1.442695
        %v1310 = vpow.pop %v1309
        %v1311 = vmul.f32 %v1292, 0.0
        %v1312 = vmul.f32 %v1294, 0.0
        %v1313 = vmul.f32 %v1296, 0.0
        %v1314 = vmul.f32 %v1298, 0.0
        %v1315 = vsel %vm1075, %v1304, 0.0
        %1316 = vadd.xlane.f32.xlu0 %v1315
        %v1317 = vpop.xlane.xlu0 %1316
        %v1318 = vsel %vm1075, %v1306, 0.0
        %1319 = vadd.xlane.f32.xlu0 %v1318
        %v1320 = vpop.xlane.xlu0 %1319
        %v1321 = vsel %vm1075, %v1308, 0.0
        %1322 = vadd.xlane.f32.xlu0 %v1321
        %v1323 = vpop.xlane.xlu0 %1322
        %v1324 = vsel %vm1075, %v1310, 0.0
        %1325 = vadd.xlane.f32.xlu0 %v1324
        %v1326 = vpop.xlane.xlu0 %1325
        %v1327 = vadd.f32 %v1311, %v1317
        %v1328 = vadd.f32 %v1312, %v1320
        %v1329 = vadd.f32 %v1313, %v1323
        %v1330 = vadd.f32 %v1314, %v1326
        %v1331 = vpack.c.bf16 %v1304, %v1304
        %v1332 = vpack.c.bf16 %v1306, %v1306
        %v1333 = vpack.c.bf16 %v1308, %v1308
        %v1334 = vpack.c.bf16 %v1310, %v1310
        %v1336 = vsel %vm1075, %v1331, 0
        %vm1338 = vcmask 1043456
        %v1340 = vsel %vm1338, %v1071, 0
        %1342 = vmatprep.subr.bf16.mxu0 0
        %1343 = vmatpush1.bf16.msra.mxu0 %v1340
        %1344 = vmatprep.subr.bf16.mxu0 0
        %1345 = vmatpush1.bf16.msra.mxu0 0
        %1346 = vmatprep.subr.bf16.mxu0 0
        %1347 = vmatpush1.bf16.msra.mxu0 0
        %1348 = vmatprep.subr.bf16.mxu0 0
        %1349 = vmatpush1.bf16.msra.mxu0 0
        %1350 = vmatprep.subr.bf16.mxu0 0
        %1351 = vmatpush1.bf16.msra.mxu0 0
        %1352 = vmatprep.subr.bf16.mxu0 0
        %1353 = vmatpush1.bf16.msra.mxu0 0
        %1354 = vmatprep.subr.bf16.mxu0 0
        %1355 = vmatpush1.bf16.msra.mxu0 0
        %1356 = vmatprep.subr.bf16.mxu0 0
        %1357 = vmatpush1.bf16.msra.mxu0 0
        %1358 = vmatprep.subr.bf16.mxu0 0
        %1359 = vmatpush1.bf16.msra.mxu0 0
        %1360 = vmatprep.subr.bf16.mxu0 0
        %1361 = vmatpush1.bf16.msra.mxu0 0
        %1362 = vmatprep.subr.bf16.mxu0 0
        %1363 = vmatpush1.bf16.msra.mxu0 0
        %1364 = vmatprep.subr.bf16.mxu0 0
        %1365 = vmatpush1.bf16.msra.mxu0 0
        %1366 = vmatprep.subr.bf16.mxu0 0
        %1367 = vmatpush1.bf16.msra.mxu0 0
        %1368 = vmatprep.subr.bf16.mxu0 0
        %1369 = vmatpush1.bf16.msra.mxu0 0
        %1370 = vmatprep.subr.bf16.mxu0 0
        %1371 = vmatpush1.bf16.msra.mxu0 0
        %1372 = vmatprep.subr.bf16.mxu0 0
        %1373 = vmatpush1.bf16.msra.mxu0 0
        %1374 = vmatprep.mubr.bf16.mxu0 0
        %1375 = vmatmul.mubr.bf16.gmra.mrb[0].mxu0 %v1336
        %v1376 = vpop.f32.mrb[0].mxu0
        %v1377 = vadd.f32 0.0, %v1376
        %v1378 = vpop.f32.mrb[0].mxu0
        %v1379 = vpop.f32.mrb[0].mxu0
        %v1380 = vpop.f32.mrb[0].mxu0
        %1381 = vdwg.mxu0
        %v1383 = vsel %vm1075, %v1332, 0
        %v1386 = vsel %vm1338, %v1072, 0
        %1388 = vmatprep.subr.bf16.mxu0 0
        %1389 = vmatpush1.bf16.msra.mxu0 %v1386
        %1390 = vmatprep.subr.bf16.mxu0 0
        %1391 = vmatpush1.bf16.msra.mxu0 0
        %1392 = vmatprep.subr.bf16.mxu0 0
        %1393 = vmatpush1.bf16.msra.mxu0 0
        %1394 = vmatprep.subr.bf16.mxu0 0
        %1395 = vmatpush1.bf16.msra.mxu0 0
        %1396 = vmatprep.subr.bf16.mxu0 0
        %1397 = vmatpush1.bf16.msra.mxu0 0
        %1398 = vmatprep.subr.bf16.mxu0 0
        %1399 = vmatpush1.bf16.msra.mxu0 0
        %1400 = vmatprep.subr.bf16.mxu0 0
        %1401 = vmatpush1.bf16.msra.mxu0 0
        %1402 = vmatprep.subr.bf16.mxu0 0
        %1403 = vmatpush1.bf16.msra.mxu0 0
        %1404 = vmatprep.subr.bf16.mxu0 0
        %1405 = vmatpush1.bf16.msra.mxu0 0
        %1406 = vmatprep.subr.bf16.mxu0 0
        %1407 = vmatpush1.bf16.msra.mxu0 0
        %1408 = vmatprep.subr.bf16.mxu0 0
        %1409 = vmatpush1.bf16.msra.mxu0 0
        %1410 = vmatprep.subr.bf16.mxu0 0
        %1411 = vmatpush1.bf16.msra.mxu0 0
        %1412 = vmatprep.subr.bf16.mxu0 0
        %1413 = vmatpush1.bf16.msra.mxu0 0
        %1414 = vmatprep.subr.bf16.mxu0 0
        %1415 = vmatpush1.bf16.msra.mxu0 0
        %1416 = vmatprep.subr.bf16.mxu0 0
        %1417 = vmatpush1.bf16.msra.mxu0 0
        %1418 = vmatprep.subr.bf16.mxu0 0
        %1419 = vmatpush1.bf16.msra.mxu0 0
        %1420 = vmatprep.mubr.bf16.mxu0 0
        %1421 = vmatmul.mubr.bf16.gmra.mrb[0].mxu0 %v1383
        %v1422 = vpop.f32.mrb[0].mxu0
        %v1423 = vadd.f32 0.0, %v1422
        %v1424 = vpop.f32.mrb[0].mxu0
        %v1425 = vpop.f32.mrb[0].mxu0
        %v1426 = vpop.f32.mrb[0].mxu0
        %1427 = vdwg.mxu0
        %v1429 = vsel %vm1075, %v1333, 0
        %v1432 = vsel %vm1338, %v1073, 0
        %1434 = vmatprep.subr.bf16.mxu0 0
        %1435 = vmatpush1.bf16.msra.mxu0 %v1432
        %1436 = vmatprep.subr.bf16.mxu0 0
        %1437 = vmatpush1.bf16.msra.mxu0 0
        %1438 = vmatprep.subr.bf16.mxu0 0
        %1439 = vmatpush1.bf16.msra.mxu0 0
        %1440 = vmatprep.subr.bf16.mxu0 0
        %1441 = vmatpush1.bf16.msra.mxu0 0
        %1442 = vmatprep.subr.bf16.mxu0 0
        %1443 = vmatpush1.bf16.msra.mxu0 0
        %1444 = vmatprep.subr.bf16.mxu0 0
        %1445 = vmatpush1.bf16.msra.mxu0 0
        %1446 = vmatprep.subr.bf16.mxu0 0
        %1447 = vmatpush1.bf16.msra.mxu0 0
        %1448 = vmatprep.subr.bf16.mxu0 0
        %1449 = vmatpush1.bf16.msra.mxu0 0
        %1450 = vmatprep.subr.bf16.mxu0 0
        %1451 = vmatpush1.bf16.msra.mxu0 0
        %1452 = vmatprep.subr.bf16.mxu0 0
        %1453 = vmatpush1.bf16.msra.mxu0 0
        %1454 = vmatprep.subr.bf16.mxu0 0
        %1455 = vmatpush1.bf16.msra.mxu0 0
        %1456 = vmatprep.subr.bf16.mxu0 0
        %1457 = vmatpush1.bf16.msra.mxu0 0
        %1458 = vmatprep.subr.bf16.mxu0 0
        %1459 = vmatpush1.bf16.msra.mxu0 0
        %1460 = vmatprep.subr.bf16.mxu0 0
        %1461 = vmatpush1.bf16.msra.mxu0 0
        %1462 = vmatprep.subr.bf16.mxu0 0
        %1463 = vmatpush1.bf16.msra.mxu0 0
        %1464 = vmatprep.subr.bf16.mxu0 0
        %1465 = vmatpush1.bf16.msra.mxu0 0
        %1466 = vmatprep.mubr.bf16.mxu0 0
        %1467 = vmatmul.mubr.bf16.gmra.mrb[0].mxu0 %v1429
        %v1468 = vpop.f32.mrb[0].mxu0
        %v1469 = vadd.f32 0.0, %v1468
        %v1470 = vpop.f32.mrb[0].mxu0
        %v1471 = vpop.f32.mrb[0].mxu0
        %v1472 = vpop.f32.mrb[0].mxu0
        %1473 = vdwg.mxu0
        %v1475 = vsel %vm1075, %v1334, 0
        %v1478 = vsel %vm1338, %v1074, 0
        %1480 = vmatprep.subr.bf16.mxu0 0
        %1481 = vmatpush1.bf16.msra.mxu0 %v1478
        %1482 = vmatprep.subr.bf16.mxu0 0
        %1483 = vmatpush1.bf16.msra.mxu0 0
        %1484 = vmatprep.subr.bf16.mxu0 0
        %1485 = vmatpush1.bf16.msra.mxu0 0
        %1486 = vmatprep.subr.bf16.mxu0 0
        %1487 = vmatpush1.bf16.msra.mxu0 0
        %1488 = vmatprep.subr.bf16.mxu0 0
        %1489 = vmatpush1.bf16.msra.mxu0 0
        %1490 = vmatprep.subr.bf16.mxu0 0
        %1491 = vmatpush1.bf16.msra.mxu0 0
        %1492 = vmatprep.subr.bf16.mxu0 0
        %1493 = vmatpush1.bf16.msra.mxu0 0
        %1494 = vmatprep.subr.bf16.mxu0 0
        %1495 = vmatpush1.bf16.msra.mxu0 0
        %1496 = vmatprep.subr.bf16.mxu0 0
        %1497 = vmatpush1.bf16.msra.mxu0 0
        %1498 = vmatprep.subr.bf16.mxu0 0
        %1499 = vmatpush1.bf16.msra.mxu0 0
        %1500 = vmatprep.subr.bf16.mxu0 0
        %1501 = vmatpush1.bf16.msra.mxu0 0
        %1502 = vmatprep.subr.bf16.mxu0 0
        %1503 = vmatpush1.bf16.msra.mxu0 0
        %1504 = vmatprep.subr.bf16.mxu0 0
        %1505 = vmatpush1.bf16.msra.mxu0 0
        %1506 = vmatprep.subr.bf16.mxu0 0
        %1507 = vmatpush1.bf16.msra.mxu0 0
        %1508 = vmatprep.subr.bf16.mxu0 0
        %1509 = vmatpush1.bf16.msra.mxu0 0
        %1510 = vmatprep.subr.bf16.mxu0 0
        %1511 = vmatpush1.bf16.msra.mxu0 0
        %1512 = vmatprep.mubr.bf16.mxu0 0
        %1513 = vmatmul.mubr.bf16.gmra.mrb[0].mxu0 %v1475
        %v1514 = vpop.f32.mrb[0].mxu0
        %v1515 = vadd.f32 0.0, %v1514
        %v1516 = vpop.f32.mrb[0].mxu0
        %v1517 = vpop.f32.mrb[0].mxu0
        %v1518 = vpop.f32.mrb[0].mxu0
        %1519 = vdwg.mxu0
        %v1520 = vadd.f32 %v1311, %v1377
        %v1521 = vadd.f32 %v1312, %v1423
        %v1522 = vadd.f32 %v1313, %v1469
        %v1523 = vadd.f32 %v1314, %v1515
        %v1524 = vrcp.pop %v1327
        %v1525 = vrcp.pop %v1328
        %v1526 = vrcp.pop %v1329
        %v1527 = vrcp.pop %v1330
        %v1528 = vmul.f32 %v1520, %v1524
        %v1529 = vmul.f32 %v1521, %v1525
        %v1530 = vmul.f32 %v1522, %v1526
        %v1531 = vmul.f32 %v1523, %v1527
        %v1532 = vcombine.low %v1528, %v1530
        %v1533 = vcombine.high %v1528, %v1530
        %v1535 = vunpack.c.l.s4 1983009808
        %v1536 = vunpack.c.0.s8 %v1535
        %v1537 = vlaneseq
        %v1538 = vshrl.u32 %v1537, 7
        %v1539 = vsub.s32 %v1536, %v1538
        %v1540 = vrot.slane %v1532, %v1539
        %v1542 = vunpack.c.l.s4 1983009808
        %v1543 = vunpack.c.0.s8 %v1542
        %v1544 = vlaneseq
        %v1545 = vshrl.u32 %v1544, 7
        %v1546 = vsub.s32 %v1543, %v1545
        %v1547 = vrot.slane %v1533, %v1546
        %v1548 = vcombine.low %v1529, %v1531
        %v1549 = vcombine.high %v1529, %v1531
        %v1551 = vunpack.c.l.s4 1983009808
        %v1552 = vunpack.c.0.s8 %v1551
        %v1553 = vlaneseq
        %v1554 = vshrl.u32 %v1553, 7
        %v1555 = vsub.s32 %v1552, %v1554
        %v1556 = vrot.slane %v1548, %v1555
        %v1558 = vunpack.c.l.s4 1983009808
        %v1559 = vunpack.c.0.s8 %v1558
        %v1560 = vlaneseq
        %v1561 = vshrl.u32 %v1560, 7
        %v1562 = vsub.s32 %v1559, %v1561
        %v1563 = vrot.slane %v1549, %v1562
        %v1564 = vcombine.low %v1540, %v1556
        %v1565 = vcombine.high %v1540, %v1556
        %v1567 = vunpack.c.l.s4 1934713408
        %v1568 = vunpack.c.0.s8 %v1567
        %v1569 = vlaneseq
        %v1570 = vshrl.u32 %v1569, 7
        %v1571 = vsub.s32 %v1568, %v1570
        %v1572 = vrot.slane %v1564, %v1571
        %v1574 = vunpack.c.l.s4 1934713408
        %v1575 = vunpack.c.0.s8 %v1574
        %v1576 = vlaneseq
        %v1577 = vshrl.u32 %v1576, 7
        %v1578 = vsub.s32 %v1575, %v1577
        %v1579 = vrot.slane %v1565, %v1578
        %v1580 = vcombine.low %v1547, %v1563
        %v1581 = vcombine.high %v1547, %v1563
        %v1583 = vunpack.c.l.s4 1934713408
        %v1584 = vunpack.c.0.s8 %v1583
        %v1585 = vlaneseq
        %v1586 = vshrl.u32 %v1585, 7
        %v1587 = vsub.s32 %v1584, %v1586
        %v1588 = vrot.slane %v1580, %v1587
        %v1590 = vunpack.c.l.s4 1934713408
        %v1591 = vunpack.c.0.s8 %v1590
        %v1592 = vlaneseq
        %v1593 = vshrl.u32 %v1592, 7
        %v1594 = vsub.s32 %v1591, %v1593
        %v1595 = vrot.slane %v1581, %v1594
        %v1596 = vcombine.high %v1572, 0.0
        %v1597 = vcombine.high %v1579, 0.0
        %v1598 = vcombine.high %v1588, 0.0
        %v1599 = vcombine.high %v1595, 0.0
        %v1600 = vcombine.low %v1572, %v1579
        %v1602 = vunpack.c.l.s4 1983009808
        %v1603 = vunpack.c.0.s8 %v1602
        %v1604 = vlaneseq
        %v1605 = vshrl.u32 %v1604, 7
        %v1606 = vsub.s32 %v1603, %v1605
        %v1607 = vrot.slane %v1600, %v1606
        %v1608 = vcombine.low %v1596, %v1597
        %v1610 = vunpack.c.l.s4 1983009808
        %v1611 = vunpack.c.0.s8 %v1610
        %v1612 = vlaneseq
        %v1613 = vshrl.u32 %v1612, 7
        %v1614 = vsub.s32 %v1611, %v1613
        %v1615 = vrot.slane %v1608, %v1614
        %v1616 = vcombine.low %v1588, %v1595
        %v1618 = vunpack.c.l.s4 1983009808
        %v1619 = vunpack.c.0.s8 %v1618
        %v1620 = vlaneseq
        %v1621 = vshrl.u32 %v1620, 7
        %v1622 = vsub.s32 %v1619, %v1621
        %v1623 = vrot.slane %v1616, %v1622
        %v1624 = vcombine.low %v1598, %v1599
        %v1626 = vunpack.c.l.s4 1983009808
        %v1627 = vunpack.c.0.s8 %v1626
        %v1628 = vlaneseq
        %v1629 = vshrl.u32 %v1628, 7
        %v1630 = vsub.s32 %v1627, %v1629
        %v1631 = vrot.slane %v1624, %v1630
        %v1632 = vcombine.low %v1607, %v1615
        %v1633 = vcombine.high %v1607, %v1615
        %v1635 = vunpack.c.l.s4 1934713408
        %v1636 = vunpack.c.0.s8 %v1635
        %v1637 = vlaneseq
        %v1638 = vshrl.u32 %v1637, 7
        %v1639 = vsub.s32 %v1636, %v1638
        %v1640 = vrot.slane %v1632, %v1639
        %v1642 = vunpack.c.l.s4 1934713408
        %v1643 = vunpack.c.0.s8 %v1642
        %v1644 = vlaneseq
        %v1645 = vshrl.u32 %v1644, 7
        %v1646 = vsub.s32 %v1643, %v1645
        %v1647 = vrot.slane %v1633, %v1646
        %v1648 = vcombine.low %v1623, %v1631
        %v1649 = vcombine.high %v1623, %v1631
        %v1651 = vunpack.c.l.s4 1934713408
        %v1652 = vunpack.c.0.s8 %v1651
        %v1653 = vlaneseq
        %v1654 = vshrl.u32 %v1653, 7
        %v1655 = vsub.s32 %v1652, %v1654
        %v1656 = vrot.slane %v1648, %v1655
        %v1658 = vunpack.c.l.s4 1934713408
        %v1659 = vunpack.c.0.s8 %v1658
        %v1660 = vlaneseq
        %v1661 = vshrl.u32 %v1660, 7
        %v1662 = vsub.s32 %v1659, %v1661
        %v1663 = vrot.slane %v1649, %v1662
        %v1664 = vcombine.low %v1640, %v1656
        %v1665 = vcombine.high %v1640, %v1656
        %v1666 = vcombine.low %v1647, %v1663
        %v1667 = vcombine.high %v1647, %v1663
        %1669 = vrot.lane.b32.xlu0 %v1665, 8
        %v1670 = vpop.permute.xlu0 %1669
        %1673 = vrot.lane.b32.xlu0 %v1666, 16
        %v1674 = vpop.permute.xlu0 %1673
        %1677 = vrot.lane.b32.xlu0 %v1667, 24
        %v1678 = vpop.permute.xlu0 %1677
        %v1680 = vsel %vm1075, %v1664, %v1670
        %vm1681 = vcmask 130048
        %v1682 = vsel %vm1681, %v1680, %v1674
        %vm1683 = vcmask 195584
        %v1684 = vsel %vm1683, %v1682, %v1678
        %v1685 = vpack.c.bf16 %v1684, %v1684
        %v1686 = vld [vmem:[%s5] sm:$0xf]
        %v1687 = vld [vmem:[%s5 + $0x4] sm:$0xf]
        %v1688 = vld [vmem:[%s5 + $0x8] sm:$0xf]
        %v1689 = vld [vmem:[%s5 + $0xc] sm:$0xf]
        %v1690 = vld [vmem:[%s6] sm:$0x1]
        %v1692 = vlaneseq
        %v1693 = vshrl.u32 %v1692, 7
        %v1694 = vsub.s32 0, %v1693
        %v1695 = vrot.slane %v1690, %v1694
        %v1701 = vunpack.c.l.b16 %v1686
        %v1702 = vunpack.c.l.b16 %v1687
        %v1703 = vunpack.c.l.b16 %v1688
        %v1704 = vunpack.c.l.b16 %v1689
        %v1705 = vpack.c.b16 %v1702, %v1701
        %v1706 = vpack.c.b16 %v1704, %v1703
        %v1710 = vsel %vm512, %v1685, 0
        %1712 = vmatprep.subr.bf16.mxu0 0
        %1713 = vmatpush1.bf16.msra.mxu0 %v1705
        %1714 = vmatprep.subr.bf16.mxu0 0
        %1715 = vmatpush1.bf16.msra.mxu0 %v1706
        %1716 = vmatprep.subr.bf16.mxu0 0
        %1717 = vmatpush1.bf16.msra.mxu0 0
        %1718 = vmatprep.subr.bf16.mxu0 0
        %1719 = vmatpush1.bf16.msra.mxu0 0
        %1720 = vmatprep.subr.bf16.mxu0 0
        %1721 = vmatpush1.bf16.msra.mxu0 0
        %1722 = vmatprep.subr.bf16.mxu0 0
        %1723 = vmatpush1.bf16.msra.mxu0 0
        %1724 = vmatprep.subr.bf16.mxu0 0
        %1725 = vmatpush1.bf16.msra.mxu0 0
        %1726 = vmatprep.subr.bf16.mxu0 0
        %1727 = vmatpush1.bf16.msra.mxu0 0
        %1728 = vmatprep.subr.bf16.mxu0 0
        %1729 = vmatpush1.bf16.msra.mxu0 0
        %1730 = vmatprep.subr.bf16.mxu0 0
        %1731 = vmatpush1.bf16.msra.mxu0 0
        %1732 = vmatprep.subr.bf16.mxu0 0
        %1733 = vmatpush1.bf16.msra.mxu0 0
        %1734 = vmatprep.subr.bf16.mxu0 0
        %1735 = vmatpush1.bf16.msra.mxu0 0
        %1736 = vmatprep.subr.bf16.mxu0 0
        %1737 = vmatpush1.bf16.msra.mxu0 0
        %1738 = vmatprep.subr.bf16.mxu0 0
        %1739 = vmatpush1.bf16.msra.mxu0 0
        %1740 = vmatprep.subr.bf16.mxu0 0
        %1741 = vmatpush1.bf16.msra.mxu0 0
        %1742 = vmatprep.subr.bf16.mxu0 0
        %1743 = vmatpush1.bf16.msra.mxu0 0
        %1744 = vmatprep.mubr.bf16.mxu0 0
        %1745 = vmatmul.mubr.bf16.gmra.mrb[0].mxu0 %v1710
        %v1746 = vpop.f32.mrb[0].mxu0
        %v1747 = vadd.f32 %v1695, %v1746
        %v1748 = vpop.f32.mrb[0].mxu0
        %v1749 = vpop.f32.mrb[0].mxu0
        %v1750 = vpop.f32.mrb[0].mxu0
        %1751 = vdwg.mxu0
        %v1752 = vadd.f32 %v509, %v1747
        %v1753 = vld [vmem:[%s7] sm:$0x1]
        %v1754 = vld [vmem:[%s8] sm:$0x1]
        %v1755 = vsel %vm512, %v1752, 0.0
        %1756 = vadd.xlane.f32.xlu0 %v1755
        %v1757 = vpop.xlane.xlu0 %1756
        %v1758 = vmul.f32 %v1757, %v516
        %v1759 = vsub.f32 %v1752, %v1758
        %v1760 = vmul.f32 %v1759, %v1759
        %v1761 = vsel %vm512, %v1760, 0.0
        %1762 = vadd.xlane.f32.xlu0 %v1761
        %v1763 = vpop.xlane.xlu0 %1762
        %v1764 = vmul.f32 %v1763, %v516
        %v1765 = vadd.f32 %v1764, 1e-05
        %v1766 = vrsqrt.pop %v1765
        %v1767 = vmul.f32 %v1759, %v1766
        %v1769 = vlaneseq
        %v1770 = vshrl.u32 %v1769, 7
        %v1771 = vsub.s32 0, %v1770
        %v1772 = vrot.slane %v1753, %v1771
        %v1774 = vmul.f32 %v1767, %v1772
        %v1776 = vlaneseq
        %v1777 = vshrl.u32 %v1776, 7
        %v1778 = vsub.s32 0, %v1777
        %v1779 = vrot.slane %v1754, %v1778
        %v1781 = vadd.f32 %v1774, %v1779
        %v1782 = vpack.c.bf16 %v1781, %v1781
        %v1783 = vld [vmem:[%s9] sm:$0xf]
        %v1784 = vld [vmem:[%s9 + $0x4] sm:$0xf]
        %v1785 = vld [vmem:[%s9 + $0x8] sm:$0xf]
        %v1786 = vld [vmem:[%s9 + $0xc] sm:$0xf]
        %v1787 = vld [vmem:[%s10] sm:$0x1]
        %v1789 = vlaneseq
        %v1790 = vshrl.u32 %v1789, 7
        %v1791 = vsub.s32 0, %v1790
        %v1792 = vrot.slane %v1787, %v1791
        %v1798 = vunpack.c.l.b16 %v1783
        %v1799 = vunpack.c.l.b16 %v1784
        %v1800 = vunpack.c.l.b16 %v1785
        %v1801 = vunpack.c.l.b16 %v1786
        %v1802 = vpack.c.b16 %v1799, %v1798
        %v1803 = vpack.c.b16 %v1801, %v1800
        %v1807 = vsel %vm512, %v1782, 0
        %1809 = vmatprep.subr.bf16.mxu0 0
        %1810 = vmatpush1.bf16.msra.mxu0 %v1802
        %1811 = vmatprep.subr.bf16.mxu0 0
        %1812 = vmatpush1.bf16.msra.mxu0 %v1803
        %1813 = vmatprep.subr.bf16.mxu0 0
        %1814 = vmatpush1.bf16.msra.mxu0 0
        %1815 = vmatprep.subr.bf16.mxu0 0
        %1816 = vmatpush1.bf16.msra.mxu0 0
        %1817 = vmatprep.subr.bf16.mxu0 0
        %1818 = vmatpush1.bf16.msra.mxu0 0
        %1819 = vmatprep.subr.bf16.mxu0 0
        %1820 = vmatpush1.bf16.msra.mxu0 0
        %1821 = vmatprep.subr.bf16.mxu0 0
        %1822 = vmatpush1.bf16.msra.mxu0 0
        %1823 = vmatprep.subr.bf16.mxu0 0
        %1824 = vmatpush1.bf16.msra.mxu0 0
        %1825 = vmatprep.subr.bf16.mxu0 0
        %1826 = vmatpush1.bf16.msra.mxu0 0
        %1827 = vmatprep.subr.bf16.mxu0 0
        %1828 = vmatpush1.bf16.msra.mxu0 0
        %1829 = vmatprep.subr.bf16.mxu0 0
        %1830 = vmatpush1.bf16.msra.mxu0 0
        %1831 = vmatprep.subr.bf16.mxu0 0
        %1832 = vmatpush1.bf16.msra.mxu0 0
        %1833 = vmatprep.subr.bf16.mxu0 0
        %1834 = vmatpush1.bf16.msra.mxu0 0
        %1835 = vmatprep.subr.bf16.mxu0 0
        %1836 = vmatpush1.bf16.msra.mxu0 0
        %1837 = vmatprep.subr.bf16.mxu0 0
        %1838 = vmatpush1.bf16.msra.mxu0 0
        %1839 = vmatprep.subr.bf16.mxu0 0
        %1840 = vmatpush1.bf16.msra.mxu0 0
        %1841 = vmatprep.mubr.bf16.mxu0 0
        %1842 = vmatmul.mubr.bf16.gmra.mrb[0].mxu0 %v1807
        %v1843 = vpop.f32.mrb[0].mxu0
        %v1844 = vadd.f32 %v1792, %v1843
        %v1845 = vpop.f32.mrb[0].mxu0
        %v1846 = vpop.f32.mrb[0].mxu0
        %v1847 = vpop.f32.mrb[0].mxu0
        %1848 = vdwg.mxu0
        %v1849 = vmul.f32 %v1844, 0.5
        %v1850 = vmul.f32 %v1844, 0.70710677
        %v1851 = verf.f32.pop %v1850
        %v1852 = vadd.f32 %v1851, 1.0
        %v1853 = vmul.f32 %v1849, %v1852
        %v1854 = vpack.c.bf16 %v1853, %v1853
        %v1855 = vld [vmem:[%s11] sm:$0xf]
        %v1856 = vld [vmem:[%s11 + $0x4] sm:$0xf]
        %v1857 = vld [vmem:[%s11 + $0x8] sm:$0xf]
        %v1858 = vld [vmem:[%s11 + $0xc] sm:$0xf]
        %v1859 = vld [vmem:[%s11 + $0x10] sm:$0xf]
        %v1860 = vld [vmem:[%s11 + $0x14] sm:$0xf]
        %v1861 = vld [vmem:[%s11 + $0x18] sm:$0xf]
        %v1862 = vld [vmem:[%s11 + $0x1c] sm:$0xf]
        %v1863 = vld [vmem:[%s11 + $0x20] sm:$0xf]
        %v1864 = vld [vmem:[%s11 + $0x24] sm:$0xf]
        %v1865 = vld [vmem:[%s11 + $0x28] sm:$0xf]
        %v1866 = vld [vmem:[%s11 + $0x2c] sm:$0xf]
        %v1867 = vld [vmem:[%s11 + $0x30] sm:$0xf]
        %v1868 = vld [vmem:[%s11 + $0x34] sm:$0xf]
        %v1869 = vld [vmem:[%s11 + $0x38] sm:$0xf]
        %v1870 = vld [vmem:[%s11 + $0x3c] sm:$0xf]
        %v1871 = vld [vmem:[%s12] sm:$0x1]
        %v1873 = vlaneseq
        %v1874 = vshrl.u32 %v1873, 7
        %v1875 = vsub.s32 0, %v1874
        %v1876 = vrot.slane %v1871, %v1875
        %v1894 = vunpack.c.l.b16 %v1855
        %v1895 = vunpack.c.l.b16 %v1856
        %v1896 = vunpack.c.l.b16 %v1857
        %v1897 = vunpack.c.l.b16 %v1858
        %v1898 = vunpack.c.l.b16 %v1859
        %v1899 = vunpack.c.l.b16 %v1860
        %v1900 = vunpack.c.l.b16 %v1861
        %v1901 = vunpack.c.l.b16 %v1862
        %v1902 = vunpack.c.l.b16 %v1863
        %v1903 = vunpack.c.l.b16 %v1864
        %v1904 = vunpack.c.l.b16 %v1865
        %v1905 = vunpack.c.l.b16 %v1866
        %v1906 = vunpack.c.l.b16 %v1867
        %v1907 = vunpack.c.l.b16 %v1868
        %v1908 = vunpack.c.l.b16 %v1869
        %v1909 = vunpack.c.l.b16 %v1870
        %v1910 = vpack.c.b16 %v1895, %v1894
        %v1911 = vpack.c.b16 %v1897, %v1896
        %v1912 = vpack.c.b16 %v1899, %v1898
        %v1913 = vpack.c.b16 %v1901, %v1900
        %v1914 = vpack.c.b16 %v1903, %v1902
        %v1915 = vpack.c.b16 %v1905, %v1904
        %v1916 = vpack.c.b16 %v1907, %v1906
        %v1917 = vpack.c.b16 %v1909, %v1908
        %1926 = vmatprep.subr.bf16.mxu0 0
        %1927 = vmatpush1.bf16.msra.mxu0 %v1910
        %1928 = vmatprep.subr.bf16.mxu0 0
        %1929 = vmatpush1.bf16.msra.mxu0 %v1911
        %1930 = vmatprep.subr.bf16.mxu0 0
        %1931 = vmatpush1.bf16.msra.mxu0 %v1912
        %1932 = vmatprep.subr.bf16.mxu0 0
        %1933 = vmatpush1.bf16.msra.mxu0 %v1913
        %1934 = vmatprep.subr.bf16.mxu0 0
        %1935 = vmatpush1.bf16.msra.mxu0 %v1914
        %1936 = vmatprep.subr.bf16.mxu0 0
        %1937 = vmatpush1.bf16.msra.mxu0 %v1915
        %1938 = vmatprep.subr.bf16.mxu0 0
        %1939 = vmatpush1.bf16.msra.mxu0 %v1916
        %1940 = vmatprep.subr.bf16.mxu0 0
        %1941 = vmatpush1.bf16.msra.mxu0 %v1917
        %1942 = vmatprep.subr.bf16.mxu0 0
        %1943 = vmatpush1.bf16.msra.mxu0 0
        %1944 = vmatprep.subr.bf16.mxu0 0
        %1945 = vmatpush1.bf16.msra.mxu0 0
        %1946 = vmatprep.subr.bf16.mxu0 0
        %1947 = vmatpush1.bf16.msra.mxu0 0
        %1948 = vmatprep.subr.bf16.mxu0 0
        %1949 = vmatpush1.bf16.msra.mxu0 0
        %1950 = vmatprep.subr.bf16.mxu0 0
        %1951 = vmatpush1.bf16.msra.mxu0 0
        %1952 = vmatprep.subr.bf16.mxu0 0
        %1953 = vmatpush1.bf16.msra.mxu0 0
        %1954 = vmatprep.subr.bf16.mxu0 0
        %1955 = vmatpush1.bf16.msra.mxu0 0
        %1956 = vmatprep.subr.bf16.mxu0 0
        %1957 = vmatpush1.bf16.msra.mxu0 0
        %1958 = vmatprep.mubr.bf16.mxu0 0
        %1959 = vmatmul.mubr.bf16.gmra.mrb[0].mxu0 %v1854
        %v1960 = vpop.f32.mrb[0].mxu0
        %v1961 = vadd.f32 %v1876, %v1960
        %v1962 = vpop.f32.mrb[0].mxu0
        %v1963 = vpop.f32.mrb[0].mxu0
        %v1964 = vpop.f32.mrb[0].mxu0
        %1965 = vdwg.mxu0
        %v1966 = vadd.f32 %v1752, %v1961
        %1967 = vst.msk [vmem:[%s489] sm:$0xff] %vm512, %v1966
        %s1968 = sand.u32 %s319, 1
        %s1969 = scalar_lea.sflag [#allocation3], %s1968
        %s1970 = sand.u32 %s319, 1
        %s1971 = smul.addr %s1970, 8
        %s1972 = scalar_lea.vmem [#allocation2], %s1971
        %s1973 = sand.u32 %s33, 1
        %s1974 = scalar_lea.sflag [#allocation5], %s1973
        %s1975 = sand.u32 %s345, 1
        %s1976 = smul.addr %s1975, 4
        %s1977 = scalar_lea.vmem [#allocation4], %s1976
        %s1978 = sand.u32 %s33, 1
        %s1979 = scalar_lea.sflag [#allocation5], %s1978
        %s1980 = sand.u32 %s371, 1
        %s1981 = smul.addr %s1980, 4
        %s1982 = scalar_lea.vmem [#allocation6], %s1981
        // Predicated region
        $region73: #{tpu_custom_call.1} parent=71 // pred_check
          %p1983 = pneg %p329
        $region74: #{tpu_custom_call.1} parent=71 // pred_check_branch
          %1985 = sbr.rel (%p1983) target = $region76
        $region75: #{tpu_custom_call.1} parent=71 // pred_region
          %s1987 = ssub.s32 128, 128
          %1988 = vsyncadd %s1969, %s1987
          %s1989 = smul.addr %s33, 128
          %s1990 = scalar_lea.hbm %s13, %s1989
          %s1992 = sshll.u32 %s1972, 4
          %s1993 = int_to_ptr.vmem [resolvable:$true] %s1992
          %1995 = dma.vmem_to_hbm [thread:$0]  %s1993, 128, %s1990, %s1969
        $region76: #{tpu_custom_call.1} parent=71 // pred_fallthru
          _
        // Predicated region
        $region77: #{tpu_custom_call.1} parent=71 // pred_check
          %p1996 = pneg %p355
        $region78: #{tpu_custom_call.1} parent=71 // pred_check_branch
          %1998 = sbr.rel (%p1996) target = $region80
        $region79: #{tpu_custom_call.1} parent=71 // pred_region
          %s2000 = ssub.s32 64, 64
          %2001 = vsyncadd %s1974, %s2000
          %s2002 = smul.addr %s33, 64
          %s2003 = scalar_lea.hbm %s14, %s2002
          %s2005 = sshll.u32 %s1977, 4
          %s2006 = int_to_ptr.vmem [resolvable:$true] %s2005
          %2008 = dma.vmem_to_hbm [thread:$0]  %s2006, 64, %s2003, %s1974
        $region80: #{tpu_custom_call.1} parent=71 // pred_fallthru
          _
        // Predicated region
        $region81: #{tpu_custom_call.1} parent=71 // pred_check
          %p2009 = pneg %p381
        $region82: #{tpu_custom_call.1} parent=71 // pred_check_branch
          %2011 = sbr.rel (%p2009) target = $region84
        $region83: #{tpu_custom_call.1} parent=71 // pred_region
          %s2013 = ssub.s32 64, 64
          %2014 = vsyncadd %s1979, %s2013
          %s2015 = smul.addr %s33, 64
          %s2016 = scalar_lea.hbm %s15, %s2015
          %s2018 = sshll.u32 %s1982, 4
          %s2019 = int_to_ptr.vmem [resolvable:$true] %s2018
          %2021 = dma.vmem_to_hbm [thread:$0]  %s2019, 64, %s2016, %s1979
        $region84: #{tpu_custom_call.1} parent=71 // pred_fallthru
          _
      $region72: #{tpu_custom_call.1} parent=5 // pred_fallthru
        _
      %p2022 = scmp.le.s32.totalorder 2, %s28
      // Predicated region
      $region85: #{tpu_custom_call.1} parent=5 // pred_check
        %p2023 = pneg %p2022
      $region86: #{tpu_custom_call.1} parent=5 // pred_check_branch
        %2025 = sbr.rel (%p2023) target = $region88
      $region87: #{tpu_custom_call.1} parent=5 // pred_region
        %s2026 = ssub.s32 %s28, 2
        // Predicated region
        $region89: #{tpu_custom_call.1} parent=87 // pred_check
          %p2027 = pneg %p335
        $region90: #{tpu_custom_call.1} parent=87 // pred_check_branch
          %2029 = sbr.rel (%p2027) target = $region92
        $region91: #{tpu_custom_call.1} parent=87 // pred_region
          %s2030 = sand.u32 %s320, 1
          %s2031 = scalar_lea.sflag [#allocation3], %s2030
          %s2032 = sand.u32 %s320, 1
          %s2033 = smul.addr %s2032, 8
          %s2034 = scalar_lea.vmem [#allocation2], %s2033
          %2035 = dma.done %s2031, 128
        $region92: #{tpu_custom_call.1} parent=87 // pred_fallthru
          _
        // Predicated region
        $region93: #{tpu_custom_call.1} parent=87 // pred_check
          %p2036 = pneg %p361
        $region94: #{tpu_custom_call.1} parent=87 // pred_check_branch
          %2038 = sbr.rel (%p2036) target = $region96
        $region95: #{tpu_custom_call.1} parent=87 // pred_region
          %s2039 = sand.u32 %s34, 1
          %s2040 = scalar_lea.sflag [#allocation5], %s2039
          %s2041 = sand.u32 %s346, 1
          %s2042 = smul.addr %s2041, 4
          %s2043 = scalar_lea.vmem [#allocation4], %s2042
          %2044 = dma.done %s2040, 64
        $region96: #{tpu_custom_call.1} parent=87 // pred_fallthru
          _
        // Predicated region
        $region97: #{tpu_custom_call.1} parent=87 // pred_check
          %p2045 = pneg %p387
        $region98: #{tpu_custom_call.1} parent=87 // pred_check_branch
          %2047 = sbr.rel (%p2045) target = $region100
        $region99: #{tpu_custom_call.1} parent=87 // pred_region
          %s2048 = sand.u32 %s34, 1
          %s2049 = scalar_lea.sflag [#allocation5], %s2048
          %s2050 = sand.u32 %s372, 1
          %s2051 = smul.addr %s2050, 4
          %s2052 = scalar_lea.vmem [#allocation6], %s2051
          %2053 = dma.done %s2049, 64
        $region100: #{tpu_custom_call.1} parent=87 // pred_fallthru
          _
      $region88: #{tpu_custom_call.1} parent=5 // pred_fallthru
        _
    $region6: #{tpu_custom_call.1} parent=1 // loop_footer
      %s32 = sadd.s32 1, %s28
    $region7: #{tpu_custom_call.1} parent=1 // loop_footer_branch
      %27 = sbr.rel target = $region3
    $region8: #{tpu_custom_call.1} parent=1 // loop_exit
      _
    %2054 = vsyncpa [#allocation3], 1
    %s2055 = scalar_lea.sflag [#allocation3], 1
    %2056 = vsyncpa %s2055, 1
    %2057 = vsyncpa [#allocation5], 1
    %s2058 = scalar_lea.sflag [#allocation5], 1
    %2059 = vsyncpa %s2058, 1

</llo_original>
